<compile_context>
chip_gen: v7x
topology: tpu7x:2x2x1
jax: 0.10.0
libtpu: 0.0.40
codegen_flags: <defaults>
</compile_context>

<pallas_src>
import math
from functools import partial

import jax
import jax.numpy as jnp
from jax import lax
from jax.experimental import pallas as pl
from jax.experimental.pallas import tpu as pltpu

# ---------------- small synthetic BERT config ----------------
VOCAB = 100
HIDDEN = 32
NUM_HEADS = 2
NUM_LAYERS = 2
INTERMEDIATE = 64
MAX_POS = 16
NUM_CLASSES = 3
BATCH = 2
SEQ = 8
LN_EPS = 1e-12


# ---------------- in-kernel helpers ----------------
def _ln(x, g, b):
    mu = jnp.mean(x, axis=-1, keepdims=True)
    var = jnp.mean(jnp.square(x - mu), axis=-1, keepdims=True)
    return (x - mu) * lax.rsqrt(var + LN_EPS) * g + b


def _softmax_last(x):
    m = jnp.max(x, axis=-1, keepdims=True)
    e = jnp.exp(x - m)
    # EUP reciprocal instead of a per-element divide.
    return e * pl.reciprocal(jnp.sum(e, axis=-1, keepdims=True), approx=True)


# ---------------- fused kernel: embeddings-LN -> L encoder layers -> pooler -> classifier ----------------
def fused_bert_kernel(num_heads, num_layers,
                      emb_ref,      # (S, H)     summed word+pos+type embeddings, this batch element
                      amask_ref,    # (1, S)     additive attention mask
                      wqkv_ref,     # (L, H, 3H) fused QKV weights
                      bqkv_ref,     # (L, 1, 3H) fused QKV bias
                      wo_ref,       # (L, H, H)  attention output weight
                      vech_ref,     # (L, 6, H)  rows: [bo, ln1_g, ln1_b, b2, ln2_g, ln2_b]
                      w1_ref,       # (L, H, I)  FFN in
                      b1_ref,       # (L, 1, I)
                      w2_ref,       # (L, I, H)  FFN out
                      hv_ref,       # (4, H)     rows: [emb_ln_g, emb_ln_b, pooler_b, cls_b(padded)]
                      wp_ref,       # (H, H)     pooler weight
                      wc_ref,       # (H, C)     classifier weight
                      o_ref):       # (1, C)     class probabilities for this batch element
    S, H = emb_ref.shape
    hd = H // num_heads
    scale = 1.0 / math.sqrt(hd)
    C = o_ref.shape[-1]

    amask = amask_ref[...]                 # (1, S), broadcasts over query rows
    hv = hv_ref[...]                       # (4, H)

    # Embedding LayerNorm
    x0 = _ln(emb_ref[...], hv[0:1, :], hv[1:2, :])

    def layer_body(l, x):
        # ---- attention ----
        qkv = jnp.dot(x, wqkv_ref[l], preferred_element_type=jnp.float32) + bqkv_ref[l]
        q = qkv[:, 0:H]
        k = qkv[:, H:2 * H]
        v = qkv[:, 2 * H:3 * H]
        wo = wo_ref[l]
        vh = vech_ref[l]
        bo, ln1_g, ln1_b = vh[0:1, :], vh[1:2, :], vh[2:3, :]
        b2, ln2_g, ln2_b = vh[3:4, :], vh[4:5, :], vh[5:6, :]

        # Per-head context projected by the matching row-slice of Wo (== concat(heads) @ Wo).
        # num_heads is tiny here so the loop is fully unrolled; for large H use a batched einsum.
        attn = jnp.zeros_like(x)
        for h in range(num_heads):
            sl = slice(h * hd, (h + 1) * hd)
            s = jnp.dot(q[:, sl], k[:, sl].T,
                        preferred_element_type=jnp.float32) * scale + amask
            p = _softmax_last(s)
            ctx = jnp.dot(p, v[:, sl], preferred_element_type=jnp.float32)
            attn = attn + jnp.dot(ctx, wo[sl, :], preferred_element_type=jnp.float32)

        h1 = _ln(x + attn + bo, ln1_g, ln1_b)

        # ---- feed-forward ----
        ff = jnp.dot(h1, w1_ref[l], preferred_element_type=jnp.float32) + b1_ref[l]
        ff = jax.nn.gelu(ff, approximate=True)  # TODO(synk): HF BERT uses exact erf-GELU
        ff = jnp.dot(ff, w2_ref[l], preferred_element_type=jnp.float32) + b2

        return _ln(h1 + ff, ln2_g, ln2_b)

    x = lax.fori_loop(0, num_layers, layer_body, x0, unroll=True)

    # ---- pooler (tanh(W_p @ [CLS])) -> classifier -> softmax ----
    cls = x[0:1, :]                                                     # (1, H) [CLS] row only
    pooled = jnp.tanh(
        jnp.dot(cls, wp_ref[...], preferred_element_type=jnp.float32) + hv[2:3, :])
    logits = jnp.dot(pooled, wc_ref[...],
                     preferred_element_type=jnp.float32) + hv[3:4, :][:, 0:C]
    o_ref[...] = _softmax_last(logits)


# ---------------- pallas_call wrapper ----------------
def bert_classifier_forward(params, input_ids, attention_mask=None):
    B, S = input_ids.shape
    H, I, L, C = HIDDEN, INTERMEDIATE, NUM_LAYERS, NUM_CLASSES
    if attention_mask is None:
        attention_mask = jnp.ones((B, S), jnp.float32)

    # Glue (no clean Pallas gather for tiny embedding tables): word + position + token_type(0)
    we = jnp.take(params["word_emb"], input_ids, axis=0)                # (B, S, H)
    pe = params["pos_emb"][:S][None, :, :]                              # (1, S, H)
    te = params["type_emb"][0][None, None, :]                           # (1, 1, H)
    emb = (we + pe + te).astype(jnp.float32)

    # Additive mask computed once here (hoisted out of the kernel).
    amask = ((1.0 - attention_mask.astype(jnp.float32)) * -10000.0)[:, None, :]   # (B, 1, S)

    stk = params["stacked"]

    def full(shape):
        return pl.BlockSpec(shape, lambda i: (0,) * len(shape))

    out = pl.pallas_call(
        partial(fused_bert_kernel, NUM_HEADS, L),
        out_shape=jax.ShapeDtypeStruct((B, 1, C), jnp.float32),
        grid=(B,),
        in_specs=[
            pl.BlockSpec((pl.Squeezed(), S, H), lambda i: (i, 0, 0)),   # emb (per batch element)
            pl.BlockSpec((pl.Squeezed(), 1, S), lambda i: (i, 0, 0)),   # additive mask
            full((L, H, 3 * H)),    # wqkv
            full((L, 1, 3 * H)),    # bqkv
            full((L, H, H)),        # wo
            full((L, 6, H)),        # packed H-wide per-layer vectors
            full((L, H, I)),        # w1
            full((L, 1, I)),        # b1
            full((L, I, H)),        # w2
            full((4, H)),           # head_vecs
            full((H, H)),           # pooler_w
            full((H, C)),           # cls_w
        ],
        out_specs=pl.BlockSpec((pl.Squeezed(), 1, C), lambda i: (i, 0, 0)),
        compiler_params=pltpu.CompilerParams(dimension_semantics=("parallel",)),
    )(emb, amask,
      stk["wqkv"], stk["bqkv"], stk["wo"], stk["vech"],
      stk["w1"], stk["b1"], stk["w2"],
      params["head_vecs"], params["pooler_w"], params["cls_w"])

    return out[:, 0, :]                                                 # (B, C)


# ---------------- parameters (deterministic synthetic init, pre-packed for the kernel) ----------------
def init_params(key):
    H, I, L = HIDDEN, INTERMEDIATE, NUM_LAYERS

    def nrm(k, shape):
        return 0.02 * jax.random.normal(k, shape, dtype=jnp.float32)

    ks = jax.random.split(key, 5)
    params = {
        "word_emb": nrm(ks[0], (VOCAB, H)),
        "pos_emb": nrm(ks[1], (MAX_POS, H)),
        "type_emb": nrm(ks[2], (2, H)),
    }

    lkeys = jax.random.split(ks[3], L)
    wqkv, wo, w1, w2 = [], [], [], []
    for l in range(L):
        lk = jax.random.split(lkeys[l], 6)
        wq, wk, wv = nrm(lk[0], (H, H)), nrm(lk[1], (H, H)), nrm(lk[2], (H, H))
        wqkv.append(jnp.concatenate([wq, wk, wv], axis=1))              # (H, 3H) fused QKV
        wo.append(nrm(lk[3], (H, H)))
        w1.append(nrm(lk[4], (H, I)))
        w2.append(nrm(lk[5], (I, H)))

    # Packed per-layer vector slab, rows: [bo, ln1_g, ln1_b, b2, ln2_g, ln2_b]
    vech_one = jnp.stack([
        jnp.zeros(H), jnp.ones(H), jnp.zeros(H),
        jnp.zeros(H), jnp.ones(H), jnp.zeros(H),
    ]).astype(jnp.float32)                                              # (6, H)
    params["stacked"] = {
        "wqkv": jnp.stack(wqkv),                                        # (L, H, 3H)
        "bqkv": jnp.zeros((L, 1, 3 * H), jnp.float32),
        "wo": jnp.stack(wo),                                            # (L, H, H)
        "vech": jnp.tile(vech_one[None], (L, 1, 1)),                    # (L, 6, H)
        "w1": jnp.stack(w1),                                            # (L, H, I)
        "b1": jnp.zeros((L, 1, I), jnp.float32),
        "w2": jnp.stack(w2),                                            # (L, I, H)
    }

    hk = jax.random.split(ks[4], 2)
    params["pooler_w"] = nrm(hk[0], (H, H))
    params["cls_w"] = nrm(hk[1], (H, NUM_CLASSES))
    # head_vecs rows: [emb_ln_g, emb_ln_b, pooler_b, cls_b padded to H]
    params["head_vecs"] = jnp.stack([
        jnp.ones(H), jnp.zeros(H), jnp.zeros(H), jnp.zeros(H),
    ]).astype(jnp.float32)                                              # (4, H)
    return params


if __name__ == "__main__":
    key = jax.random.PRNGKey(0)
    pkey, dkey = jax.random.split(key)
    params = init_params(pkey)

    input_ids = jax.random.randint(dkey, (BATCH, SEQ), 0, VOCAB, dtype=jnp.int32)
    attention_mask = jnp.ones((BATCH, SEQ), jnp.float32)

    out = bert_classifier_forward(params, input_ids, attention_mask)
    out = jax.block_until_ready(out)

    assert out.shape == (BATCH, NUM_CLASSES)
    assert bool(jnp.all(jnp.isfinite(out)))
    print("KERNEL_OK")
</pallas_src>

<mosaic_0001>
module attributes {stable_mosaic.version = 11 : i64} {
  func.func @fused_bert_kernel(%arg0: i32, %arg1: memref<1x8x32xf32, #tpu.memory_space<vmem>>, %arg2: memref<1x1x8xf32, #tpu.memory_space<vmem>>, %arg3: memref<2x32x96xf32, #tpu.memory_space<vmem>>, %arg4: memref<2x1x96xf32, #tpu.memory_space<vmem>>, %arg5: memref<2x32x32xf32, #tpu.memory_space<vmem>>, %arg6: memref<2x6x32xf32, #tpu.memory_space<vmem>>, %arg7: memref<2x32x64xf32, #tpu.memory_space<vmem>>, %arg8: memref<2x1x64xf32, #tpu.memory_space<vmem>>, %arg9: memref<2x64x32xf32, #tpu.memory_space<vmem>>, %arg10: memref<4x32xf32, #tpu.memory_space<vmem>>, %arg11: memref<32x32xf32, #tpu.memory_space<vmem>>, %arg12: memref<32x3xf32, #tpu.memory_space<vmem>>, %arg13: memref<1x1x3xf32, #tpu.memory_space<vmem>>) attributes {dimension_semantics = [#tpu.dimension_semantics<parallel>], iteration_bounds = array<i64: 2>, scalar_prefetch = 0 : i64, scratch_operands = 0 : i64, tpu.core_type = #tpu.core_type<tc>, window_params = [{transform_indices = @transform_0, window_bounds = array<i64: 1, 8, 32>}, {transform_indices = @transform_1, window_bounds = array<i64: 1, 1, 8>}, {pipeline_mode = #tpu.pipeline_mode<synchronous>, transform_indices = @transform_2, window_bounds = array<i64: 2, 32, 96>}, {pipeline_mode = #tpu.pipeline_mode<synchronous>, transform_indices = @transform_3, window_bounds = array<i64: 2, 1, 96>}, {pipeline_mode = #tpu.pipeline_mode<synchronous>, transform_indices = @transform_4, window_bounds = array<i64: 2, 32, 32>}, {pipeline_mode = #tpu.pipeline_mode<synchronous>, transform_indices = @transform_5, window_bounds = array<i64: 2, 6, 32>}, {pipeline_mode = #tpu.pipeline_mode<synchronous>, transform_indices = @transform_6, window_bounds = array<i64: 2, 32, 64>}, {pipeline_mode = #tpu.pipeline_mode<synchronous>, transform_indices = @transform_7, window_bounds = array<i64: 2, 1, 64>}, {pipeline_mode = #tpu.pipeline_mode<synchronous>, transform_indices = @transform_8, window_bounds = array<i64: 2, 64, 32>}, {pipeline_mode = #tpu.pipeline_mode<synchronous>, transform_indices = @transform_9, window_bounds = array<i64: 4, 32>}, {pipeline_mode = #tpu.pipeline_mode<synchronous>, transform_indices = @transform_10, window_bounds = array<i64: 32, 32>}, {pipeline_mode = #tpu.pipeline_mode<synchronous>, transform_indices = @transform_11, window_bounds = array<i64: 32, 3>}, {transform_indices = @transform_12, window_bounds = array<i64: 1, 1, 3>}]} {
    %c0 = arith.constant 0 : index
    %c0_0 = arith.constant 0 : index
    %c0_1 = arith.constant 0 : index
    %0 = vector.load %arg2[%c0, %c0_0, %c0_1] : memref<1x1x8xf32, #tpu.memory_space<vmem>>, vector<1x1x8xf32>
    %1 = vector.shape_cast %0 : vector<1x1x8xf32> to vector<1x8xf32>
    %c0_2 = arith.constant 0 : index
    %c0_3 = arith.constant 0 : index
    %2 = vector.load %arg10[%c0_2, %c0_3] : memref<4x32xf32, #tpu.memory_space<vmem>>, vector<4x32xf32>
    %c0_4 = arith.constant 0 : index
    %c0_5 = arith.constant 0 : index
    %c0_6 = arith.constant 0 : index
    %3 = vector.load %arg1[%c0_4, %c0_5, %c0_6] : memref<1x8x32xf32, #tpu.memory_space<vmem>>, vector<1x8x32xf32>
    %4 = vector.shape_cast %3 : vector<1x8x32xf32> to vector<8x32xf32>
    %5 = vector.extract_strided_slice %2 {offsets = [0, 0], sizes = [1, 32], strides = [1, 1]} : vector<4x32xf32> to vector<1x32xf32>
    %6 = vector.extract_strided_slice %2 {offsets = [1, 0], sizes = [1, 32], strides = [1, 1]} : vector<4x32xf32> to vector<1x32xf32>
    %cst = arith.constant dense<0.000000e+00> : vector<8xf32>
    %7 = vector.multi_reduction <add>, %4, %cst [1] : vector<8x32xf32> to vector<8xf32>
    %8 = vector.shape_cast %7 : vector<8xf32> to vector<8x1xf32>
    %cst_7 = arith.constant 3.200000e+01 : f32
    %9 = vector.broadcast %cst_7 : f32 to vector<8x1xf32>
    %10 = arith.divf %8, %9 : vector<8x1xf32>
    %11 = vector.broadcast %10 : vector<8x1xf32> to vector<8x32xf32>
    %12 = arith.subf %4, %11 : vector<8x32xf32>
    %13 = arith.mulf %12, %12 : vector<8x32xf32>
    %cst_8 = arith.constant dense<0.000000e+00> : vector<8xf32>
    %14 = vector.multi_reduction <add>, %13, %cst_8 [1] : vector<8x32xf32> to vector<8xf32>
    %15 = vector.shape_cast %14 : vector<8xf32> to vector<8x1xf32>
    %cst_9 = arith.constant 3.200000e+01 : f32
    %16 = vector.broadcast %cst_9 : f32 to vector<8x1xf32>
    %17 = arith.divf %15, %16 : vector<8x1xf32>
    %18 = vector.broadcast %10 : vector<8x1xf32> to vector<8x32xf32>
    %19 = arith.subf %4, %18 : vector<8x32xf32>
    %cst_10 = arith.constant 9.99999996E-13 : f32
    %20 = vector.broadcast %cst_10 : f32 to vector<8x1xf32>
    %21 = arith.addf %17, %20 : vector<8x1xf32>
    %22 = math.rsqrt %21 : vector<8x1xf32>
    %23 = vector.broadcast %22 : vector<8x1xf32> to vector<8x32xf32>
    %24 = arith.mulf %19, %23 : vector<8x32xf32>
    %25 = vector.broadcast %5 : vector<1x32xf32> to vector<8x32xf32>
    %26 = arith.mulf %24, %25 : vector<8x32xf32>
    %27 = vector.broadcast %6 : vector<1x32xf32> to vector<8x32xf32>
    %28 = arith.addf %26, %27 : vector<8x32xf32>
    %c0_i32 = arith.constant 0 : i32
    %29 = arith.index_cast %c0_i32 : i32 to index
    %c0_11 = arith.constant 0 : index
    %c0_12 = arith.constant 0 : index
    %30 = vector.load %arg3[%29, %c0_11, %c0_12] : memref<2x32x96xf32, #tpu.memory_space<vmem>>, vector<1x32x96xf32>
    %31 = vector.shape_cast %30 : vector<1x32x96xf32> to vector<32x96xf32>
    %cst_13 = arith.constant dense<0.000000e+00> : vector<8x96xf32>
    %32 = tpu.matmul %28, %31, %cst_13 {dimension_numbers = #tpu.dot_dimension_numbers<[1], [0], [0], [1], [0, 0, 1, 1], [], []>} : vector<8x32xf32>, vector<32x96xf32>, vector<8x96xf32> -> vector<8x96xf32>
    %33 = arith.index_cast %c0_i32 : i32 to index
    %c0_14 = arith.constant 0 : index
    %c0_15 = arith.constant 0 : index
    %34 = vector.load %arg4[%33, %c0_14, %c0_15] : memref<2x1x96xf32, #tpu.memory_space<vmem>>, vector<1x1x96xf32>
    %35 = vector.shape_cast %34 : vector<1x1x96xf32> to vector<1x96xf32>
    %36 = vector.broadcast %35 : vector<1x96xf32> to vector<8x96xf32>
    %37 = arith.addf %32, %36 : vector<8x96xf32>
    %38 = vector.extract_strided_slice %37 {offsets = [0, 0], sizes = [8, 32], strides = [1, 1]} : vector<8x96xf32> to vector<8x32xf32>
    %39 = vector.extract_strided_slice %37 {offsets = [0, 32], sizes = [8, 32], strides = [1, 1]} : vector<8x96xf32> to vector<8x32xf32>
    %40 = vector.extract_strided_slice %37 {offsets = [0, 64], sizes = [8, 32], strides = [1, 1]} : vector<8x96xf32> to vector<8x32xf32>
    %41 = arith.index_cast %c0_i32 : i32 to index
    %c0_16 = arith.constant 0 : index
    %c0_17 = arith.constant 0 : index
    %42 = vector.load %arg5[%41, %c0_16, %c0_17] : memref<2x32x32xf32, #tpu.memory_space<vmem>>, vector<1x32x32xf32>
    %43 = vector.shape_cast %42 : vector<1x32x32xf32> to vector<32x32xf32>
    %44 = arith.index_cast %c0_i32 : i32 to index
    %c0_18 = arith.constant 0 : index
    %c0_19 = arith.constant 0 : index
    %45 = vector.load %arg6[%44, %c0_18, %c0_19] : memref<2x6x32xf32, #tpu.memory_space<vmem>>, vector<1x6x32xf32>
    %46 = vector.shape_cast %45 : vector<1x6x32xf32> to vector<6x32xf32>
    %47 = vector.extract_strided_slice %46 {offsets = [0, 0], sizes = [1, 32], strides = [1, 1]} : vector<6x32xf32> to vector<1x32xf32>
    %48 = vector.extract_strided_slice %46 {offsets = [1, 0], sizes = [1, 32], strides = [1, 1]} : vector<6x32xf32> to vector<1x32xf32>
    %49 = vector.extract_strided_slice %46 {offsets = [2, 0], sizes = [1, 32], strides = [1, 1]} : vector<6x32xf32> to vector<1x32xf32>
    %50 = vector.extract_strided_slice %46 {offsets = [3, 0], sizes = [1, 32], strides = [1, 1]} : vector<6x32xf32> to vector<1x32xf32>
    %51 = vector.extract_strided_slice %46 {offsets = [4, 0], sizes = [1, 32], strides = [1, 1]} : vector<6x32xf32> to vector<1x32xf32>
    %52 = vector.extract_strided_slice %46 {offsets = [5, 0], sizes = [1, 32], strides = [1, 1]} : vector<6x32xf32> to vector<1x32xf32>
    %cst_20 = arith.constant 0.000000e+00 : f32
    %53 = vector.broadcast %cst_20 : f32 to vector<8x32xf32>
    %54 = vector.extract_strided_slice %38 {offsets = [0, 0], sizes = [8, 16], strides = [1, 1]} : vector<8x32xf32> to vector<8x16xf32>
    %55 = vector.extract_strided_slice %39 {offsets = [0, 0], sizes = [8, 16], strides = [1, 1]} : vector<8x32xf32> to vector<8x16xf32>
    %56 = tpu.transpose %55, [1, 0] : vector<8x16xf32> -> vector<16x8xf32>
    %cst_21 = arith.constant dense<0.000000e+00> : vector<8x8xf32>
    %57 = tpu.matmul %54, %56, %cst_21 {dimension_numbers = #tpu.dot_dimension_numbers<[1], [0], [0], [1], [0, 0, 1, 1], [], []>} : vector<8x16xf32>, vector<16x8xf32>, vector<8x8xf32> -> vector<8x8xf32>
    %cst_22 = arith.constant 2.500000e-01 : f32
    %58 = vector.broadcast %cst_22 : f32 to vector<8x8xf32>
    %59 = arith.mulf %57, %58 : vector<8x8xf32>
    %60 = vector.broadcast %1 : vector<1x8xf32> to vector<8x8xf32>
    %61 = arith.addf %59, %60 : vector<8x8xf32>
    %cst_23 = arith.constant dense<0xFF800000> : vector<8xf32>
    %62 = vector.multi_reduction <maximumf>, %61, %cst_23 [1] : vector<8x8xf32> to vector<8xf32>
    %63 = vector.shape_cast %62 : vector<8xf32> to vector<8x1xf32>
    %64 = vector.broadcast %63 : vector<8x1xf32> to vector<8x8xf32>
    %65 = arith.subf %61, %64 : vector<8x8xf32>
    %66 = math.exp %65 : vector<8x8xf32>
    %cst_24 = arith.constant dense<0.000000e+00> : vector<8xf32>
    %67 = vector.multi_reduction <add>, %66, %cst_24 [1] : vector<8x8xf32> to vector<8xf32>
    %68 = vector.shape_cast %67 : vector<8xf32> to vector<8x1xf32>
    %69 = tpu.reciprocal %68 {approx = true} : vector<8x1xf32> -> vector<8x1xf32>
    %70 = vector.broadcast %69 : vector<8x1xf32> to vector<8x8xf32>
    %71 = arith.mulf %66, %70 : vector<8x8xf32>
    %72 = vector.extract_strided_slice %40 {offsets = [0, 0], sizes = [8, 16], strides = [1, 1]} : vector<8x32xf32> to vector<8x16xf32>
    %cst_25 = arith.constant dense<0.000000e+00> : vector<8x16xf32>
    %73 = tpu.matmul %71, %72, %cst_25 {dimension_numbers = #tpu.dot_dimension_numbers<[1], [0], [0], [1], [0, 0, 1, 1], [], []>} : vector<8x8xf32>, vector<8x16xf32>, vector<8x16xf32> -> vector<8x16xf32>
    %74 = vector.extract_strided_slice %43 {offsets = [0, 0], sizes = [16, 32], strides = [1, 1]} : vector<32x32xf32> to vector<16x32xf32>
    %cst_26 = arith.constant dense<0.000000e+00> : vector<8x32xf32>
    %75 = tpu.matmul %73, %74, %cst_26 {dimension_numbers = #tpu.dot_dimension_numbers<[1], [0], [0], [1], [0, 0, 1, 1], [], []>} : vector<8x16xf32>, vector<16x32xf32>, vector<8x32xf32> -> vector<8x32xf32>
    %76 = arith.addf %53, %75 : vector<8x32xf32>
    %77 = vector.extract_strided_slice %38 {offsets = [0, 16], sizes = [8, 16], strides = [1, 1]} : vector<8x32xf32> to vector<8x16xf32>
    %78 = vector.extract_strided_slice %39 {offsets = [0, 16], sizes = [8, 16], strides = [1, 1]} : vector<8x32xf32> to vector<8x16xf32>
    %79 = tpu.transpose %78, [1, 0] : vector<8x16xf32> -> vector<16x8xf32>
    %cst_27 = arith.constant dense<0.000000e+00> : vector<8x8xf32>
    %80 = tpu.matmul %77, %79, %cst_27 {dimension_numbers = #tpu.dot_dimension_numbers<[1], [0], [0], [1], [0, 0, 1, 1], [], []>} : vector<8x16xf32>, vector<16x8xf32>, vector<8x8xf32> -> vector<8x8xf32>
    %cst_28 = arith.constant 2.500000e-01 : f32
    %81 = vector.broadcast %cst_28 : f32 to vector<8x8xf32>
    %82 = arith.mulf %80, %81 : vector<8x8xf32>
    %83 = vector.broadcast %1 : vector<1x8xf32> to vector<8x8xf32>
    %84 = arith.addf %82, %83 : vector<8x8xf32>
    %cst_29 = arith.constant dense<0xFF800000> : vector<8xf32>
    %85 = vector.multi_reduction <maximumf>, %84, %cst_29 [1] : vector<8x8xf32> to vector<8xf32>
    %86 = vector.shape_cast %85 : vector<8xf32> to vector<8x1xf32>
    %87 = vector.broadcast %86 : vector<8x1xf32> to vector<8x8xf32>
    %88 = arith.subf %84, %87 : vector<8x8xf32>
    %89 = math.exp %88 : vector<8x8xf32>
    %cst_30 = arith.constant dense<0.000000e+00> : vector<8xf32>
    %90 = vector.multi_reduction <add>, %89, %cst_30 [1] : vector<8x8xf32> to vector<8xf32>
    %91 = vector.shape_cast %90 : vector<8xf32> to vector<8x1xf32>
    %92 = tpu.reciprocal %91 {approx = true} : vector<8x1xf32> -> vector<8x1xf32>
    %93 = vector.broadcast %92 : vector<8x1xf32> to vector<8x8xf32>
    %94 = arith.mulf %89, %93 : vector<8x8xf32>
    %95 = vector.extract_strided_slice %40 {offsets = [0, 16], sizes = [8, 16], strides = [1, 1]} : vector<8x32xf32> to vector<8x16xf32>
    %cst_31 = arith.constant dense<0.000000e+00> : vector<8x16xf32>
    %96 = tpu.matmul %94, %95, %cst_31 {dimension_numbers = #tpu.dot_dimension_numbers<[1], [0], [0], [1], [0, 0, 1, 1], [], []>} : vector<8x8xf32>, vector<8x16xf32>, vector<8x16xf32> -> vector<8x16xf32>
    %97 = vector.extract_strided_slice %43 {offsets = [16, 0], sizes = [16, 32], strides = [1, 1]} : vector<32x32xf32> to vector<16x32xf32>
    %cst_32 = arith.constant dense<0.000000e+00> : vector<8x32xf32>
    %98 = tpu.matmul %96, %97, %cst_32 {dimension_numbers = #tpu.dot_dimension_numbers<[1], [0], [0], [1], [0, 0, 1, 1], [], []>} : vector<8x16xf32>, vector<16x32xf32>, vector<8x32xf32> -> vector<8x32xf32>
    %99 = arith.addf %76, %98 : vector<8x32xf32>
    %100 = arith.addf %28, %99 : vector<8x32xf32>
    %101 = vector.broadcast %47 : vector<1x32xf32> to vector<8x32xf32>
    %102 = arith.addf %100, %101 : vector<8x32xf32>
    %cst_33 = arith.constant dense<0.000000e+00> : vector<8xf32>
    %103 = vector.multi_reduction <add>, %102, %cst_33 [1] : vector<8x32xf32> to vector<8xf32>
    %104 = vector.shape_cast %103 : vector<8xf32> to vector<8x1xf32>
    %cst_34 = arith.constant 3.200000e+01 : f32
    %105 = vector.broadcast %cst_34 : f32 to vector<8x1xf32>
    %106 = arith.divf %104, %105 : vector<8x1xf32>
    %107 = vector.broadcast %106 : vector<8x1xf32> to vector<8x32xf32>
    %108 = arith.subf %102, %107 : vector<8x32xf32>
    %109 = arith.mulf %108, %108 : vector<8x32xf32>
    %cst_35 = arith.constant dense<0.000000e+00> : vector<8xf32>
    %110 = vector.multi_reduction <add>, %109, %cst_35 [1] : vector<8x32xf32> to vector<8xf32>
    %111 = vector.shape_cast %110 : vector<8xf32> to vector<8x1xf32>
    %cst_36 = arith.constant 3.200000e+01 : f32
    %112 = vector.broadcast %cst_36 : f32 to vector<8x1xf32>
    %113 = arith.divf %111, %112 : vector<8x1xf32>
    %114 = vector.broadcast %106 : vector<8x1xf32> to vector<8x32xf32>
    %115 = arith.subf %102, %114 : vector<8x32xf32>
    %cst_37 = arith.constant 9.99999996E-13 : f32
    %116 = vector.broadcast %cst_37 : f32 to vector<8x1xf32>
    %117 = arith.addf %113, %116 : vector<8x1xf32>
    %118 = math.rsqrt %117 : vector<8x1xf32>
    %119 = vector.broadcast %118 : vector<8x1xf32> to vector<8x32xf32>
    %120 = arith.mulf %115, %119 : vector<8x32xf32>
    %121 = vector.broadcast %48 : vector<1x32xf32> to vector<8x32xf32>
    %122 = arith.mulf %120, %121 : vector<8x32xf32>
    %123 = vector.broadcast %49 : vector<1x32xf32> to vector<8x32xf32>
    %124 = arith.addf %122, %123 : vector<8x32xf32>
    %125 = arith.index_cast %c0_i32 : i32 to index
    %c0_38 = arith.constant 0 : index
    %c0_39 = arith.constant 0 : index
    %126 = vector.load %arg7[%125, %c0_38, %c0_39] : memref<2x32x64xf32, #tpu.memory_space<vmem>>, vector<1x32x64xf32>
    %127 = vector.shape_cast %126 : vector<1x32x64xf32> to vector<32x64xf32>
    %cst_40 = arith.constant dense<0.000000e+00> : vector<8x64xf32>
    %128 = tpu.matmul %124, %127, %cst_40 {dimension_numbers = #tpu.dot_dimension_numbers<[1], [0], [0], [1], [0, 0, 1, 1], [], []>} : vector<8x32xf32>, vector<32x64xf32>, vector<8x64xf32> -> vector<8x64xf32>
    %129 = arith.index_cast %c0_i32 : i32 to index
    %c0_41 = arith.constant 0 : index
    %c0_42 = arith.constant 0 : index
    %130 = vector.load %arg8[%129, %c0_41, %c0_42] : memref<2x1x64xf32, #tpu.memory_space<vmem>>, vector<1x1x64xf32>
    %131 = vector.shape_cast %130 : vector<1x1x64xf32> to vector<1x64xf32>
    %132 = vector.broadcast %131 : vector<1x64xf32> to vector<8x64xf32>
    %133 = arith.addf %128, %132 : vector<8x64xf32>
    %134 = arith.mulf %133, %133 : vector<8x64xf32>
    %135 = arith.mulf %133, %134 : vector<8x64xf32>
    %cst_43 = arith.constant 4.471500e-02 : f32
    %136 = vector.broadcast %cst_43 : f32 to vector<8x64xf32>
    %137 = arith.mulf %136, %135 : vector<8x64xf32>
    %138 = arith.addf %133, %137 : vector<8x64xf32>
    %cst_44 = arith.constant 0.797884583 : f32
    %139 = vector.broadcast %cst_44 : f32 to vector<8x64xf32>
    %140 = arith.mulf %139, %138 : vector<8x64xf32>
    %141 = math.tanh %140 : vector<8x64xf32>
    %cst_45 = arith.constant 1.000000e+00 : f32
    %142 = vector.broadcast %cst_45 : f32 to vector<8x64xf32>
    %143 = arith.addf %142, %141 : vector<8x64xf32>
    %cst_46 = arith.constant 5.000000e-01 : f32
    %144 = vector.broadcast %cst_46 : f32 to vector<8x64xf32>
    %145 = arith.mulf %144, %143 : vector<8x64xf32>
    %146 = arith.mulf %133, %145 : vector<8x64xf32>
    %147 = arith.index_cast %c0_i32 : i32 to index
    %c0_47 = arith.constant 0 : index
    %c0_48 = arith.constant 0 : index
    %148 = vector.load %arg9[%147, %c0_47, %c0_48] : memref<2x64x32xf32, #tpu.memory_space<vmem>>, vector<1x64x32xf32>
    %149 = vector.shape_cast %148 : vector<1x64x32xf32> to vector<64x32xf32>
    %cst_49 = arith.constant dense<0.000000e+00> : vector<8x32xf32>
    %150 = tpu.matmul %146, %149, %cst_49 {dimension_numbers = #tpu.dot_dimension_numbers<[1], [0], [0], [1], [0, 0, 1, 1], [], []>} : vector<8x64xf32>, vector<64x32xf32>, vector<8x32xf32> -> vector<8x32xf32>
    %151 = vector.broadcast %50 : vector<1x32xf32> to vector<8x32xf32>
    %152 = arith.addf %150, %151 : vector<8x32xf32>
    %153 = arith.addf %124, %152 : vector<8x32xf32>
    %cst_50 = arith.constant dense<0.000000e+00> : vector<8xf32>
    %154 = vector.multi_reduction <add>, %153, %cst_50 [1] : vector<8x32xf32> to vector<8xf32>
    %155 = vector.shape_cast %154 : vector<8xf32> to vector<8x1xf32>
    %cst_51 = arith.constant 3.200000e+01 : f32
    %156 = vector.broadcast %cst_51 : f32 to vector<8x1xf32>
    %157 = arith.divf %155, %156 : vector<8x1xf32>
    %158 = vector.broadcast %157 : vector<8x1xf32> to vector<8x32xf32>
    %159 = arith.subf %153, %158 : vector<8x32xf32>
    %160 = arith.mulf %159, %159 : vector<8x32xf32>
    %cst_52 = arith.constant dense<0.000000e+00> : vector<8xf32>
    %161 = vector.multi_reduction <add>, %160, %cst_52 [1] : vector<8x32xf32> to vector<8xf32>
    %162 = vector.shape_cast %161 : vector<8xf32> to vector<8x1xf32>
    %cst_53 = arith.constant 3.200000e+01 : f32
    %163 = vector.broadcast %cst_53 : f32 to vector<8x1xf32>
    %164 = arith.divf %162, %163 : vector<8x1xf32>
    %165 = vector.broadcast %157 : vector<8x1xf32> to vector<8x32xf32>
    %166 = arith.subf %153, %165 : vector<8x32xf32>
    %cst_54 = arith.constant 9.99999996E-13 : f32
    %167 = vector.broadcast %cst_54 : f32 to vector<8x1xf32>
    %168 = arith.addf %164, %167 : vector<8x1xf32>
    %169 = math.rsqrt %168 : vector<8x1xf32>
    %170 = vector.broadcast %169 : vector<8x1xf32> to vector<8x32xf32>
    %171 = arith.mulf %166, %170 : vector<8x32xf32>
    %172 = vector.broadcast %51 : vector<1x32xf32> to vector<8x32xf32>
    %173 = arith.mulf %171, %172 : vector<8x32xf32>
    %174 = vector.broadcast %52 : vector<1x32xf32> to vector<8x32xf32>
    %175 = arith.addf %173, %174 : vector<8x32xf32>
    %c1_i32 = arith.constant 1 : i32
    %176 = arith.index_cast %c1_i32 : i32 to index
    %c0_55 = arith.constant 0 : index
    %c0_56 = arith.constant 0 : index
    %177 = vector.load %arg3[%176, %c0_55, %c0_56] : memref<2x32x96xf32, #tpu.memory_space<vmem>>, vector<1x32x96xf32>
    %178 = vector.shape_cast %177 : vector<1x32x96xf32> to vector<32x96xf32>
    %cst_57 = arith.constant dense<0.000000e+00> : vector<8x96xf32>
    %179 = tpu.matmul %175, %178, %cst_57 {dimension_numbers = #tpu.dot_dimension_numbers<[1], [0], [0], [1], [0, 0, 1, 1], [], []>} : vector<8x32xf32>, vector<32x96xf32>, vector<8x96xf32> -> vector<8x96xf32>
    %180 = arith.index_cast %c1_i32 : i32 to index
    %c0_58 = arith.constant 0 : index
    %c0_59 = arith.constant 0 : index
    %181 = vector.load %arg4[%180, %c0_58, %c0_59] : memref<2x1x96xf32, #tpu.memory_space<vmem>>, vector<1x1x96xf32>
    %182 = vector.shape_cast %181 : vector<1x1x96xf32> to vector<1x96xf32>
    %183 = vector.broadcast %182 : vector<1x96xf32> to vector<8x96xf32>
    %184 = arith.addf %179, %183 : vector<8x96xf32>
    %185 = vector.extract_strided_slice %184 {offsets = [0, 0], sizes = [8, 32], strides = [1, 1]} : vector<8x96xf32> to vector<8x32xf32>
    %186 = vector.extract_strided_slice %184 {offsets = [0, 32], sizes = [8, 32], strides = [1, 1]} : vector<8x96xf32> to vector<8x32xf32>
    %187 = vector.extract_strided_slice %184 {offsets = [0, 64], sizes = [8, 32], strides = [1, 1]} : vector<8x96xf32> to vector<8x32xf32>
    %188 = arith.index_cast %c1_i32 : i32 to index
    %c0_60 = arith.constant 0 : index
    %c0_61 = arith.constant 0 : index
    %189 = vector.load %arg5[%188, %c0_60, %c0_61] : memref<2x32x32xf32, #tpu.memory_space<vmem>>, vector<1x32x32xf32>
    %190 = vector.shape_cast %189 : vector<1x32x32xf32> to vector<32x32xf32>
    %191 = arith.index_cast %c1_i32 : i32 to index
    %c0_62 = arith.constant 0 : index
    %c0_63 = arith.constant 0 : index
    %192 = vector.load %arg6[%191, %c0_62, %c0_63] : memref<2x6x32xf32, #tpu.memory_space<vmem>>, vector<1x6x32xf32>
    %193 = vector.shape_cast %192 : vector<1x6x32xf32> to vector<6x32xf32>
    %194 = vector.extract_strided_slice %193 {offsets = [0, 0], sizes = [1, 32], strides = [1, 1]} : vector<6x32xf32> to vector<1x32xf32>
    %195 = vector.extract_strided_slice %193 {offsets = [1, 0], sizes = [1, 32], strides = [1, 1]} : vector<6x32xf32> to vector<1x32xf32>
    %196 = vector.extract_strided_slice %193 {offsets = [2, 0], sizes = [1, 32], strides = [1, 1]} : vector<6x32xf32> to vector<1x32xf32>
    %197 = vector.extract_strided_slice %193 {offsets = [3, 0], sizes = [1, 32], strides = [1, 1]} : vector<6x32xf32> to vector<1x32xf32>
    %198 = vector.extract_strided_slice %193 {offsets = [4, 0], sizes = [1, 32], strides = [1, 1]} : vector<6x32xf32> to vector<1x32xf32>
    %199 = vector.extract_strided_slice %193 {offsets = [5, 0], sizes = [1, 32], strides = [1, 1]} : vector<6x32xf32> to vector<1x32xf32>
    %cst_64 = arith.constant 0.000000e+00 : f32
    %200 = vector.broadcast %cst_64 : f32 to vector<8x32xf32>
    %201 = vector.extract_strided_slice %185 {offsets = [0, 0], sizes = [8, 16], strides = [1, 1]} : vector<8x32xf32> to vector<8x16xf32>
    %202 = vector.extract_strided_slice %186 {offsets = [0, 0], sizes = [8, 16], strides = [1, 1]} : vector<8x32xf32> to vector<8x16xf32>
    %203 = tpu.transpose %202, [1, 0] : vector<8x16xf32> -> vector<16x8xf32>
    %cst_65 = arith.constant dense<0.000000e+00> : vector<8x8xf32>
    %204 = tpu.matmul %201, %203, %cst_65 {dimension_numbers = #tpu.dot_dimension_numbers<[1], [0], [0], [1], [0, 0, 1, 1], [], []>} : vector<8x16xf32>, vector<16x8xf32>, vector<8x8xf32> -> vector<8x8xf32>
    %cst_66 = arith.constant 2.500000e-01 : f32
    %205 = vector.broadcast %cst_66 : f32 to vector<8x8xf32>
    %206 = arith.mulf %204, %205 : vector<8x8xf32>
    %207 = vector.broadcast %1 : vector<1x8xf32> to vector<8x8xf32>
    %208 = arith.addf %206, %207 : vector<8x8xf32>
    %cst_67 = arith.constant dense<0xFF800000> : vector<8xf32>
    %209 = vector.multi_reduction <maximumf>, %208, %cst_67 [1] : vector<8x8xf32> to vector<8xf32>
    %210 = vector.shape_cast %209 : vector<8xf32> to vector<8x1xf32>
    %211 = vector.broadcast %210 : vector<8x1xf32> to vector<8x8xf32>
    %212 = arith.subf %208, %211 : vector<8x8xf32>
    %213 = math.exp %212 : vector<8x8xf32>
    %cst_68 = arith.constant dense<0.000000e+00> : vector<8xf32>
    %214 = vector.multi_reduction <add>, %213, %cst_68 [1] : vector<8x8xf32> to vector<8xf32>
    %215 = vector.shape_cast %214 : vector<8xf32> to vector<8x1xf32>
    %216 = tpu.reciprocal %215 {approx = true} : vector<8x1xf32> -> vector<8x1xf32>
    %217 = vector.broadcast %216 : vector<8x1xf32> to vector<8x8xf32>
    %218 = arith.mulf %213, %217 : vector<8x8xf32>
    %219 = vector.extract_strided_slice %187 {offsets = [0, 0], sizes = [8, 16], strides = [1, 1]} : vector<8x32xf32> to vector<8x16xf32>
    %cst_69 = arith.constant dense<0.000000e+00> : vector<8x16xf32>
    %220 = tpu.matmul %218, %219, %cst_69 {dimension_numbers = #tpu.dot_dimension_numbers<[1], [0], [0], [1], [0, 0, 1, 1], [], []>} : vector<8x8xf32>, vector<8x16xf32>, vector<8x16xf32> -> vector<8x16xf32>
    %221 = vector.extract_strided_slice %190 {offsets = [0, 0], sizes = [16, 32], strides = [1, 1]} : vector<32x32xf32> to vector<16x32xf32>
    %cst_70 = arith.constant dense<0.000000e+00> : vector<8x32xf32>
    %222 = tpu.matmul %220, %221, %cst_70 {dimension_numbers = #tpu.dot_dimension_numbers<[1], [0], [0], [1], [0, 0, 1, 1], [], []>} : vector<8x16xf32>, vector<16x32xf32>, vector<8x32xf32> -> vector<8x32xf32>
    %223 = arith.addf %200, %222 : vector<8x32xf32>
    %224 = vector.extract_strided_slice %185 {offsets = [0, 16], sizes = [8, 16], strides = [1, 1]} : vector<8x32xf32> to vector<8x16xf32>
    %225 = vector.extract_strided_slice %186 {offsets = [0, 16], sizes = [8, 16], strides = [1, 1]} : vector<8x32xf32> to vector<8x16xf32>
    %226 = tpu.transpose %225, [1, 0] : vector<8x16xf32> -> vector<16x8xf32>
    %cst_71 = arith.constant dense<0.000000e+00> : vector<8x8xf32>
    %227 = tpu.matmul %224, %226, %cst_71 {dimension_numbers = #tpu.dot_dimension_numbers<[1], [0], [0], [1], [0, 0, 1, 1], [], []>} : vector<8x16xf32>, vector<16x8xf32>, vector<8x8xf32> -> vector<8x8xf32>
    %cst_72 = arith.constant 2.500000e-01 : f32
    %228 = vector.broadcast %cst_72 : f32 to vector<8x8xf32>
    %229 = arith.mulf %227, %228 : vector<8x8xf32>
    %230 = vector.broadcast %1 : vector<1x8xf32> to vector<8x8xf32>
    %231 = arith.addf %229, %230 : vector<8x8xf32>
    %cst_73 = arith.constant dense<0xFF800000> : vector<8xf32>
    %232 = vector.multi_reduction <maximumf>, %231, %cst_73 [1] : vector<8x8xf32> to vector<8xf32>
    %233 = vector.shape_cast %232 : vector<8xf32> to vector<8x1xf32>
    %234 = vector.broadcast %233 : vector<8x1xf32> to vector<8x8xf32>
    %235 = arith.subf %231, %234 : vector<8x8xf32>
    %236 = math.exp %235 : vector<8x8xf32>
    %cst_74 = arith.constant dense<0.000000e+00> : vector<8xf32>
    %237 = vector.multi_reduction <add>, %236, %cst_74 [1] : vector<8x8xf32> to vector<8xf32>
    %238 = vector.shape_cast %237 : vector<8xf32> to vector<8x1xf32>
    %239 = tpu.reciprocal %238 {approx = true} : vector<8x1xf32> -> vector<8x1xf32>
    %240 = vector.broadcast %239 : vector<8x1xf32> to vector<8x8xf32>
    %241 = arith.mulf %236, %240 : vector<8x8xf32>
    %242 = vector.extract_strided_slice %187 {offsets = [0, 16], sizes = [8, 16], strides = [1, 1]} : vector<8x32xf32> to vector<8x16xf32>
    %cst_75 = arith.constant dense<0.000000e+00> : vector<8x16xf32>
    %243 = tpu.matmul %241, %242, %cst_75 {dimension_numbers = #tpu.dot_dimension_numbers<[1], [0], [0], [1], [0, 0, 1, 1], [], []>} : vector<8x8xf32>, vector<8x16xf32>, vector<8x16xf32> -> vector<8x16xf32>
    %244 = vector.extract_strided_slice %190 {offsets = [16, 0], sizes = [16, 32], strides = [1, 1]} : vector<32x32xf32> to vector<16x32xf32>
    %cst_76 = arith.constant dense<0.000000e+00> : vector<8x32xf32>
    %245 = tpu.matmul %243, %244, %cst_76 {dimension_numbers = #tpu.dot_dimension_numbers<[1], [0], [0], [1], [0, 0, 1, 1], [], []>} : vector<8x16xf32>, vector<16x32xf32>, vector<8x32xf32> -> vector<8x32xf32>
    %246 = arith.addf %223, %245 : vector<8x32xf32>
    %247 = arith.addf %175, %246 : vector<8x32xf32>
    %248 = vector.broadcast %194 : vector<1x32xf32> to vector<8x32xf32>
    %249 = arith.addf %247, %248 : vector<8x32xf32>
    %cst_77 = arith.constant dense<0.000000e+00> : vector<8xf32>
    %250 = vector.multi_reduction <add>, %249, %cst_77 [1] : vector<8x32xf32> to vector<8xf32>
    %251 = vector.shape_cast %250 : vector<8xf32> to vector<8x1xf32>
    %cst_78 = arith.constant 3.200000e+01 : f32
    %252 = vector.broadcast %cst_78 : f32 to vector<8x1xf32>
    %253 = arith.divf %251, %252 : vector<8x1xf32>
    %254 = vector.broadcast %253 : vector<8x1xf32> to vector<8x32xf32>
    %255 = arith.subf %249, %254 : vector<8x32xf32>
    %256 = arith.mulf %255, %255 : vector<8x32xf32>
    %cst_79 = arith.constant dense<0.000000e+00> : vector<8xf32>
    %257 = vector.multi_reduction <add>, %256, %cst_79 [1] : vector<8x32xf32> to vector<8xf32>
    %258 = vector.shape_cast %257 : vector<8xf32> to vector<8x1xf32>
    %cst_80 = arith.constant 3.200000e+01 : f32
    %259 = vector.broadcast %cst_80 : f32 to vector<8x1xf32>
    %260 = arith.divf %258, %259 : vector<8x1xf32>
    %261 = vector.broadcast %253 : vector<8x1xf32> to vector<8x32xf32>
    %262 = arith.subf %249, %261 : vector<8x32xf32>
    %cst_81 = arith.constant 9.99999996E-13 : f32
    %263 = vector.broadcast %cst_81 : f32 to vector<8x1xf32>
    %264 = arith.addf %260, %263 : vector<8x1xf32>
    %265 = math.rsqrt %264 : vector<8x1xf32>
    %266 = vector.broadcast %265 : vector<8x1xf32> to vector<8x32xf32>
    %267 = arith.mulf %262, %266 : vector<8x32xf32>
    %268 = vector.broadcast %195 : vector<1x32xf32> to vector<8x32xf32>
    %269 = arith.mulf %267, %268 : vector<8x32xf32>
    %270 = vector.broadcast %196 : vector<1x32xf32> to vector<8x32xf32>
    %271 = arith.addf %269, %270 : vector<8x32xf32>
    %272 = arith.index_cast %c1_i32 : i32 to index
    %c0_82 = arith.constant 0 : index
    %c0_83 = arith.constant 0 : index
    %273 = vector.load %arg7[%272, %c0_82, %c0_83] : memref<2x32x64xf32, #tpu.memory_space<vmem>>, vector<1x32x64xf32>
    %274 = vector.shape_cast %273 : vector<1x32x64xf32> to vector<32x64xf32>
    %cst_84 = arith.constant dense<0.000000e+00> : vector<8x64xf32>
    %275 = tpu.matmul %271, %274, %cst_84 {dimension_numbers = #tpu.dot_dimension_numbers<[1], [0], [0], [1], [0, 0, 1, 1], [], []>} : vector<8x32xf32>, vector<32x64xf32>, vector<8x64xf32> -> vector<8x64xf32>
    %276 = arith.index_cast %c1_i32 : i32 to index
    %c0_85 = arith.constant 0 : index
    %c0_86 = arith.constant 0 : index
    %277 = vector.load %arg8[%276, %c0_85, %c0_86] : memref<2x1x64xf32, #tpu.memory_space<vmem>>, vector<1x1x64xf32>
    %278 = vector.shape_cast %277 : vector<1x1x64xf32> to vector<1x64xf32>
    %279 = vector.broadcast %278 : vector<1x64xf32> to vector<8x64xf32>
    %280 = arith.addf %275, %279 : vector<8x64xf32>
    %281 = arith.mulf %280, %280 : vector<8x64xf32>
    %282 = arith.mulf %280, %281 : vector<8x64xf32>
    %cst_87 = arith.constant 4.471500e-02 : f32
    %283 = vector.broadcast %cst_87 : f32 to vector<8x64xf32>
    %284 = arith.mulf %283, %282 : vector<8x64xf32>
    %285 = arith.addf %280, %284 : vector<8x64xf32>
    %cst_88 = arith.constant 0.797884583 : f32
    %286 = vector.broadcast %cst_88 : f32 to vector<8x64xf32>
    %287 = arith.mulf %286, %285 : vector<8x64xf32>
    %288 = math.tanh %287 : vector<8x64xf32>
    %cst_89 = arith.constant 1.000000e+00 : f32
    %289 = vector.broadcast %cst_89 : f32 to vector<8x64xf32>
    %290 = arith.addf %289, %288 : vector<8x64xf32>
    %cst_90 = arith.constant 5.000000e-01 : f32
    %291 = vector.broadcast %cst_90 : f32 to vector<8x64xf32>
    %292 = arith.mulf %291, %290 : vector<8x64xf32>
    %293 = arith.mulf %280, %292 : vector<8x64xf32>
    %294 = arith.index_cast %c1_i32 : i32 to index
    %c0_91 = arith.constant 0 : index
    %c0_92 = arith.constant 0 : index
    %295 = vector.load %arg9[%294, %c0_91, %c0_92] : memref<2x64x32xf32, #tpu.memory_space<vmem>>, vector<1x64x32xf32>
    %296 = vector.shape_cast %295 : vector<1x64x32xf32> to vector<64x32xf32>
    %cst_93 = arith.constant dense<0.000000e+00> : vector<8x32xf32>
    %297 = tpu.matmul %293, %296, %cst_93 {dimension_numbers = #tpu.dot_dimension_numbers<[1], [0], [0], [1], [0, 0, 1, 1], [], []>} : vector<8x64xf32>, vector<64x32xf32>, vector<8x32xf32> -> vector<8x32xf32>
    %298 = vector.broadcast %197 : vector<1x32xf32> to vector<8x32xf32>
    %299 = arith.addf %297, %298 : vector<8x32xf32>
    %300 = arith.addf %271, %299 : vector<8x32xf32>
    %cst_94 = arith.constant dense<0.000000e+00> : vector<8xf32>
    %301 = vector.multi_reduction <add>, %300, %cst_94 [1] : vector<8x32xf32> to vector<8xf32>
    %302 = vector.shape_cast %301 : vector<8xf32> to vector<8x1xf32>
    %cst_95 = arith.constant 3.200000e+01 : f32
    %303 = vector.broadcast %cst_95 : f32 to vector<8x1xf32>
    %304 = arith.divf %302, %303 : vector<8x1xf32>
    %305 = vector.broadcast %304 : vector<8x1xf32> to vector<8x32xf32>
    %306 = arith.subf %300, %305 : vector<8x32xf32>
    %307 = arith.mulf %306, %306 : vector<8x32xf32>
    %cst_96 = arith.constant dense<0.000000e+00> : vector<8xf32>
    %308 = vector.multi_reduction <add>, %307, %cst_96 [1] : vector<8x32xf32> to vector<8xf32>
    %309 = vector.shape_cast %308 : vector<8xf32> to vector<8x1xf32>
    %cst_97 = arith.constant 3.200000e+01 : f32
    %310 = vector.broadcast %cst_97 : f32 to vector<8x1xf32>
    %311 = arith.divf %309, %310 : vector<8x1xf32>
    %312 = vector.broadcast %304 : vector<8x1xf32> to vector<8x32xf32>
    %313 = arith.subf %300, %312 : vector<8x32xf32>
    %cst_98 = arith.constant 9.99999996E-13 : f32
    %314 = vector.broadcast %cst_98 : f32 to vector<8x1xf32>
    %315 = arith.addf %311, %314 : vector<8x1xf32>
    %316 = math.rsqrt %315 : vector<8x1xf32>
    %317 = vector.broadcast %316 : vector<8x1xf32> to vector<8x32xf32>
    %318 = arith.mulf %313, %317 : vector<8x32xf32>
    %319 = vector.broadcast %198 : vector<1x32xf32> to vector<8x32xf32>
    %320 = arith.mulf %318, %319 : vector<8x32xf32>
    %321 = vector.broadcast %199 : vector<1x32xf32> to vector<8x32xf32>
    %322 = arith.addf %320, %321 : vector<8x32xf32>
    %c2_i32 = arith.constant 2 : i32
    %323 = vector.extract_strided_slice %322 {offsets = [0, 0], sizes = [1, 32], strides = [1, 1]} : vector<8x32xf32> to vector<1x32xf32>
    %c0_99 = arith.constant 0 : index
    %c0_100 = arith.constant 0 : index
    %324 = vector.load %arg11[%c0_99, %c0_100] : memref<32x32xf32, #tpu.memory_space<vmem>>, vector<32x32xf32>
    %cst_101 = arith.constant dense<0.000000e+00> : vector<1x32xf32>
    %325 = tpu.matmul %323, %324, %cst_101 {dimension_numbers = #tpu.dot_dimension_numbers<[1], [0], [0], [1], [0, 0, 1, 1], [], []>} : vector<1x32xf32>, vector<32x32xf32>, vector<1x32xf32> -> vector<1x32xf32>
    %326 = vector.extract_strided_slice %2 {offsets = [2, 0], sizes = [1, 32], strides = [1, 1]} : vector<4x32xf32> to vector<1x32xf32>
    %327 = arith.addf %325, %326 : vector<1x32xf32>
    %328 = math.tanh %327 : vector<1x32xf32>
    %c0_102 = arith.constant 0 : index
    %c0_103 = arith.constant 0 : index
    %329 = vector.load %arg12[%c0_102, %c0_103] : memref<32x3xf32, #tpu.memory_space<vmem>>, vector<32x3xf32>
    %cst_104 = arith.constant dense<0.000000e+00> : vector<1x3xf32>
    %330 = tpu.matmul %328, %329, %cst_104 {dimension_numbers = #tpu.dot_dimension_numbers<[1], [0], [0], [1], [0, 0, 1, 1], [], []>} : vector<1x32xf32>, vector<32x3xf32>, vector<1x3xf32> -> vector<1x3xf32>
    %331 = vector.extract_strided_slice %2 {offsets = [3, 0], sizes = [1, 32], strides = [1, 1]} : vector<4x32xf32> to vector<1x32xf32>
    %332 = vector.extract_strided_slice %331 {offsets = [0, 0], sizes = [1, 3], strides = [1, 1]} : vector<1x32xf32> to vector<1x3xf32>
    %333 = arith.addf %330, %332 : vector<1x3xf32>
    %cst_105 = arith.constant dense<0xFF800000> : vector<1xf32>
    %334 = vector.multi_reduction <maximumf>, %333, %cst_105 [1] : vector<1x3xf32> to vector<1xf32>
    %335 = vector.shape_cast %334 : vector<1xf32> to vector<1x1xf32>
    %336 = vector.broadcast %335 : vector<1x1xf32> to vector<1x3xf32>
    %337 = arith.subf %333, %336 : vector<1x3xf32>
    %338 = math.exp %337 : vector<1x3xf32>
    %cst_106 = arith.constant dense<0.000000e+00> : vector<1xf32>
    %339 = vector.multi_reduction <add>, %338, %cst_106 [1] : vector<1x3xf32> to vector<1xf32>
    %340 = vector.shape_cast %339 : vector<1xf32> to vector<1x1xf32>
    %341 = tpu.reciprocal %340 {approx = true} : vector<1x1xf32> -> vector<1x1xf32>
    %342 = vector.broadcast %341 : vector<1x1xf32> to vector<1x3xf32>
    %343 = arith.mulf %338, %342 : vector<1x3xf32>
    %c0_107 = arith.constant 0 : index
    %c0_108 = arith.constant 0 : index
    %c0_109 = arith.constant 0 : index
    %344 = vector.load %arg13[%c0_107, %c0_108, %c0_109] : memref<1x1x3xf32, #tpu.memory_space<vmem>>, vector<1x1x3xf32>
    %345 = vector.shape_cast %344 : vector<1x1x3xf32> to vector<1x3xf32>
    %346 = vector.shape_cast %343 : vector<1x3xf32> to vector<1x1x3xf32>
    tpu.vector_store %arg13[%c0_107, %c0_108, %c0_109], %346 {strides = array<i32>} : memref<1x1x3xf32, #tpu.memory_space<vmem>>, vector<1x1x3xf32>,
    return
  }
  func.func @transform_0(%arg0: i32) -> (i32, i32, i32) {
    %c0_i32 = arith.constant 0 : i32
    %c0_i32_0 = arith.constant 0 : i32
    %c0_i32_1 = arith.constant 0 : i32
    return %arg0, %c0_i32, %c0_i32_0 : i32, i32, i32
  }
  func.func @transform_1(%arg0: i32) -> (i32, i32, i32) {
    %c0_i32 = arith.constant 0 : i32
    %c0_i32_0 = arith.constant 0 : i32
    %c0_i32_1 = arith.constant 0 : i32
    return %arg0, %c0_i32, %c0_i32_0 : i32, i32, i32
  }
  func.func @transform_2(%arg0: i32) -> (i32, i32, i32) {
    %c0_i32 = arith.constant 0 : i32
    %c0_i32_0 = arith.constant 0 : i32
    %c0_i32_1 = arith.constant 0 : i32
    %c0_i32_2 = arith.constant 0 : i32
    return %c0_i32, %c0_i32_0, %c0_i32_1 : i32, i32, i32
  }
  func.func @transform_3(%arg0: i32) -> (i32, i32, i32) {
    %c0_i32 = arith.constant 0 : i32
    %c0_i32_0 = arith.constant 0 : i32
    %c0_i32_1 = arith.constant 0 : i32
    %c0_i32_2 = arith.constant 0 : i32
    return %c0_i32, %c0_i32_0, %c0_i32_1 : i32, i32, i32
  }
  func.func @transform_4(%arg0: i32) -> (i32, i32, i32) {
    %c0_i32 = arith.constant 0 : i32
    %c0_i32_0 = arith.constant 0 : i32
    %c0_i32_1 = arith.constant 0 : i32
    %c0_i32_2 = arith.constant 0 : i32
    return %c0_i32, %c0_i32_0, %c0_i32_1 : i32, i32, i32
  }
  func.func @transform_5(%arg0: i32) -> (i32, i32, i32) {
    %c0_i32 = arith.constant 0 : i32
    %c0_i32_0 = arith.constant 0 : i32
    %c0_i32_1 = arith.constant 0 : i32
    %c0_i32_2 = arith.constant 0 : i32
    return %c0_i32, %c0_i32_0, %c0_i32_1 : i32, i32, i32
  }
  func.func @transform_6(%arg0: i32) -> (i32, i32, i32) {
    %c0_i32 = arith.constant 0 : i32
    %c0_i32_0 = arith.constant 0 : i32
    %c0_i32_1 = arith.constant 0 : i32
    %c0_i32_2 = arith.constant 0 : i32
    return %c0_i32, %c0_i32_0, %c0_i32_1 : i32, i32, i32
  }
  func.func @transform_7(%arg0: i32) -> (i32, i32, i32) {
    %c0_i32 = arith.constant 0 : i32
    %c0_i32_0 = arith.constant 0 : i32
    %c0_i32_1 = arith.constant 0 : i32
    %c0_i32_2 = arith.constant 0 : i32
    return %c0_i32, %c0_i32_0, %c0_i32_1 : i32, i32, i32
  }
  func.func @transform_8(%arg0: i32) -> (i32, i32, i32) {
    %c0_i32 = arith.constant 0 : i32
    %c0_i32_0 = arith.constant 0 : i32
    %c0_i32_1 = arith.constant 0 : i32
    %c0_i32_2 = arith.constant 0 : i32
    return %c0_i32, %c0_i32_0, %c0_i32_1 : i32, i32, i32
  }
  func.func @transform_9(%arg0: i32) -> (i32, i32) {
    %c0_i32 = arith.constant 0 : i32
    %c0_i32_0 = arith.constant 0 : i32
    %c0_i32_1 = arith.constant 0 : i32
    return %c0_i32, %c0_i32_0 : i32, i32
  }
  func.func @transform_10(%arg0: i32) -> (i32, i32) {
    %c0_i32 = arith.constant 0 : i32
    %c0_i32_0 = arith.constant 0 : i32
    %c0_i32_1 = arith.constant 0 : i32
    return %c0_i32, %c0_i32_0 : i32, i32
  }
  func.func @transform_11(%arg0: i32) -> (i32, i32) {
    %c0_i32 = arith.constant 0 : i32
    %c0_i32_0 = arith.constant 0 : i32
    %c0_i32_1 = arith.constant 0 : i32
    return %c0_i32, %c0_i32_0 : i32, i32
  }
  func.func @transform_12(%arg0: i32) -> (i32, i32, i32) {
    %c0_i32 = arith.constant 0 : i32
    %c0_i32_0 = arith.constant 0 : i32
    %c0_i32_1 = arith.constant 0 : i32
    return %arg0, %c0_i32, %c0_i32_0 : i32, i32, i32
  }
}

</mosaic_0001>

<llo_original>
// kernel: tpu_custom_call.1
$region0: #{tpu_custom_call.1}
  #allocation0 [shape = 'u32[]', space=smem, size = 0x4, offset = 0x4, fixed_abs, tag = 'smem constant byte address 0x4 - core index']
  #allocation1 [shape = 'u32[144,128]{1,0:T(1,128)}', space=vmem, size = 0x12000, scoped, tag = 'internal scratch']
  %s0 = inlined_call_operand.hbm [shape: f32[2,8,32], index: 0, kind: input, shape index: {}]
  %s1 = inlined_call_operand.hbm [shape: f32[2,1,8], index: 1, kind: input, shape index: {}]
  %s2 = inlined_call_operand.vmem [shape: f32[2,32,96], index: 2, kind: input, shape index: {}]
  %s3 = inlined_call_operand.hbm [shape: f32[2,1,96], index: 3, kind: input, shape index: {}]
  %s4 = inlined_call_operand.vmem [shape: f32[2,32,32], index: 4, kind: input, shape index: {}]
  %s5 = inlined_call_operand.vmem [shape: f32[2,6,32], index: 5, kind: input, shape index: {}]
  %s6 = inlined_call_operand.vmem [shape: f32[2,32,64], index: 6, kind: input, shape index: {}]
  %s7 = inlined_call_operand.hbm [shape: f32[2,1,64], index: 7, kind: input, shape index: {}]
  %s8 = inlined_call_operand.vmem [shape: f32[2,64,32], index: 8, kind: input, shape index: {}]
  %s9 = inlined_call_operand.hbm [shape: f32[4,32], index: 9, kind: input, shape index: {}]
  %s10 = inlined_call_operand.vmem [shape: f32[32,32], index: 10, kind: input, shape index: {}]
  %s11 = inlined_call_operand.vmem [shape: f32[32,3], index: 11, kind: input, shape index: {}]
  %s12 = inlined_call_operand.hbm [shape: f32[2,1,3], index: 12, kind: output, shape index: {}]
  %s13 = sld [smem:[#allocation0]]
  $region101: #{tpu_custom_call.1} parent=0
    _
  %s15 = ssub.s32 1, %s13
  %s16 = scalar_select 0, %s15, %s13
  $region1: #{tpu_custom_call.1} parent=0
    #allocation2 [shape = 'u8[8192]{0}', space=vmem, size = 0x2000, scoped, tag = 'input window, operand 0']
    #allocation3 [shape = 's32[2]{0}', space=sflag, size = 0x8, scoped, tag = 'scoped memory for tpu_custom_call.1']
    #allocation4 [shape = 's32[2]{0}', space=sflag, size = 0x8, scoped, tag = 'scoped memory for tpu_custom_call.1']
    #allocation5 [shape = 'u8[1024]{0}', space=vmem, size = 0x400, scoped, tag = 'input window, operand 1']
    #allocation6 [shape = 's32[2]{0}', space=sflag, size = 0x8, scoped, tag = 'scoped memory for tpu_custom_call.1']
    #allocation7 [shape = 'u8[1024]{0}', space=vmem, size = 0x400, scoped, tag = 'input window, operand 3, single buffered']
    #allocation8 [shape = 'u8[1024]{0}', space=vmem, size = 0x400, scoped, tag = 'input window, operand 7, single buffered']
    #allocation9 [shape = 's32[1]{0}', space=sflag, size = 0x4, scoped, tag = 'scoped memory for tpu_custom_call.1']
    #allocation10 [shape = 'u8[2048]{0}', space=vmem, size = 0x800, scoped, tag = 'input window, operand 9, single buffered']
    #allocation11 [shape = 'u8[1024]{0}', space=vmem, size = 0x400, scoped, tag = 'output window, operand 0']
    %17 = vsyncpa [#allocation3], 0
    %s18 = scalar_lea.sflag [#allocation3], 1
    %19 = vsyncpa %s18, 0
    %20 = vsyncpa [#allocation6], 0
    %s21 = scalar_lea.sflag [#allocation6], 1
    %22 = vsyncpa %s21, 0
    %23 = vsyncpa [#allocation9], 0
    %24 = vsyncpa [#allocation4], 0
    %s25 = scalar_lea.sflag [#allocation4], 1
    %26 = vsyncpa %s25, 0
    loop: start=0, step=1, limit=4
    $region2: #{tpu_custom_call.1} parent=1 // loop_pre_header
      _
    $region3: #{tpu_custom_call.1} parent=1 // loop_header
      %s28 = sphi 0, %s32
      %p29 = scmp.ge.s32.totalorder %s28, 4
      %s38 = sphi 0, %s40
      %s41 = sphi 0, %s38
      %s42 = sphi 0, %s41
      %s58 = sphi 0, %s42
      %s64 = sphi 0, %s66
      %s67 = sphi 0, %s64
      %s68 = sphi 0, %s67
      %s84 = sphi 0, %s68
      %s88 = sphi 0, %s88
      %s90 = sphi 0, %s88
      %s91 = sphi 0, %s90
      %s105 = sphi 0, %s91
      %s109 = sphi 0, %s109
      %s111 = sphi 0, %s109
      %s112 = sphi 0, %s111
      %s126 = sphi 0, %s112
      %s130 = sphi 0, %s130
      %s132 = sphi 0, %s130
      %s133 = sphi 0, %s132
      %s147 = sphi 0, %s133
      %s151 = sphi 0, %s151
      %s153 = sphi 0, %s151
      %s154 = sphi 0, %s153
      %s168 = sphi 0, %s154
      %s172 = sphi 0, %s172
      %s174 = sphi 0, %s172
      %s175 = sphi 0, %s174
      %s189 = sphi 0, %s175
      %s193 = sphi 0, %s193
      %s195 = sphi 0, %s193
      %s196 = sphi 0, %s195
      %s210 = sphi 0, %s196
      %s214 = sphi 0, %s214
      %s216 = sphi 0, %s214
      %s217 = sphi 0, %s216
      %s231 = sphi 0, %s217
      %s235 = sphi 0, %s235
      %s237 = sphi 0, %s235
      %s238 = sphi 0, %s237
      %s252 = sphi 0, %s238
      %s256 = sphi 0, %s256
      %s258 = sphi 0, %s256
      %s259 = sphi 0, %s258
      %s273 = sphi 0, %s259
      %s277 = sphi 0, %s277
      %s279 = sphi 0, %s277
      %s280 = sphi 0, %s279
      %s294 = sphi 0, %s280
      %s300 = sphi 0, %s302
      %s303 = sphi 0, %s300
      %s304 = sphi 0, %s303
      %s320 = sphi 0, %s304
    $region4: #{tpu_custom_call.1} parent=1 // loop_header_branch
      %31 = sbr.rel (%p29) target = $region8
    $region5: #{tpu_custom_call.1} parent=1 // loop_body
      %s33 = ssub.s32 %s28, 1
      %s34 = ssub.s32 %s28, 2
      %s35 = sadd.s32 %s28, 1
      %s36 = ssub.s32 %s28, %s35
      %p37 = scmp.eq.s32.totalorder %s36, 0
      %s39 = sadd.s32 %s38, 1
      %s40 = scalar_select %p37, %s38, %s39
      %p43 = pneg %p37
      %p44 = scmp.eq.s32.totalorder %s28, 1
      %p45 = por %p43, %p44
      %p46 = scmp.ne.s32.totalorder %s38, %s41
      %p47 = scmp.eq.s32.totalorder %s28, 0
      %p48 = por %p46, %p47
      %p49 = scmp.ne.s32.totalorder %s38, %s41
      %p50 = scmp.eq.s32.totalorder %s33, 1
      %p51 = por %p49, %p50
      %p52 = scmp.ne.s32.totalorder %s41, %s42
      %p53 = scmp.eq.s32.totalorder %s33, 0
      %p54 = por %p52, %p53
      %p55 = scmp.ne.s32.totalorder %s41, %s42
      %p56 = scmp.eq.s32.totalorder %s34, 1
      %p57 = por %p55, %p56
      %p59 = scmp.ne.s32.totalorder %s42, %s58
      %p60 = scmp.eq.s32.totalorder %s34, 0
      %p61 = por %p59, %p60
      %s62 = ssub.s32 %s28, %s35
      %p63 = scmp.eq.s32.totalorder %s62, 0
      %s65 = sadd.s32 %s64, 1
      %s66 = scalar_select %p63, %s64, %s65
      %p69 = pneg %p63
      %p70 = scmp.eq.s32.totalorder %s28, 1
      %p71 = por %p69, %p70
      %p72 = scmp.ne.s32.totalorder %s64, %s67
      %p73 = scmp.eq.s32.totalorder %s28, 0
      %p74 = por %p72, %p73
      %p75 = scmp.ne.s32.totalorder %s64, %s67
      %p76 = scmp.eq.s32.totalorder %s33, 1
      %p77 = por %p75, %p76
      %p78 = scmp.ne.s32.totalorder %s67, %s68
      %p79 = scmp.eq.s32.totalorder %s33, 0
      %p80 = por %p78, %p79
      %p81 = scmp.ne.s32.totalorder %s67, %s68
      %p82 = scmp.eq.s32.totalorder %s34, 1
      %p83 = por %p81, %p82
      %p85 = scmp.ne.s32.totalorder %s68, %s84
      %p86 = scmp.eq.s32.totalorder %s34, 0
      %p87 = por %p85, %p86
      %s89 = sadd.s32 %s88, 1
      %p92 = scmp.eq.s32.totalorder %s28, 1
      %p93 = scmp.ne.s32.totalorder %s88, %s90
      %p94 = scmp.eq.s32.totalorder %s28, 0
      %p95 = por %p93, %p94
      %p96 = scmp.ne.s32.totalorder %s88, %s90
      %p97 = scmp.eq.s32.totalorder %s33, 1
      %p98 = por %p96, %p97
      %p99 = scmp.ne.s32.totalorder %s90, %s91
      %p100 = scmp.eq.s32.totalorder %s33, 0
      %p101 = por %p99, %p100
      %p102 = scmp.ne.s32.totalorder %s90, %s91
      %p103 = scmp.eq.s32.totalorder %s34, 1
      %p104 = por %p102, %p103
      %p106 = scmp.ne.s32.totalorder %s91, %s105
      %p107 = scmp.eq.s32.totalorder %s34, 0
      %p108 = por %p106, %p107
      %s110 = sadd.s32 %s109, 1
      %p113 = scmp.eq.s32.totalorder %s28, 1
      %p114 = scmp.ne.s32.totalorder %s109, %s111
      %p115 = scmp.eq.s32.totalorder %s28, 0
      %p116 = por %p114, %p115
      %p117 = scmp.ne.s32.totalorder %s109, %s111
      %p118 = scmp.eq.s32.totalorder %s33, 1
      %p119 = por %p117, %p118
      %p120 = scmp.ne.s32.totalorder %s111, %s112
      %p121 = scmp.eq.s32.totalorder %s33, 0
      %p122 = por %p120, %p121
      %p123 = scmp.ne.s32.totalorder %s111, %s112
      %p124 = scmp.eq.s32.totalorder %s34, 1
      %p125 = por %p123, %p124
      %p127 = scmp.ne.s32.totalorder %s112, %s126
      %p128 = scmp.eq.s32.totalorder %s34, 0
      %p129 = por %p127, %p128
      %s131 = sadd.s32 %s130, 1
      %p134 = scmp.eq.s32.totalorder %s28, 1
      %p135 = scmp.ne.s32.totalorder %s130, %s132
      %p136 = scmp.eq.s32.totalorder %s28, 0
      %p137 = por %p135, %p136
      %p138 = scmp.ne.s32.totalorder %s130, %s132
      %p139 = scmp.eq.s32.totalorder %s33, 1
      %p140 = por %p138, %p139
      %p141 = scmp.ne.s32.totalorder %s132, %s133
      %p142 = scmp.eq.s32.totalorder %s33, 0
      %p143 = por %p141, %p142
      %p144 = scmp.ne.s32.totalorder %s132, %s133
      %p145 = scmp.eq.s32.totalorder %s34, 1
      %p146 = por %p144, %p145
      %p148 = scmp.ne.s32.totalorder %s133, %s147
      %p149 = scmp.eq.s32.totalorder %s34, 0
      %p150 = por %p148, %p149
      %s152 = sadd.s32 %s151, 1
      %p155 = scmp.eq.s32.totalorder %s28, 1
      %p156 = scmp.ne.s32.totalorder %s151, %s153
      %p157 = scmp.eq.s32.totalorder %s28, 0
      %p158 = por %p156, %p157
      %p159 = scmp.ne.s32.totalorder %s151, %s153
      %p160 = scmp.eq.s32.totalorder %s33, 1
      %p161 = por %p159, %p160
      %p162 = scmp.ne.s32.totalorder %s153, %s154
      %p163 = scmp.eq.s32.totalorder %s33, 0
      %p164 = por %p162, %p163
      %p165 = scmp.ne.s32.totalorder %s153, %s154
      %p166 = scmp.eq.s32.totalorder %s34, 1
      %p167 = por %p165, %p166
      %p169 = scmp.ne.s32.totalorder %s154, %s168
      %p170 = scmp.eq.s32.totalorder %s34, 0
      %p171 = por %p169, %p170
      %s173 = sadd.s32 %s172, 1
      %p176 = scmp.eq.s32.totalorder %s28, 1
      %p177 = scmp.ne.s32.totalorder %s172, %s174
      %p178 = scmp.eq.s32.totalorder %s28, 0
      %p179 = por %p177, %p178
      %p180 = scmp.ne.s32.totalorder %s172, %s174
      %p181 = scmp.eq.s32.totalorder %s33, 1
      %p182 = por %p180, %p181
      %p183 = scmp.ne.s32.totalorder %s174, %s175
      %p184 = scmp.eq.s32.totalorder %s33, 0
      %p185 = por %p183, %p184
      %p186 = scmp.ne.s32.totalorder %s174, %s175
      %p187 = scmp.eq.s32.totalorder %s34, 1
      %p188 = por %p186, %p187
      %p190 = scmp.ne.s32.totalorder %s175, %s189
      %p191 = scmp.eq.s32.totalorder %s34, 0
      %p192 = por %p190, %p191
      %s194 = sadd.s32 %s193, 1
      %p197 = scmp.eq.s32.totalorder %s28, 1
      %p198 = scmp.ne.s32.totalorder %s193, %s195
      %p199 = scmp.eq.s32.totalorder %s28, 0
      %p200 = por %p198, %p199
      %p201 = scmp.ne.s32.totalorder %s193, %s195
      %p202 = scmp.eq.s32.totalorder %s33, 1
      %p203 = por %p201, %p202
      %p204 = scmp.ne.s32.totalorder %s195, %s196
      %p205 = scmp.eq.s32.totalorder %s33, 0
      %p206 = por %p204, %p205
      %p207 = scmp.ne.s32.totalorder %s195, %s196
      %p208 = scmp.eq.s32.totalorder %s34, 1
      %p209 = por %p207, %p208
      %p211 = scmp.ne.s32.totalorder %s196, %s210
      %p212 = scmp.eq.s32.totalorder %s34, 0
      %p213 = por %p211, %p212
      %s215 = sadd.s32 %s214, 1
      %p218 = scmp.eq.s32.totalorder %s28, 1
      %p219 = scmp.ne.s32.totalorder %s214, %s216
      %p220 = scmp.eq.s32.totalorder %s28, 0
      %p221 = por %p219, %p220
      %p222 = scmp.ne.s32.totalorder %s214, %s216
      %p223 = scmp.eq.s32.totalorder %s33, 1
      %p224 = por %p222, %p223
      %p225 = scmp.ne.s32.totalorder %s216, %s217
      %p226 = scmp.eq.s32.totalorder %s33, 0
      %p227 = por %p225, %p226
      %p228 = scmp.ne.s32.totalorder %s216, %s217
      %p229 = scmp.eq.s32.totalorder %s34, 1
      %p230 = por %p228, %p229
      %p232 = scmp.ne.s32.totalorder %s217, %s231
      %p233 = scmp.eq.s32.totalorder %s34, 0
      %p234 = por %p232, %p233
      %s236 = sadd.s32 %s235, 1
      %p239 = scmp.eq.s32.totalorder %s28, 1
      %p240 = scmp.ne.s32.totalorder %s235, %s237
      %p241 = scmp.eq.s32.totalorder %s28, 0
      %p242 = por %p240, %p241
      %p243 = scmp.ne.s32.totalorder %s235, %s237
      %p244 = scmp.eq.s32.totalorder %s33, 1
      %p245 = por %p243, %p244
      %p246 = scmp.ne.s32.totalorder %s237, %s238
      %p247 = scmp.eq.s32.totalorder %s33, 0
      %p248 = por %p246, %p247
      %p249 = scmp.ne.s32.totalorder %s237, %s238
      %p250 = scmp.eq.s32.totalorder %s34, 1
      %p251 = por %p249, %p250
      %p253 = scmp.ne.s32.totalorder %s238, %s252
      %p254 = scmp.eq.s32.totalorder %s34, 0
      %p255 = por %p253, %p254
      %s257 = sadd.s32 %s256, 1
      %p260 = scmp.eq.s32.totalorder %s28, 1
      %p261 = scmp.ne.s32.totalorder %s256, %s258
      %p262 = scmp.eq.s32.totalorder %s28, 0
      %p263 = por %p261, %p262
      %p264 = scmp.ne.s32.totalorder %s256, %s258
      %p265 = scmp.eq.s32.totalorder %s33, 1
      %p266 = por %p264, %p265
      %p267 = scmp.ne.s32.totalorder %s258, %s259
      %p268 = scmp.eq.s32.totalorder %s33, 0
      %p269 = por %p267, %p268
      %p270 = scmp.ne.s32.totalorder %s258, %s259
      %p271 = scmp.eq.s32.totalorder %s34, 1
      %p272 = por %p270, %p271
      %p274 = scmp.ne.s32.totalorder %s259, %s273
      %p275 = scmp.eq.s32.totalorder %s34, 0
      %p276 = por %p274, %p275
      %s278 = sadd.s32 %s277, 1
      %p281 = scmp.eq.s32.totalorder %s28, 1
      %p282 = scmp.ne.s32.totalorder %s277, %s279
      %p283 = scmp.eq.s32.totalorder %s28, 0
      %p284 = por %p282, %p283
      %p285 = scmp.ne.s32.totalorder %s277, %s279
      %p286 = scmp.eq.s32.totalorder %s33, 1
      %p287 = por %p285, %p286
      %p288 = scmp.ne.s32.totalorder %s279, %s280
      %p289 = scmp.eq.s32.totalorder %s33, 0
      %p290 = por %p288, %p289
      %p291 = scmp.ne.s32.totalorder %s279, %s280
      %p292 = scmp.eq.s32.totalorder %s34, 1
      %p293 = por %p291, %p292
      %p295 = scmp.ne.s32.totalorder %s280, %s294
      %p296 = scmp.eq.s32.totalorder %s34, 0
      %p297 = por %p295, %p296
      %s298 = ssub.s32 %s28, %s35
      %p299 = scmp.eq.s32.totalorder %s298, 0
      %s301 = sadd.s32 %s300, 1
      %s302 = scalar_select %p299, %s300, %s301
      %p305 = pneg %p299
      %p306 = scmp.eq.s32.totalorder %s28, 1
      %p307 = por %p305, %p306
      %p308 = scmp.ne.s32.totalorder %s300, %s303
      %p309 = scmp.eq.s32.totalorder %s28, 0
      %p310 = por %p308, %p309
      %p311 = scmp.ne.s32.totalorder %s300, %s303
      %p312 = scmp.eq.s32.totalorder %s33, 1
      %p313 = por %p311, %p312
      %p314 = scmp.ne.s32.totalorder %s303, %s304
      %p315 = scmp.eq.s32.totalorder %s33, 0
      %p316 = por %p314, %p315
      %p317 = scmp.ne.s32.totalorder %s303, %s304
      %p318 = scmp.eq.s32.totalorder %s34, 1
      %p319 = por %p317, %p318
      %p321 = scmp.ne.s32.totalorder %s304, %s320
      %p322 = scmp.eq.s32.totalorder %s34, 0
      %p323 = por %p321, %p322
      %p324 = scmp.le.s32.totalorder 1, %s28
      %p325 = scmp.lt.s32.totalorder %s28, 3
      %p326 = pnand %p324, %p325
      %p327 = pneg %p326
      // Predicated region
      $region9: #{tpu_custom_call.1} parent=5 // pred_check
        _
      $region10: #{tpu_custom_call.1} parent=5 // pred_check_branch
        %329 = sbr.rel (%p326) target = $region12
      $region11: #{tpu_custom_call.1} parent=5 // pred_region
        %s330 = ssub.s32 %s28, 1
        // Predicated region
        $region13: #{tpu_custom_call.1} parent=11 // pred_check
          %p331 = pneg %p101
        $region14: #{tpu_custom_call.1} parent=11 // pred_check_branch
          %333 = sbr.rel (%p331) target = $region16
        $region15: #{tpu_custom_call.1} parent=11 // pred_region
          _
        $region16: #{tpu_custom_call.1} parent=11 // pred_fallthru
          _
        // Predicated region
        $region17: #{tpu_custom_call.1} parent=11 // pred_check
          %p334 = pneg %p122
        $region18: #{tpu_custom_call.1} parent=11 // pred_check_branch
          %336 = sbr.rel (%p334) target = $region20
        $region19: #{tpu_custom_call.1} parent=11 // pred_region
          %s338 = ssub.s32 32, 32
          %339 = vsyncadd [#allocation6], %s338
          %s340 = sshll.u32 [#allocation7], 4
          %s341 = int_to_ptr.vmem [resolvable:$true] %s340
          %346 = dma.hbm_to_vmem [thread:$0]  %s3, 32, %s341, [#allocation6], 16, 16, 1
        $region20: #{tpu_custom_call.1} parent=11 // pred_fallthru
          _
        // Predicated region
        $region21: #{tpu_custom_call.1} parent=11 // pred_check
          %p347 = pneg %p143
        $region22: #{tpu_custom_call.1} parent=11 // pred_check_branch
          %349 = sbr.rel (%p347) target = $region24
        $region23: #{tpu_custom_call.1} parent=11 // pred_region
          _
        $region24: #{tpu_custom_call.1} parent=11 // pred_fallthru
          _
        // Predicated region
        $region25: #{tpu_custom_call.1} parent=11 // pred_check
          %p350 = pneg %p164
        $region26: #{tpu_custom_call.1} parent=11 // pred_check_branch
          %352 = sbr.rel (%p350) target = $region28
        $region27: #{tpu_custom_call.1} parent=11 // pred_region
          _
        $region28: #{tpu_custom_call.1} parent=11 // pred_fallthru
          _
        // Predicated region
        $region29: #{tpu_custom_call.1} parent=11 // pred_check
          %p353 = pneg %p185
        $region30: #{tpu_custom_call.1} parent=11 // pred_check_branch
          %355 = sbr.rel (%p353) target = $region32
        $region31: #{tpu_custom_call.1} parent=11 // pred_region
          _
        $region32: #{tpu_custom_call.1} parent=11 // pred_fallthru
          _
        // Predicated region
        $region33: #{tpu_custom_call.1} parent=11 // pred_check
          %p356 = pneg %p206
        $region34: #{tpu_custom_call.1} parent=11 // pred_check_branch
          %358 = sbr.rel (%p356) target = $region36
        $region35: #{tpu_custom_call.1} parent=11 // pred_region
          %s360 = ssub.s32 32, 32
          %361 = vsyncadd [#allocation9], %s360
          %s362 = sshll.u32 [#allocation8], 4
          %s363 = int_to_ptr.vmem [resolvable:$true] %s362
          %368 = dma.hbm_to_vmem [thread:$0]  %s7, 32, %s363, [#allocation9], 16, 16, 1
        $region36: #{tpu_custom_call.1} parent=11 // pred_fallthru
          _
        // Predicated region
        $region37: #{tpu_custom_call.1} parent=11 // pred_check
          %p369 = pneg %p227
        $region38: #{tpu_custom_call.1} parent=11 // pred_check_branch
          %371 = sbr.rel (%p369) target = $region40
        $region39: #{tpu_custom_call.1} parent=11 // pred_region
          _
        $region40: #{tpu_custom_call.1} parent=11 // pred_fallthru
          _
        // Predicated region
        $region41: #{tpu_custom_call.1} parent=11 // pred_check
          %p372 = pneg %p248
        $region42: #{tpu_custom_call.1} parent=11 // pred_check_branch
          %374 = sbr.rel (%p372) target = $region44
        $region43: #{tpu_custom_call.1} parent=11 // pred_region
          %s376 = ssub.s32 64, 64
          %377 = vsyncadd [#allocation9], %s376
          %s379 = sshll.u32 [#allocation10], 4
          %s380 = int_to_ptr.vmem [resolvable:$true] %s379
          %382 = dma.hbm_to_vmem [thread:$0]  %s9, 64, %s380, [#allocation9]
        $region44: #{tpu_custom_call.1} parent=11 // pred_fallthru
          _
        // Predicated region
        $region45: #{tpu_custom_call.1} parent=11 // pred_check
          %p383 = pneg %p269
        $region46: #{tpu_custom_call.1} parent=11 // pred_check_branch
          %385 = sbr.rel (%p383) target = $region48
        $region47: #{tpu_custom_call.1} parent=11 // pred_region
          _
        $region48: #{tpu_custom_call.1} parent=11 // pred_fallthru
          _
        // Predicated region
        $region49: #{tpu_custom_call.1} parent=11 // pred_check
          %p386 = pneg %p290
        $region50: #{tpu_custom_call.1} parent=11 // pred_check_branch
          %388 = sbr.rel (%p386) target = $region52
        $region51: #{tpu_custom_call.1} parent=11 // pred_region
          _
        $region52: #{tpu_custom_call.1} parent=11 // pred_fallthru
          _
      $region12: #{tpu_custom_call.1} parent=5 // pred_fallthru
        _
      %p389 = scmp.lt.s32.totalorder %s28, 2
      // Predicated region
      $region53: #{tpu_custom_call.1} parent=5 // pred_check
        %p390 = pneg %p389
      $region54: #{tpu_custom_call.1} parent=5 // pred_check_branch
        %392 = sbr.rel (%p390) target = $region56
      $region55: #{tpu_custom_call.1} parent=5 // pred_region
        // Predicated region
        $region57: #{tpu_custom_call.1} parent=55 // pred_check
          %p393 = pneg %p48
        $region58: #{tpu_custom_call.1} parent=55 // pred_check_branch
          %395 = sbr.rel (%p393) target = $region60
        $region59: #{tpu_custom_call.1} parent=55 // pred_region
          %s396 = sand.u32 %s38, 1
          %s397 = scalar_lea.sflag [#allocation3], %s396
          %s398 = sand.u32 %s38, 1
          %s399 = smul.addr %s398, 8
          %s400 = scalar_lea.vmem [#allocation2], %s399
          %s402 = ssub.s32 128, 128
          %403 = vsyncadd %s397, %s402
          %s404 = smul.addr %s28, 128
          %s405 = scalar_lea.hbm %s0, %s404
          %s407 = sshll.u32 %s400, 4
          %s408 = int_to_ptr.vmem [resolvable:$true] %s407
          %410 = dma.hbm_to_vmem [thread:$0]  %s405, 128, %s408, %s397
        $region60: #{tpu_custom_call.1} parent=55 // pred_fallthru
          _
        // Predicated region
        $region61: #{tpu_custom_call.1} parent=55 // pred_check
          %p411 = pneg %p74
        $region62: #{tpu_custom_call.1} parent=55 // pred_check_branch
          %413 = sbr.rel (%p411) target = $region64
        $region63: #{tpu_custom_call.1} parent=55 // pred_region
          %s414 = sand.u32 %s28, 1
          %s415 = scalar_lea.sflag [#allocation6], %s414
          %s416 = sand.u32 %s64, 1
          %s417 = scalar_lea.vmem [#allocation5], %s416
          %s419 = ssub.s32 16, 16
          %420 = vsyncadd %s415, %s419
          %s421 = smul.addr %s28, 16
          %s422 = scalar_lea.hbm %s1, %s421
          %s424 = sshll.u32 %s417, 4
          %s425 = int_to_ptr.vmem [resolvable:$true] %s424
          %427 = dma.hbm_to_vmem [thread:$0]  %s422, 16, %s425, %s415
        $region64: #{tpu_custom_call.1} parent=55 // pred_fallthru
          _
      $region56: #{tpu_custom_call.1} parent=5 // pred_fallthru
        _
      %p428 = scmp.le.s32.totalorder 1, %s28
      %p429 = scmp.lt.s32.totalorder %s28, 3
      %p430 = pnand %p428, %p429
      %p431 = pneg %p430
      // Predicated region
      $region65: #{tpu_custom_call.1} parent=5 // pred_check
        _
      $region66: #{tpu_custom_call.1} parent=5 // pred_check_branch
        %433 = sbr.rel (%p430) target = $region68
      $region67: #{tpu_custom_call.1} parent=5 // pred_region
        %s434 = ssub.s32 %s28, 1
        %s435 = sand.u32 %s41, 1
        %s436 = scalar_lea.sflag [#allocation3], %s435
        %s437 = sand.u32 %s41, 1
        %s438 = smul.addr %s437, 8
        %s439 = scalar_lea.vmem [#allocation2], %s438
        // Predicated region
        $region69: #{tpu_custom_call.1} parent=67 // pred_check
          %p440 = pneg %p54
        $region70: #{tpu_custom_call.1} parent=67 // pred_check_branch
          %442 = sbr.rel (%p440) target = $region72
        $region71: #{tpu_custom_call.1} parent=67 // pred_region
          %443 = dma.done %s436, 128
        $region72: #{tpu_custom_call.1} parent=67 // pred_fallthru
          _
        %s444 = sand.u32 %s33, 1
        %s445 = scalar_lea.sflag [#allocation6], %s444
        %s446 = sand.u32 %s67, 1
        %s447 = scalar_lea.vmem [#allocation5], %s446
        // Predicated region
        $region73: #{tpu_custom_call.1} parent=67 // pred_check
          %p448 = pneg %p80
        $region74: #{tpu_custom_call.1} parent=67 // pred_check_branch
          %450 = sbr.rel (%p448) target = $region76
        $region75: #{tpu_custom_call.1} parent=67 // pred_region
          %451 = dma.done %s445, 16
        $region76: #{tpu_custom_call.1} parent=67 // pred_fallthru
          _
        // Predicated region
        $region77: #{tpu_custom_call.1} parent=67 // pred_check
          %p452 = pneg %p122
        $region78: #{tpu_custom_call.1} parent=67 // pred_check_branch
          %454 = sbr.rel (%p452) target = $region80
        $region79: #{tpu_custom_call.1} parent=67 // pred_region
          %455 = dma.done [#allocation6], 32
        $region80: #{tpu_custom_call.1} parent=67 // pred_fallthru
          _
        // Predicated region
        $region81: #{tpu_custom_call.1} parent=67 // pred_check
          %p456 = pneg %p206
        $region82: #{tpu_custom_call.1} parent=67 // pred_check_branch
          %458 = sbr.rel (%p456) target = $region84
        $region83: #{tpu_custom_call.1} parent=67 // pred_region
          %459 = dma.done [#allocation9], 32
        $region84: #{tpu_custom_call.1} parent=67 // pred_fallthru
          _
        // Predicated region
        $region85: #{tpu_custom_call.1} parent=67 // pred_check
          %p460 = pneg %p248
        $region86: #{tpu_custom_call.1} parent=67 // pred_check_branch
          %462 = sbr.rel (%p460) target = $region88
        $region87: #{tpu_custom_call.1} parent=67 // pred_region
          %463 = dma.done [#allocation9], 64
        $region88: #{tpu_custom_call.1} parent=67 // pred_fallthru
          _
        %s464 = sand.u32 %s41, 1
        %s465 = scalar_lea.sflag [#allocation3], %s464
        %s466 = sand.u32 %s41, 1
        %s467 = smul.addr %s466, 8
        %s468 = scalar_lea.vmem [#allocation2], %s467
        %p469 = pneg %p54
        %p470 = pneg %p51
        %s471 = sand.u32 %s33, 1
        %s472 = scalar_lea.sflag [#allocation6], %s471
        %s473 = sand.u32 %s67, 1
        %s474 = scalar_lea.vmem [#allocation5], %s473
        %p475 = pneg %p80
        %p476 = pneg %p77
        %p477 = pneg %p101
        %p478 = pneg %p98
        %p479 = pneg %p122
        %p480 = pneg %p119
        %p481 = pneg %p143
        %p482 = pneg %p140
        %p483 = pneg %p164
        %p484 = pneg %p161
        %p485 = pneg %p185
        %p486 = pneg %p182
        %p487 = pneg %p206
        %p488 = pneg %p203
        %p489 = pneg %p227
        %p490 = pneg %p224
        %p491 = pneg %p248
        %p492 = pneg %p245
        %p493 = pneg %p269
        %p494 = pneg %p266
        %p495 = pneg %p290
        %p496 = pneg %p287
        %p497 = pneg %p316
        %p498 = pneg %p313
        %s499 = sand.u32 %s303, 1
        %s500 = scalar_lea.sflag [#allocation4], %s499
        %s501 = sand.u32 %s303, 1
        %s502 = scalar_lea.vmem [#allocation11], %s501
        %v503 = vld [vmem:[%s447] sm:$0x1]
        %v504 = vld [vmem:[#allocation10] sm:$0xf]
        %v505 = vld [vmem:[%s439] sm:$0xff]
        %vm506 = vcmask 261120
        %v507 = vsel %vm506, %v505, 0.0
        %508 = vadd.xlane.f32.xlu0 %v507
        %v509 = vpop.xlane.xlu0 %508
        %v510 = vrcp.pop 32.0
        %v511 = vmul.f32 %v509, %v510
        %v512 = vsub.f32 %v505, %v511
        %v513 = vmul.f32 %v512, %v512
        %v514 = vsel %vm506, %v513, 0.0
        %515 = vadd.xlane.f32.xlu0 %v514
        %v516 = vpop.xlane.xlu0 %515
        %v517 = vmul.f32 %v516, %v510
        %v518 = vadd.f32 %v517, 1e-12
        %v519 = vrsqrt.pop %v518
        %v520 = vmul.f32 %v512, %v519
        %v521 = vlaneseq
        %v522 = vshrl.u32 %v521, 7
        %v523 = vsub.s32 0, %v522
        %v524 = vrot.slane %v504, %v523
        %v525 = vmul.f32 %v520, %v524
        %v526 = vlaneseq
        %v527 = vshrl.u32 %v526, 7
        %v528 = vsub.s32 1, %v527
        %v529 = vrot.slane %v504, %v528
        %v530 = vadd.f32 %v525, %v529
        %v531 = vld [vmem:[%s2] sm:$0xff]
        %v532 = vld [vmem:[%s2 + $0x8] sm:$0xff]
        %v533 = vld [vmem:[%s2 + $0x10] sm:$0xff]
        %v534 = vld [vmem:[%s2 + $0x18] sm:$0xff]
        %v535 = vld [vmem:[#allocation7] sm:$0x1]
        %v537 = vlaneseq
        %v538 = vshrl.u32 %v537, 7
        %v539 = vsub.s32 0, %v538
        %v540 = vrot.slane %v535, %v539
        %v543 = vsel %vm506, %v530, 0
        %545 = vmatprep.subr.mxu0 0.0
        %546 = vmatpush1.msra.mxu0 %v531
        %547 = vmatprep.subr.mxu0 0.0
        %548 = vmatpush1.msra.mxu0 %v532
        %549 = vmatprep.subr.mxu0 0.0
        %550 = vmatpush1.msra.mxu0 %v533
        %551 = vmatprep.subr.mxu0 0.0
        %552 = vmatpush1.msra.mxu0 %v534
        %553 = vmatprep.subr.mxu0 0.0
        %554 = vmatpush1.msra.mxu0 0.0
        %555 = vmatprep.subr.mxu0 0.0
        %556 = vmatpush1.msra.mxu0 0.0
        %557 = vmatprep.subr.mxu0 0.0
        %558 = vmatpush1.msra.mxu0 0.0
        %559 = vmatprep.subr.mxu0 0.0
        %560 = vmatpush1.msra.mxu0 0.0
        %561 = vmatprep.subr.mxu0 0.0
        %562 = vmatpush1.msra.mxu0 0.0
        %563 = vmatprep.subr.mxu0 0.0
        %564 = vmatpush1.msra.mxu0 0.0
        %565 = vmatprep.subr.mxu0 0.0
        %566 = vmatpush1.msra.mxu0 0.0
        %567 = vmatprep.subr.mxu0 0.0
        %568 = vmatpush1.msra.mxu0 0.0
        %569 = vmatprep.subr.mxu0 0.0
        %570 = vmatpush1.msra.mxu0 0.0
        %571 = vmatprep.subr.mxu0 0.0
        %572 = vmatpush1.msra.mxu0 0.0
        %573 = vmatprep.subr.mxu0 0.0
        %574 = vmatpush1.msra.mxu0 0.0
        %575 = vmatprep.subr.mxu0 0.0
        %576 = vmatpush1.msra.mxu0 0.0
        %577 = vmatprep.subr.mxu0 0.0
        %578 = vmatpush1.msra.mxu0 0.0
        %579 = vmatprep.subr.mxu0 0.0
        %580 = vmatpush1.msra.mxu0 0.0
        %581 = vmatprep.subr.mxu0 0.0
        %582 = vmatpush1.msra.mxu0 0.0
        %583 = vmatprep.subr.mxu0 0.0
        %584 = vmatpush1.msra.mxu0 0.0
        %585 = vmatprep.subr.mxu0 0.0
        %586 = vmatpush1.msra.mxu0 0.0
        %587 = vmatprep.subr.mxu0 0.0
        %588 = vmatpush1.msra.mxu0 0.0
        %589 = vmatprep.subr.mxu0 0.0
        %590 = vmatpush1.msra.mxu0 0.0
        %591 = vmatprep.subr.mxu0 0.0
        %592 = vmatpush1.msra.mxu0 0.0
        %593 = vmatprep.subr.mxu0 0.0
        %594 = vmatpush1.msra.mxu0 0.0
        %595 = vmatprep.subr.mxu0 0.0
        %596 = vmatpush1.msra.mxu0 0.0
        %597 = vmatprep.subr.mxu0 0.0
        %598 = vmatpush1.msra.mxu0 0.0
        %599 = vmatprep.subr.mxu0 0.0
        %600 = vmatpush1.msra.mxu0 0.0
        %601 = vmatprep.subr.mxu0 0.0
        %602 = vmatpush1.msra.mxu0 0.0
        %603 = vmatprep.subr.mxu0 0.0
        %604 = vmatpush1.msra.mxu0 0.0
        %605 = vmatprep.subr.mxu0 0.0
        %606 = vmatpush1.msra.mxu0 0.0
        %607 = vmatprep.subr.mxu0 0.0
        %608 = vmatpush1.msra.mxu0 0.0
        %609 = vmatprep.mubr.f32.mxu0 0.0
        %610 = vmatmul.mubr.f32.gmra.mrb[0].mxu0 %v543
        %v611 = vpop.f32.mrb[0].mxu0
        %v612 = vadd.f32 %v540, %v611
        %v613 = vpop.f32.mrb[0].mxu0
        %614 = vdwg.mxu0
        %v615 = vld [vmem:[%s4] sm:$0xff]
        %v616 = vld [vmem:[%s4 + $0x8] sm:$0xff]
        %v617 = vld [vmem:[%s4 + $0x10] sm:$0xff]
        %v618 = vld [vmem:[%s4 + $0x18] sm:$0xff]
        %v619 = vld [vmem:[%s5] sm:$0x3f]
        %621 = vrot.lane.b32.xlu0 %v612, 96
        %v622 = vpop.permute.xlu0 %621
        %vm623 = vcmask 130048
        %v624 = vsel %vm623, %v612, 0
        %v626 = vsel %vm623, %v622, 0
        %628 = vmatprep.subr.mxu0 0.0
        %629 = vmatpush1.xpose.msra.mxu0 %v626
        %630 = vmatprep.subr.mxu0 0.0
        %631 = vmatpush1.xpose.msra.mxu0 0.0
        %632 = vmatprep.subr.mxu0 0.0
        %633 = vmatpush1.xpose.msra.mxu0 0.0
        %634 = vmatprep.subr.mxu0 0.0
        %635 = vmatpush1.xpose.msra.mxu0 0.0
        %636 = vmatprep.subr.mxu0 0.0
        %637 = vmatpush1.xpose.msra.mxu0 0.0
        %638 = vmatprep.subr.mxu0 0.0
        %639 = vmatpush1.xpose.msra.mxu0 0.0
        %640 = vmatprep.subr.mxu0 0.0
        %641 = vmatpush1.xpose.msra.mxu0 0.0
        %642 = vmatprep.subr.mxu0 0.0
        %643 = vmatpush1.xpose.msra.mxu0 0.0
        %644 = vmatprep.subr.mxu0 0.0
        %645 = vmatpush1.xpose.msra.mxu0 0.0
        %646 = vmatprep.subr.mxu0 0.0
        %647 = vmatpush1.xpose.msra.mxu0 0.0
        %648 = vmatprep.subr.mxu0 0.0
        %649 = vmatpush1.xpose.msra.mxu0 0.0
        %650 = vmatprep.subr.mxu0 0.0
        %651 = vmatpush1.xpose.msra.mxu0 0.0
        %652 = vmatprep.subr.mxu0 0.0
        %653 = vmatpush1.xpose.msra.mxu0 0.0
        %654 = vmatprep.subr.mxu0 0.0
        %655 = vmatpush1.xpose.msra.mxu0 0.0
        %656 = vmatprep.subr.mxu0 0.0
        %657 = vmatpush1.xpose.msra.mxu0 0.0
        %658 = vmatprep.subr.mxu0 0.0
        %659 = vmatpush1.xpose.msra.mxu0 0.0
        %660 = vmatprep.subr.mxu0 0.0
        %661 = vmatpush1.xpose.msra.mxu0 0.0
        %662 = vmatprep.subr.mxu0 0.0
        %663 = vmatpush1.xpose.msra.mxu0 0.0
        %664 = vmatprep.subr.mxu0 0.0
        %665 = vmatpush1.xpose.msra.mxu0 0.0
        %666 = vmatprep.subr.mxu0 0.0
        %667 = vmatpush1.xpose.msra.mxu0 0.0
        %668 = vmatprep.subr.mxu0 0.0
        %669 = vmatpush1.xpose.msra.mxu0 0.0
        %670 = vmatprep.subr.mxu0 0.0
        %671 = vmatpush1.xpose.msra.mxu0 0.0
        %672 = vmatprep.subr.mxu0 0.0
        %673 = vmatpush1.xpose.msra.mxu0 0.0
        %674 = vmatprep.subr.mxu0 0.0
        %675 = vmatpush1.xpose.msra.mxu0 0.0
        %676 = vmatprep.subr.mxu0 0.0
        %677 = vmatpush1.xpose.msra.mxu0 0.0
        %678 = vmatprep.subr.mxu0 0.0
        %679 = vmatpush1.xpose.msra.mxu0 0.0
        %680 = vmatprep.subr.mxu0 0.0
        %681 = vmatpush1.xpose.msra.mxu0 0.0
        %682 = vmatprep.subr.mxu0 0.0
        %683 = vmatpush1.xpose.msra.mxu0 0.0
        %684 = vmatprep.subr.mxu0 0.0
        %685 = vmatpush1.xpose.msra.mxu0 0.0
        %686 = vmatprep.subr.mxu0 0.0
        %687 = vmatpush1.xpose.msra.mxu0 0.0
        %688 = vmatprep.subr.mxu0 0.0
        %689 = vmatpush1.xpose.msra.mxu0 0.0
        %690 = vmatprep.subr.mxu0 0.0
        %691 = vmatpush1.xpose.msra.mxu0 0.0
        %692 = vmatprep.mubr.f32.mxu0 0.0
        %693 = vmatmul.mubr.f32.gmra.mrb[0].mxu0 %v624
        %v694 = vpop.f32.mrb[0].mxu0
        %v695 = vadd.f32 0.0, %v694
        %v696 = vpop.f32.mrb[0].mxu0
        %697 = vdwg.mxu0
        %v698 = vmul.f32 %v695, 0.25
        %v700 = vlaneseq
        %v701 = vshrl.u32 %v700, 7
        %v702 = vsub.s32 0, %v701
        %v703 = vrot.slane %v503, %v702
        %v705 = vadd.f32 %v698, %v703
        %vm706 = vcmask 64512
        %v707 = vsel %vm706, %v705, -inf
        %708 = vmax.xlane.f32.xlu0 %v707
        %v709 = vpop.xlane.xlu0 %708
        %v710 = vsub.f32 %v705, %v709
        %v711 = vmul.f32 %v710, 1.442695
        %v712 = vpow.pop %v711
        %v713 = vsel %vm706, %v712, 0.0
        %714 = vadd.xlane.f32.xlu0 %v713
        %v715 = vpop.xlane.xlu0 %714
        %v716 = vrcp.pop %v715
        %v717 = vmul.f32 %v712, %v716
        %718 = vrot.lane.b32.xlu0 %v612, 64
        %v719 = vpop.permute.xlu0 %718
        %v722 = vsel %vm706, %v717, 0
        %724 = vmatprep.subr.mxu0 0.0
        %725 = vmatpush1.msra.mxu0 %v719
        %726 = vmatprep.subr.mxu0 0.0
        %727 = vmatpush1.msra.mxu0 0.0
        %728 = vmatprep.subr.mxu0 0.0
        %729 = vmatpush1.msra.mxu0 0.0
        %730 = vmatprep.subr.mxu0 0.0
        %731 = vmatpush1.msra.mxu0 0.0
        %732 = vmatprep.subr.mxu0 0.0
        %733 = vmatpush1.msra.mxu0 0.0
        %734 = vmatprep.subr.mxu0 0.0
        %735 = vmatpush1.msra.mxu0 0.0
        %736 = vmatprep.subr.mxu0 0.0
        %737 = vmatpush1.msra.mxu0 0.0
        %738 = vmatprep.subr.mxu0 0.0
        %739 = vmatpush1.msra.mxu0 0.0
        %740 = vmatprep.subr.mxu0 0.0
        %741 = vmatpush1.msra.mxu0 0.0
        %742 = vmatprep.subr.mxu0 0.0
        %743 = vmatpush1.msra.mxu0 0.0
        %744 = vmatprep.subr.mxu0 0.0
        %745 = vmatpush1.msra.mxu0 0.0
        %746 = vmatprep.subr.mxu0 0.0
        %747 = vmatpush1.msra.mxu0 0.0
        %748 = vmatprep.subr.mxu0 0.0
        %749 = vmatpush1.msra.mxu0 0.0
        %750 = vmatprep.subr.mxu0 0.0
        %751 = vmatpush1.msra.mxu0 0.0
        %752 = vmatprep.subr.mxu0 0.0
        %753 = vmatpush1.msra.mxu0 0.0
        %754 = vmatprep.subr.mxu0 0.0
        %755 = vmatpush1.msra.mxu0 0.0
        %756 = vmatprep.subr.mxu0 0.0
        %757 = vmatpush1.msra.mxu0 0.0
        %758 = vmatprep.subr.mxu0 0.0
        %759 = vmatpush1.msra.mxu0 0.0
        %760 = vmatprep.subr.mxu0 0.0
        %761 = vmatpush1.msra.mxu0 0.0
        %762 = vmatprep.subr.mxu0 0.0
        %763 = vmatpush1.msra.mxu0 0.0
        %764 = vmatprep.subr.mxu0 0.0
        %765 = vmatpush1.msra.mxu0 0.0
        %766 = vmatprep.subr.mxu0 0.0
        %767 = vmatpush1.msra.mxu0 0.0
        %768 = vmatprep.subr.mxu0 0.0
        %769 = vmatpush1.msra.mxu0 0.0
        %770 = vmatprep.subr.mxu0 0.0
        %771 = vmatpush1.msra.mxu0 0.0
        %772 = vmatprep.subr.mxu0 0.0
        %773 = vmatpush1.msra.mxu0 0.0
        %774 = vmatprep.subr.mxu0 0.0
        %775 = vmatpush1.msra.mxu0 0.0
        %776 = vmatprep.subr.mxu0 0.0
        %777 = vmatpush1.msra.mxu0 0.0
        %778 = vmatprep.subr.mxu0 0.0
        %779 = vmatpush1.msra.mxu0 0.0
        %780 = vmatprep.subr.mxu0 0.0
        %781 = vmatpush1.msra.mxu0 0.0
        %782 = vmatprep.subr.mxu0 0.0
        %783 = vmatpush1.msra.mxu0 0.0
        %784 = vmatprep.subr.mxu0 0.0
        %785 = vmatpush1.msra.mxu0 0.0
        %786 = vmatprep.subr.mxu0 0.0
        %787 = vmatpush1.msra.mxu0 0.0
        %788 = vmatprep.mubr.f32.mxu0 0.0
        %789 = vmatmul.mubr.f32.gmra.mrb[0].mxu0 %v722
        %v790 = vpop.f32.mrb[0].mxu0
        %v791 = vadd.f32 0.0, %v790
        %v792 = vpop.f32.mrb[0].mxu0
        %793 = vdwg.mxu0
        %794 = vrot.lane.b32.xlu0 %v612, 112
        %v795 = vpop.permute.xlu0 %794
        %796 = vrot.lane.b32.xlu0 %v612, 80
        %v797 = vpop.permute.xlu0 %796
        %v798 = vsel %vm623, %v795, 0
        %v800 = vsel %vm623, %v797, 0
        %802 = vmatprep.subr.mxu0 0.0
        %803 = vmatpush1.xpose.msra.mxu0 %v800
        %804 = vmatprep.subr.mxu0 0.0
        %805 = vmatpush1.xpose.msra.mxu0 0.0
        %806 = vmatprep.subr.mxu0 0.0
        %807 = vmatpush1.xpose.msra.mxu0 0.0
        %808 = vmatprep.subr.mxu0 0.0
        %809 = vmatpush1.xpose.msra.mxu0 0.0
        %810 = vmatprep.subr.mxu0 0.0
        %811 = vmatpush1.xpose.msra.mxu0 0.0
        %812 = vmatprep.subr.mxu0 0.0
        %813 = vmatpush1.xpose.msra.mxu0 0.0
        %814 = vmatprep.subr.mxu0 0.0
        %815 = vmatpush1.xpose.msra.mxu0 0.0
        %816 = vmatprep.subr.mxu0 0.0
        %817 = vmatpush1.xpose.msra.mxu0 0.0
        %818 = vmatprep.subr.mxu0 0.0
        %819 = vmatpush1.xpose.msra.mxu0 0.0
        %820 = vmatprep.subr.mxu0 0.0
        %821 = vmatpush1.xpose.msra.mxu0 0.0
        %822 = vmatprep.subr.mxu0 0.0
        %823 = vmatpush1.xpose.msra.mxu0 0.0
        %824 = vmatprep.subr.mxu0 0.0
        %825 = vmatpush1.xpose.msra.mxu0 0.0
        %826 = vmatprep.subr.mxu0 0.0
        %827 = vmatpush1.xpose.msra.mxu0 0.0
        %828 = vmatprep.subr.mxu0 0.0
        %829 = vmatpush1.xpose.msra.mxu0 0.0
        %830 = vmatprep.subr.mxu0 0.0
        %831 = vmatpush1.xpose.msra.mxu0 0.0
        %832 = vmatprep.subr.mxu0 0.0
        %833 = vmatpush1.xpose.msra.mxu0 0.0
        %834 = vmatprep.subr.mxu0 0.0
        %835 = vmatpush1.xpose.msra.mxu0 0.0
        %836 = vmatprep.subr.mxu0 0.0
        %837 = vmatpush1.xpose.msra.mxu0 0.0
        %838 = vmatprep.subr.mxu0 0.0
        %839 = vmatpush1.xpose.msra.mxu0 0.0
        %840 = vmatprep.subr.mxu0 0.0
        %841 = vmatpush1.xpose.msra.mxu0 0.0
        %842 = vmatprep.subr.mxu0 0.0
        %843 = vmatpush1.xpose.msra.mxu0 0.0
        %844 = vmatprep.subr.mxu0 0.0
        %845 = vmatpush1.xpose.msra.mxu0 0.0
        %846 = vmatprep.subr.mxu0 0.0
        %847 = vmatpush1.xpose.msra.mxu0 0.0
        %848 = vmatprep.subr.mxu0 0.0
        %849 = vmatpush1.xpose.msra.mxu0 0.0
        %850 = vmatprep.subr.mxu0 0.0
        %851 = vmatpush1.xpose.msra.mxu0 0.0
        %852 = vmatprep.subr.mxu0 0.0
        %853 = vmatpush1.xpose.msra.mxu0 0.0
        %854 = vmatprep.subr.mxu0 0.0
        %855 = vmatpush1.xpose.msra.mxu0 0.0
        %856 = vmatprep.subr.mxu0 0.0
        %857 = vmatpush1.xpose.msra.mxu0 0.0
        %858 = vmatprep.subr.mxu0 0.0
        %859 = vmatpush1.xpose.msra.mxu0 0.0
        %860 = vmatprep.subr.mxu0 0.0
        %861 = vmatpush1.xpose.msra.mxu0 0.0
        %862 = vmatprep.subr.mxu0 0.0
        %863 = vmatpush1.xpose.msra.mxu0 0.0
        %864 = vmatprep.subr.mxu0 0.0
        %865 = vmatpush1.xpose.msra.mxu0 0.0
        %866 = vmatprep.mubr.f32.mxu0 0.0
        %867 = vmatmul.mubr.f32.gmra.mrb[0].mxu0 %v798
        %v868 = vpop.f32.mrb[0].mxu0
        %v869 = vadd.f32 0.0, %v868
        %v870 = vpop.f32.mrb[0].mxu0
        %871 = vdwg.mxu0
        %v872 = vmul.f32 %v869, 0.25
        %v873 = vadd.f32 %v872, %v703
        %v874 = vsel %vm706, %v873, -inf
        %875 = vmax.xlane.f32.xlu0 %v874
        %v876 = vpop.xlane.xlu0 %875
        %v877 = vsub.f32 %v873, %v876
        %v878 = vmul.f32 %v877, 1.442695
        %v879 = vpow.pop %v878
        %v880 = vsel %vm706, %v879, 0.0
        %881 = vadd.xlane.f32.xlu0 %v880
        %v882 = vpop.xlane.xlu0 %881
        %v883 = vrcp.pop %v882
        %v884 = vmul.f32 %v879, %v883
        %885 = vrot.lane.b32.xlu0 %v612, 48
        %v886 = vpop.permute.xlu0 %885
        %v889 = vsel %vm706, %v884, 0
        %891 = vmatprep.subr.mxu0 0.0
        %892 = vmatpush1.msra.mxu0 %v886
        %893 = vmatprep.subr.mxu0 0.0
        %894 = vmatpush1.msra.mxu0 0.0
        %895 = vmatprep.subr.mxu0 0.0
        %896 = vmatpush1.msra.mxu0 0.0
        %897 = vmatprep.subr.mxu0 0.0
        %898 = vmatpush1.msra.mxu0 0.0
        %899 = vmatprep.subr.mxu0 0.0
        %900 = vmatpush1.msra.mxu0 0.0
        %901 = vmatprep.subr.mxu0 0.0
        %902 = vmatpush1.msra.mxu0 0.0
        %903 = vmatprep.subr.mxu0 0.0
        %904 = vmatpush1.msra.mxu0 0.0
        %905 = vmatprep.subr.mxu0 0.0
        %906 = vmatpush1.msra.mxu0 0.0
        %907 = vmatprep.subr.mxu0 0.0
        %908 = vmatpush1.msra.mxu0 0.0
        %909 = vmatprep.subr.mxu0 0.0
        %910 = vmatpush1.msra.mxu0 0.0
        %911 = vmatprep.subr.mxu0 0.0
        %912 = vmatpush1.msra.mxu0 0.0
        %913 = vmatprep.subr.mxu0 0.0
        %914 = vmatpush1.msra.mxu0 0.0
        %915 = vmatprep.subr.mxu0 0.0
        %916 = vmatpush1.msra.mxu0 0.0
        %917 = vmatprep.subr.mxu0 0.0
        %918 = vmatpush1.msra.mxu0 0.0
        %919 = vmatprep.subr.mxu0 0.0
        %920 = vmatpush1.msra.mxu0 0.0
        %921 = vmatprep.subr.mxu0 0.0
        %922 = vmatpush1.msra.mxu0 0.0
        %923 = vmatprep.subr.mxu0 0.0
        %924 = vmatpush1.msra.mxu0 0.0
        %925 = vmatprep.subr.mxu0 0.0
        %926 = vmatpush1.msra.mxu0 0.0
        %927 = vmatprep.subr.mxu0 0.0
        %928 = vmatpush1.msra.mxu0 0.0
        %929 = vmatprep.subr.mxu0 0.0
        %930 = vmatpush1.msra.mxu0 0.0
        %931 = vmatprep.subr.mxu0 0.0
        %932 = vmatpush1.msra.mxu0 0.0
        %933 = vmatprep.subr.mxu0 0.0
        %934 = vmatpush1.msra.mxu0 0.0
        %935 = vmatprep.subr.mxu0 0.0
        %936 = vmatpush1.msra.mxu0 0.0
        %937 = vmatprep.subr.mxu0 0.0
        %938 = vmatpush1.msra.mxu0 0.0
        %939 = vmatprep.subr.mxu0 0.0
        %940 = vmatpush1.msra.mxu0 0.0
        %941 = vmatprep.subr.mxu0 0.0
        %942 = vmatpush1.msra.mxu0 0.0
        %943 = vmatprep.subr.mxu0 0.0
        %944 = vmatpush1.msra.mxu0 0.0
        %945 = vmatprep.subr.mxu0 0.0
        %946 = vmatpush1.msra.mxu0 0.0
        %947 = vmatprep.subr.mxu0 0.0
        %948 = vmatpush1.msra.mxu0 0.0
        %949 = vmatprep.subr.mxu0 0.0
        %950 = vmatpush1.msra.mxu0 0.0
        %951 = vmatprep.subr.mxu0 0.0
        %952 = vmatpush1.msra.mxu0 0.0
        %953 = vmatprep.subr.mxu0 0.0
        %954 = vmatpush1.msra.mxu0 0.0
        %955 = vmatprep.mubr.f32.mxu0 0.0
        %956 = vmatmul.mubr.f32.gmra.mrb[0].mxu0 %v889
        %v957 = vpop.f32.mrb[0].mxu0
        %v958 = vadd.f32 0.0, %v957
        %v959 = vpop.f32.mrb[0].mxu0
        %960 = vdwg.mxu0
        %v962 = vsel %vm623, %v958, 0
        %964 = vmatprep.subr.mxu0 0.0
        %965 = vmatpush1.msra.mxu0 %v617
        %966 = vmatprep.subr.mxu0 0.0
        %967 = vmatpush1.msra.mxu0 %v618
        %968 = vmatprep.subr.mxu0 0.0
        %969 = vmatpush1.msra.mxu0 0.0
        %970 = vmatprep.subr.mxu0 0.0
        %971 = vmatpush1.msra.mxu0 0.0
        %972 = vmatprep.subr.mxu0 0.0
        %973 = vmatpush1.msra.mxu0 0.0
        %974 = vmatprep.subr.mxu0 0.0
        %975 = vmatpush1.msra.mxu0 0.0
        %976 = vmatprep.subr.mxu0 0.0
        %977 = vmatpush1.msra.mxu0 0.0
        %978 = vmatprep.subr.mxu0 0.0
        %979 = vmatpush1.msra.mxu0 0.0
        %980 = vmatprep.subr.mxu0 0.0
        %981 = vmatpush1.msra.mxu0 0.0
        %982 = vmatprep.subr.mxu0 0.0
        %983 = vmatpush1.msra.mxu0 0.0
        %984 = vmatprep.subr.mxu0 0.0
        %985 = vmatpush1.msra.mxu0 0.0
        %986 = vmatprep.subr.mxu0 0.0
        %987 = vmatpush1.msra.mxu0 0.0
        %988 = vmatprep.subr.mxu0 0.0
        %989 = vmatpush1.msra.mxu0 0.0
        %990 = vmatprep.subr.mxu0 0.0
        %991 = vmatpush1.msra.mxu0 0.0
        %992 = vmatprep.subr.mxu0 0.0
        %993 = vmatpush1.msra.mxu0 0.0
        %994 = vmatprep.subr.mxu0 0.0
        %995 = vmatpush1.msra.mxu0 0.0
        %996 = vmatprep.subr.mxu0 0.0
        %997 = vmatpush1.msra.mxu0 0.0
        %998 = vmatprep.subr.mxu0 0.0
        %999 = vmatpush1.msra.mxu0 0.0
        %1000 = vmatprep.subr.mxu0 0.0
        %1001 = vmatpush1.msra.mxu0 0.0
        %1002 = vmatprep.subr.mxu0 0.0
        %1003 = vmatpush1.msra.mxu0 0.0
        %1004 = vmatprep.subr.mxu0 0.0
        %1005 = vmatpush1.msra.mxu0 0.0
        %1006 = vmatprep.subr.mxu0 0.0
        %1007 = vmatpush1.msra.mxu0 0.0
        %1008 = vmatprep.subr.mxu0 0.0
        %1009 = vmatpush1.msra.mxu0 0.0
        %1010 = vmatprep.subr.mxu0 0.0
        %1011 = vmatpush1.msra.mxu0 0.0
        %1012 = vmatprep.subr.mxu0 0.0
        %1013 = vmatpush1.msra.mxu0 0.0
        %1014 = vmatprep.subr.mxu0 0.0
        %1015 = vmatpush1.msra.mxu0 0.0
        %1016 = vmatprep.subr.mxu0 0.0
        %1017 = vmatpush1.msra.mxu0 0.0
        %1018 = vmatprep.subr.mxu0 0.0
        %1019 = vmatpush1.msra.mxu0 0.0
        %1020 = vmatprep.subr.mxu0 0.0
        %1021 = vmatpush1.msra.mxu0 0.0
        %1022 = vmatprep.subr.mxu0 0.0
        %1023 = vmatpush1.msra.mxu0 0.0
        %1024 = vmatprep.subr.mxu0 0.0
        %1025 = vmatpush1.msra.mxu0 0.0
        %1026 = vmatprep.subr.mxu0 0.0
        %1027 = vmatpush1.msra.mxu0 0.0
        %1028 = vmatprep.mubr.f32.mxu0 0.0
        %1029 = vmatmul.mubr.f32.gmra.mrb[0].mxu0 %v962
        %v1030 = vpop.f32.mrb[0].mxu0
        %v1031 = vadd.f32 0.0, %v1030
        %v1032 = vpop.f32.mrb[0].mxu0
        %1033 = vdwg.mxu0
        %v1035 = vsel %vm623, %v791, 0
        %1037 = vmatprep.subr.mxu0 0.0
        %1038 = vmatpush1.msra.mxu0 %v615
        %1039 = vmatprep.subr.mxu0 0.0
        %1040 = vmatpush1.msra.mxu0 %v616
        %1041 = vmatprep.subr.mxu0 0.0
        %1042 = vmatpush1.msra.mxu0 0.0
        %1043 = vmatprep.subr.mxu0 0.0
        %1044 = vmatpush1.msra.mxu0 0.0
        %1045 = vmatprep.subr.mxu0 0.0
        %1046 = vmatpush1.msra.mxu0 0.0
        %1047 = vmatprep.subr.mxu0 0.0
        %1048 = vmatpush1.msra.mxu0 0.0
        %1049 = vmatprep.subr.mxu0 0.0
        %1050 = vmatpush1.msra.mxu0 0.0
        %1051 = vmatprep.subr.mxu0 0.0
        %1052 = vmatpush1.msra.mxu0 0.0
        %1053 = vmatprep.subr.mxu0 0.0
        %1054 = vmatpush1.msra.mxu0 0.0
        %1055 = vmatprep.subr.mxu0 0.0
        %1056 = vmatpush1.msra.mxu0 0.0
        %1057 = vmatprep.subr.mxu0 0.0
        %1058 = vmatpush1.msra.mxu0 0.0
        %1059 = vmatprep.subr.mxu0 0.0
        %1060 = vmatpush1.msra.mxu0 0.0
        %1061 = vmatprep.subr.mxu0 0.0
        %1062 = vmatpush1.msra.mxu0 0.0
        %1063 = vmatprep.subr.mxu0 0.0
        %1064 = vmatpush1.msra.mxu0 0.0
        %1065 = vmatprep.subr.mxu0 0.0
        %1066 = vmatpush1.msra.mxu0 0.0
        %1067 = vmatprep.subr.mxu0 0.0
        %1068 = vmatpush1.msra.mxu0 0.0
        %1069 = vmatprep.subr.mxu0 0.0
        %1070 = vmatpush1.msra.mxu0 0.0
        %1071 = vmatprep.subr.mxu0 0.0
        %1072 = vmatpush1.msra.mxu0 0.0
        %1073 = vmatprep.subr.mxu0 0.0
        %1074 = vmatpush1.msra.mxu0 0.0
        %1075 = vmatprep.subr.mxu0 0.0
        %1076 = vmatpush1.msra.mxu0 0.0
        %1077 = vmatprep.subr.mxu0 0.0
        %1078 = vmatpush1.msra.mxu0 0.0
        %1079 = vmatprep.subr.mxu0 0.0
        %1080 = vmatpush1.msra.mxu0 0.0
        %1081 = vmatprep.subr.mxu0 0.0
        %1082 = vmatpush1.msra.mxu0 0.0
        %1083 = vmatprep.subr.mxu0 0.0
        %1084 = vmatpush1.msra.mxu0 0.0
        %1085 = vmatprep.subr.mxu0 0.0
        %1086 = vmatpush1.msra.mxu0 0.0
        %1087 = vmatprep.subr.mxu0 0.0
        %1088 = vmatpush1.msra.mxu0 0.0
        %1089 = vmatprep.subr.mxu0 0.0
        %1090 = vmatpush1.msra.mxu0 0.0
        %1091 = vmatprep.subr.mxu0 0.0
        %1092 = vmatpush1.msra.mxu0 0.0
        %1093 = vmatprep.subr.mxu0 0.0
        %1094 = vmatpush1.msra.mxu0 0.0
        %1095 = vmatprep.subr.mxu0 0.0
        %1096 = vmatpush1.msra.mxu0 0.0
        %1097 = vmatprep.subr.mxu0 0.0
        %1098 = vmatpush1.msra.mxu0 0.0
        %1099 = vmatprep.subr.mxu0 0.0
        %1100 = vmatpush1.msra.mxu0 0.0
        %1101 = vmatprep.mubr.f32.mxu0 0.0
        %1102 = vmatmul.mubr.f32.gmra.mrb[0].mxu0 %v1035
        %v1103 = vpop.f32.mrb[0].mxu0
        %v1104 = vadd.f32 %v1031, %v1103
        %v1105 = vpop.f32.mrb[0].mxu0
        %1106 = vdwg.mxu0
        %v1107 = vadd.f32 %v530, %v1104
        %v1108 = vlaneseq
        %v1109 = vshrl.u32 %v1108, 7
        %v1110 = vsub.s32 0, %v1109
        %v1111 = vrot.slane %v619, %v1110
        %v1112 = vadd.f32 %v1107, %v1111
        %v1113 = vsel %vm506, %v1112, 0.0
        %1114 = vadd.xlane.f32.xlu0 %v1113
        %v1115 = vpop.xlane.xlu0 %1114
        %v1116 = vmul.f32 %v1115, %v510
        %v1117 = vsub.f32 %v1112, %v1116
        %v1118 = vmul.f32 %v1117, %v1117
        %v1119 = vsel %vm506, %v1118, 0.0
        %1120 = vadd.xlane.f32.xlu0 %v1119
        %v1121 = vpop.xlane.xlu0 %1120
        %v1122 = vmul.f32 %v1121, %v510
        %v1123 = vadd.f32 %v1122, 1e-12
        %v1124 = vrsqrt.pop %v1123
        %v1125 = vmul.f32 %v1117, %v1124
        %v1126 = vlaneseq
        %v1127 = vshrl.u32 %v1126, 7
        %v1128 = vsub.s32 1, %v1127
        %v1129 = vrot.slane %v619, %v1128
        %v1130 = vmul.f32 %v1125, %v1129
        %v1131 = vlaneseq
        %v1132 = vshrl.u32 %v1131, 7
        %v1133 = vsub.s32 2, %v1132
        %v1134 = vrot.slane %v619, %v1133
        %v1135 = vadd.f32 %v1130, %v1134
        %v1136 = vld [vmem:[%s6] sm:$0xff]
        %v1137 = vld [vmem:[%s6 + $0x8] sm:$0xff]
        %v1138 = vld [vmem:[%s6 + $0x10] sm:$0xff]
        %v1139 = vld [vmem:[%s6 + $0x18] sm:$0xff]
        %v1140 = vld [vmem:[#allocation8] sm:$0x1]
        %v1142 = vlaneseq
        %v1143 = vshrl.u32 %v1142, 7
        %v1144 = vsub.s32 0, %v1143
        %v1145 = vrot.slane %v1140, %v1144
        %v1148 = vsel %vm506, %v1135, 0
        %1150 = vmatprep.subr.mxu0 0.0
        %1151 = vmatpush1.msra.mxu0 %v1136
        %1152 = vmatprep.subr.mxu0 0.0
        %1153 = vmatpush1.msra.mxu0 %v1137
        %1154 = vmatprep.subr.mxu0 0.0
        %1155 = vmatpush1.msra.mxu0 %v1138
        %1156 = vmatprep.subr.mxu0 0.0
        %1157 = vmatpush1.msra.mxu0 %v1139
        %1158 = vmatprep.subr.mxu0 0.0
        %1159 = vmatpush1.msra.mxu0 0.0
        %1160 = vmatprep.subr.mxu0 0.0
        %1161 = vmatpush1.msra.mxu0 0.0
        %1162 = vmatprep.subr.mxu0 0.0
        %1163 = vmatpush1.msra.mxu0 0.0
        %1164 = vmatprep.subr.mxu0 0.0
        %1165 = vmatpush1.msra.mxu0 0.0
        %1166 = vmatprep.subr.mxu0 0.0
        %1167 = vmatpush1.msra.mxu0 0.0
        %1168 = vmatprep.subr.mxu0 0.0
        %1169 = vmatpush1.msra.mxu0 0.0
        %1170 = vmatprep.subr.mxu0 0.0
        %1171 = vmatpush1.msra.mxu0 0.0
        %1172 = vmatprep.subr.mxu0 0.0
        %1173 = vmatpush1.msra.mxu0 0.0
        %1174 = vmatprep.subr.mxu0 0.0
        %1175 = vmatpush1.msra.mxu0 0.0
        %1176 = vmatprep.subr.mxu0 0.0
        %1177 = vmatpush1.msra.mxu0 0.0
        %1178 = vmatprep.subr.mxu0 0.0
        %1179 = vmatpush1.msra.mxu0 0.0
        %1180 = vmatprep.subr.mxu0 0.0
        %1181 = vmatpush1.msra.mxu0 0.0
        %1182 = vmatprep.subr.mxu0 0.0
        %1183 = vmatpush1.msra.mxu0 0.0
        %1184 = vmatprep.subr.mxu0 0.0
        %1185 = vmatpush1.msra.mxu0 0.0
        %1186 = vmatprep.subr.mxu0 0.0
        %1187 = vmatpush1.msra.mxu0 0.0
        %1188 = vmatprep.subr.mxu0 0.0
        %1189 = vmatpush1.msra.mxu0 0.0
        %1190 = vmatprep.subr.mxu0 0.0
        %1191 = vmatpush1.msra.mxu0 0.0
        %1192 = vmatprep.subr.mxu0 0.0
        %1193 = vmatpush1.msra.mxu0 0.0
        %1194 = vmatprep.subr.mxu0 0.0
        %1195 = vmatpush1.msra.mxu0 0.0
        %1196 = vmatprep.subr.mxu0 0.0
        %1197 = vmatpush1.msra.mxu0 0.0
        %1198 = vmatprep.subr.mxu0 0.0
        %1199 = vmatpush1.msra.mxu0 0.0
        %1200 = vmatprep.subr.mxu0 0.0
        %1201 = vmatpush1.msra.mxu0 0.0
        %1202 = vmatprep.subr.mxu0 0.0
        %1203 = vmatpush1.msra.mxu0 0.0
        %1204 = vmatprep.subr.mxu0 0.0
        %1205 = vmatpush1.msra.mxu0 0.0
        %1206 = vmatprep.subr.mxu0 0.0
        %1207 = vmatpush1.msra.mxu0 0.0
        %1208 = vmatprep.subr.mxu0 0.0
        %1209 = vmatpush1.msra.mxu0 0.0
        %1210 = vmatprep.subr.mxu0 0.0
        %1211 = vmatpush1.msra.mxu0 0.0
        %1212 = vmatprep.subr.mxu0 0.0
        %1213 = vmatpush1.msra.mxu0 0.0
        %1214 = vmatprep.mubr.f32.mxu0 0.0
        %1215 = vmatmul.mubr.f32.gmra.mrb[0].mxu0 %v1148
        %v1216 = vpop.f32.mrb[0].mxu0
        %v1217 = vadd.f32 %v1145, %v1216
        %v1218 = vpop.f32.mrb[0].mxu0
        %1219 = vdwg.mxu0
        %v1220 = vmul.f32 %v1217, %v1217
        %v1221 = vmul.f32 %v1217, %v1220
        %v1222 = vmul.f32 %v1221, 0.044715
        %v1223 = vadd.f32 %v1217, %v1222
        %v1224 = vmul.f32 %v1223, 0.7978846
        %v1225 = vtanh.pop %v1224
        %v1226 = vadd.f32 %v1225, 1.0
        %v1227 = vmul.f32 %v1226, 0.5
        %v1228 = vmul.f32 %v1217, %v1227
        %v1229 = vld [vmem:[%s8] sm:$0xff]
        %v1230 = vld [vmem:[%s8 + $0x8] sm:$0xff]
        %v1231 = vld [vmem:[%s8 + $0x10] sm:$0xff]
        %v1232 = vld [vmem:[%s8 + $0x18] sm:$0xff]
        %v1233 = vld [vmem:[%s8 + $0x20] sm:$0xff]
        %v1234 = vld [vmem:[%s8 + $0x28] sm:$0xff]
        %v1235 = vld [vmem:[%s8 + $0x30] sm:$0xff]
        %v1236 = vld [vmem:[%s8 + $0x38] sm:$0xff]
        %v1237 = vlaneseq
        %v1238 = vshrl.u32 %v1237, 7
        %v1239 = vsub.s32 3, %v1238
        %v1240 = vrot.slane %v619, %v1239
        %vm1241 = vcmask 523264
        %v1243 = vsel %vm1241, %v1228, 0
        %1245 = vmatprep.subr.mxu0 0.0
        %1246 = vmatpush1.msra.mxu0 %v1229
        %1247 = vmatprep.subr.mxu0 0.0
        %1248 = vmatpush1.msra.mxu0 %v1230
        %1249 = vmatprep.subr.mxu0 0.0
        %1250 = vmatpush1.msra.mxu0 %v1231
        %1251 = vmatprep.subr.mxu0 0.0
        %1252 = vmatpush1.msra.mxu0 %v1232
        %1253 = vmatprep.subr.mxu0 0.0
        %1254 = vmatpush1.msra.mxu0 %v1233
        %1255 = vmatprep.subr.mxu0 0.0
        %1256 = vmatpush1.msra.mxu0 %v1234
        %1257 = vmatprep.subr.mxu0 0.0
        %1258 = vmatpush1.msra.mxu0 %v1235
        %1259 = vmatprep.subr.mxu0 0.0
        %1260 = vmatpush1.msra.mxu0 %v1236
        %1261 = vmatprep.subr.mxu0 0.0
        %1262 = vmatpush1.msra.mxu0 0.0
        %1263 = vmatprep.subr.mxu0 0.0
        %1264 = vmatpush1.msra.mxu0 0.0
        %1265 = vmatprep.subr.mxu0 0.0
        %1266 = vmatpush1.msra.mxu0 0.0
        %1267 = vmatprep.subr.mxu0 0.0
        %1268 = vmatpush1.msra.mxu0 0.0
        %1269 = vmatprep.subr.mxu0 0.0
        %1270 = vmatpush1.msra.mxu0 0.0
        %1271 = vmatprep.subr.mxu0 0.0
        %1272 = vmatpush1.msra.mxu0 0.0
        %1273 = vmatprep.subr.mxu0 0.0
        %1274 = vmatpush1.msra.mxu0 0.0
        %1275 = vmatprep.subr.mxu0 0.0
        %1276 = vmatpush1.msra.mxu0 0.0
        %1277 = vmatprep.subr.mxu0 0.0
        %1278 = vmatpush1.msra.mxu0 0.0
        %1279 = vmatprep.subr.mxu0 0.0
        %1280 = vmatpush1.msra.mxu0 0.0
        %1281 = vmatprep.subr.mxu0 0.0
        %1282 = vmatpush1.msra.mxu0 0.0
        %1283 = vmatprep.subr.mxu0 0.0
        %1284 = vmatpush1.msra.mxu0 0.0
        %1285 = vmatprep.subr.mxu0 0.0
        %1286 = vmatpush1.msra.mxu0 0.0
        %1287 = vmatprep.subr.mxu0 0.0
        %1288 = vmatpush1.msra.mxu0 0.0
        %1289 = vmatprep.subr.mxu0 0.0
        %1290 = vmatpush1.msra.mxu0 0.0
        %1291 = vmatprep.subr.mxu0 0.0
        %1292 = vmatpush1.msra.mxu0 0.0
        %1293 = vmatprep.subr.mxu0 0.0
        %1294 = vmatpush1.msra.mxu0 0.0
        %1295 = vmatprep.subr.mxu0 0.0
        %1296 = vmatpush1.msra.mxu0 0.0
        %1297 = vmatprep.subr.mxu0 0.0
        %1298 = vmatpush1.msra.mxu0 0.0
        %1299 = vmatprep.subr.mxu0 0.0
        %1300 = vmatpush1.msra.mxu0 0.0
        %1301 = vmatprep.subr.mxu0 0.0
        %1302 = vmatpush1.msra.mxu0 0.0
        %1303 = vmatprep.subr.mxu0 0.0
        %1304 = vmatpush1.msra.mxu0 0.0
        %1305 = vmatprep.subr.mxu0 0.0
        %1306 = vmatpush1.msra.mxu0 0.0
        %1307 = vmatprep.subr.mxu0 0.0
        %1308 = vmatpush1.msra.mxu0 0.0
        %1309 = vmatprep.mubr.f32.mxu0 0.0
        %1310 = vmatmul.mubr.f32.gmra.mrb[0].mxu0 %v1243
        %v1311 = vpop.f32.mrb[0].mxu0
        %v1312 = vadd.f32 %v1240, %v1311
        %v1313 = vpop.f32.mrb[0].mxu0
        %1314 = vdwg.mxu0
        %v1315 = vadd.f32 %v1135, %v1312
        %v1316 = vsel %vm506, %v1315, 0.0
        %1317 = vadd.xlane.f32.xlu0 %v1316
        %v1318 = vpop.xlane.xlu0 %1317
        %v1319 = vmul.f32 %v1318, %v510
        %v1320 = vsub.f32 %v1315, %v1319
        %v1321 = vmul.f32 %v1320, %v1320
        %v1322 = vsel %vm506, %v1321, 0.0
        %1323 = vadd.xlane.f32.xlu0 %v1322
        %v1324 = vpop.xlane.xlu0 %1323
        %v1325 = vmul.f32 %v1324, %v510
        %v1326 = vadd.f32 %v1325, 1e-12
        %v1327 = vrsqrt.pop %v1326
        %v1328 = vmul.f32 %v1320, %v1327
        %v1329 = vlaneseq
        %v1330 = vshrl.u32 %v1329, 7
        %v1331 = vsub.s32 4, %v1330
        %v1332 = vrot.slane %v619, %v1331
        %v1333 = vmul.f32 %v1328, %v1332
        %v1334 = vlaneseq
        %v1335 = vshrl.u32 %v1334, 7
        %v1336 = vsub.s32 5, %v1335
        %v1337 = vrot.slane %v619, %v1336
        %v1338 = vadd.f32 %v1333, %v1337
        %s1339 = scalar_lea.vmem %s2, 32
        %v1340 = vld [vmem:[%s1339] sm:$0xff]
        %v1341 = vld [vmem:[%s1339 + $0x8] sm:$0xff]
        %v1342 = vld [vmem:[%s1339 + $0x10] sm:$0xff]
        %v1343 = vld [vmem:[%s1339 + $0x18] sm:$0xff]
        %s1344 = scalar_lea.vmem [#allocation7], 1
        %v1345 = vld [vmem:[%s1344] sm:$0x1]
        %v1347 = vlaneseq
        %v1348 = vshrl.u32 %v1347, 7
        %v1349 = vsub.s32 0, %v1348
        %v1350 = vrot.slane %v1345, %v1349
        %v1353 = vsel %vm506, %v1338, 0
        %1355 = vmatprep.subr.mxu0 0.0
        %1356 = vmatpush1.msra.mxu0 %v1340
        %1357 = vmatprep.subr.mxu0 0.0
        %1358 = vmatpush1.msra.mxu0 %v1341
        %1359 = vmatprep.subr.mxu0 0.0
        %1360 = vmatpush1.msra.mxu0 %v1342
        %1361 = vmatprep.subr.mxu0 0.0
        %1362 = vmatpush1.msra.mxu0 %v1343
        %1363 = vmatprep.subr.mxu0 0.0
        %1364 = vmatpush1.msra.mxu0 0.0
        %1365 = vmatprep.subr.mxu0 0.0
        %1366 = vmatpush1.msra.mxu0 0.0
        %1367 = vmatprep.subr.mxu0 0.0
        %1368 = vmatpush1.msra.mxu0 0.0
        %1369 = vmatprep.subr.mxu0 0.0
        %1370 = vmatpush1.msra.mxu0 0.0
        %1371 = vmatprep.subr.mxu0 0.0
        %1372 = vmatpush1.msra.mxu0 0.0
        %1373 = vmatprep.subr.mxu0 0.0
        %1374 = vmatpush1.msra.mxu0 0.0
        %1375 = vmatprep.subr.mxu0 0.0
        %1376 = vmatpush1.msra.mxu0 0.0
        %1377 = vmatprep.subr.mxu0 0.0
        %1378 = vmatpush1.msra.mxu0 0.0
        %1379 = vmatprep.subr.mxu0 0.0
        %1380 = vmatpush1.msra.mxu0 0.0
        %1381 = vmatprep.subr.mxu0 0.0
        %1382 = vmatpush1.msra.mxu0 0.0
        %1383 = vmatprep.subr.mxu0 0.0
        %1384 = vmatpush1.msra.mxu0 0.0
        %1385 = vmatprep.subr.mxu0 0.0
        %1386 = vmatpush1.msra.mxu0 0.0
        %1387 = vmatprep.subr.mxu0 0.0
        %1388 = vmatpush1.msra.mxu0 0.0
        %1389 = vmatprep.subr.mxu0 0.0
        %1390 = vmatpush1.msra.mxu0 0.0
        %1391 = vmatprep.subr.mxu0 0.0
        %1392 = vmatpush1.msra.mxu0 0.0
        %1393 = vmatprep.subr.mxu0 0.0
        %1394 = vmatpush1.msra.mxu0 0.0
        %1395 = vmatprep.subr.mxu0 0.0
        %1396 = vmatpush1.msra.mxu0 0.0
        %1397 = vmatprep.subr.mxu0 0.0
        %1398 = vmatpush1.msra.mxu0 0.0
        %1399 = vmatprep.subr.mxu0 0.0
        %1400 = vmatpush1.msra.mxu0 0.0
        %1401 = vmatprep.subr.mxu0 0.0
        %1402 = vmatpush1.msra.mxu0 0.0
        %1403 = vmatprep.subr.mxu0 0.0
        %1404 = vmatpush1.msra.mxu0 0.0
        %1405 = vmatprep.subr.mxu0 0.0
        %1406 = vmatpush1.msra.mxu0 0.0
        %1407 = vmatprep.subr.mxu0 0.0
        %1408 = vmatpush1.msra.mxu0 0.0
        %1409 = vmatprep.subr.mxu0 0.0
        %1410 = vmatpush1.msra.mxu0 0.0
        %1411 = vmatprep.subr.mxu0 0.0
        %1412 = vmatpush1.msra.mxu0 0.0
        %1413 = vmatprep.subr.mxu0 0.0
        %1414 = vmatpush1.msra.mxu0 0.0
        %1415 = vmatprep.subr.mxu0 0.0
        %1416 = vmatpush1.msra.mxu0 0.0
        %1417 = vmatprep.subr.mxu0 0.0
        %1418 = vmatpush1.msra.mxu0 0.0
        %1419 = vmatprep.mubr.f32.mxu0 0.0
        %1420 = vmatmul.mubr.f32.gmra.mrb[0].mxu0 %v1353
        %v1421 = vpop.f32.mrb[0].mxu0
        %v1422 = vadd.f32 %v1350, %v1421
        %v1423 = vpop.f32.mrb[0].mxu0
        %1424 = vdwg.mxu0
        %s1425 = scalar_lea.vmem %s4, 32
        %v1426 = vld [vmem:[%s1425] sm:$0xff]
        %v1427 = vld [vmem:[%s1425 + $0x8] sm:$0xff]
        %v1428 = vld [vmem:[%s1425 + $0x10] sm:$0xff]
        %v1429 = vld [vmem:[%s1425 + $0x18] sm:$0xff]
        %s1430 = scalar_lea.vmem %s5, 8
        %v1431 = vld [vmem:[%s1430] sm:$0x3f]
        %1433 = vrot.lane.b32.xlu0 %v1422, 96
        %v1434 = vpop.permute.xlu0 %1433
        %v1435 = vsel %vm623, %v1422, 0
        %v1437 = vsel %vm623, %v1434, 0
        %1439 = vmatprep.subr.mxu0 0.0
        %1440 = vmatpush1.xpose.msra.mxu0 %v1437
        %1441 = vmatprep.subr.mxu0 0.0
        %1442 = vmatpush1.xpose.msra.mxu0 0.0
        %1443 = vmatprep.subr.mxu0 0.0
        %1444 = vmatpush1.xpose.msra.mxu0 0.0
        %1445 = vmatprep.subr.mxu0 0.0
        %1446 = vmatpush1.xpose.msra.mxu0 0.0
        %1447 = vmatprep.subr.mxu0 0.0
        %1448 = vmatpush1.xpose.msra.mxu0 0.0
        %1449 = vmatprep.subr.mxu0 0.0
        %1450 = vmatpush1.xpose.msra.mxu0 0.0
        %1451 = vmatprep.subr.mxu0 0.0
        %1452 = vmatpush1.xpose.msra.mxu0 0.0
        %1453 = vmatprep.subr.mxu0 0.0
        %1454 = vmatpush1.xpose.msra.mxu0 0.0
        %1455 = vmatprep.subr.mxu0 0.0
        %1456 = vmatpush1.xpose.msra.mxu0 0.0
        %1457 = vmatprep.subr.mxu0 0.0
        %1458 = vmatpush1.xpose.msra.mxu0 0.0
        %1459 = vmatprep.subr.mxu0 0.0
        %1460 = vmatpush1.xpose.msra.mxu0 0.0
        %1461 = vmatprep.subr.mxu0 0.0
        %1462 = vmatpush1.xpose.msra.mxu0 0.0
        %1463 = vmatprep.subr.mxu0 0.0
        %1464 = vmatpush1.xpose.msra.mxu0 0.0
        %1465 = vmatprep.subr.mxu0 0.0
        %1466 = vmatpush1.xpose.msra.mxu0 0.0
        %1467 = vmatprep.subr.mxu0 0.0
        %1468 = vmatpush1.xpose.msra.mxu0 0.0
        %1469 = vmatprep.subr.mxu0 0.0
        %1470 = vmatpush1.xpose.msra.mxu0 0.0
        %1471 = vmatprep.subr.mxu0 0.0
        %1472 = vmatpush1.xpose.msra.mxu0 0.0
        %1473 = vmatprep.subr.mxu0 0.0
        %1474 = vmatpush1.xpose.msra.mxu0 0.0
        %1475 = vmatprep.subr.mxu0 0.0
        %1476 = vmatpush1.xpose.msra.mxu0 0.0
        %1477 = vmatprep.subr.mxu0 0.0
        %1478 = vmatpush1.xpose.msra.mxu0 0.0
        %1479 = vmatprep.subr.mxu0 0.0
        %1480 = vmatpush1.xpose.msra.mxu0 0.0
        %1481 = vmatprep.subr.mxu0 0.0
        %1482 = vmatpush1.xpose.msra.mxu0 0.0
        %1483 = vmatprep.subr.mxu0 0.0
        %1484 = vmatpush1.xpose.msra.mxu0 0.0
        %1485 = vmatprep.subr.mxu0 0.0
        %1486 = vmatpush1.xpose.msra.mxu0 0.0
        %1487 = vmatprep.subr.mxu0 0.0
        %1488 = vmatpush1.xpose.msra.mxu0 0.0
        %1489 = vmatprep.subr.mxu0 0.0
        %1490 = vmatpush1.xpose.msra.mxu0 0.0
        %1491 = vmatprep.subr.mxu0 0.0
        %1492 = vmatpush1.xpose.msra.mxu0 0.0
        %1493 = vmatprep.subr.mxu0 0.0
        %1494 = vmatpush1.xpose.msra.mxu0 0.0
        %1495 = vmatprep.subr.mxu0 0.0
        %1496 = vmatpush1.xpose.msra.mxu0 0.0
        %1497 = vmatprep.subr.mxu0 0.0
        %1498 = vmatpush1.xpose.msra.mxu0 0.0
        %1499 = vmatprep.subr.mxu0 0.0
        %1500 = vmatpush1.xpose.msra.mxu0 0.0
        %1501 = vmatprep.subr.mxu0 0.0
        %1502 = vmatpush1.xpose.msra.mxu0 0.0
        %1503 = vmatprep.mubr.f32.mxu0 0.0
        %1504 = vmatmul.mubr.f32.gmra.mrb[0].mxu0 %v1435
        %v1505 = vpop.f32.mrb[0].mxu0
        %v1506 = vadd.f32 0.0, %v1505
        %v1507 = vpop.f32.mrb[0].mxu0
        %1508 = vdwg.mxu0
        %v1509 = vmul.f32 %v1506, 0.25
        %v1510 = vadd.f32 %v1509, %v703
        %v1511 = vsel %vm706, %v1510, -inf
        %1512 = vmax.xlane.f32.xlu0 %v1511
        %v1513 = vpop.xlane.xlu0 %1512
        %v1514 = vsub.f32 %v1510, %v1513
        %v1515 = vmul.f32 %v1514, 1.442695
        %v1516 = vpow.pop %v1515
        %v1517 = vsel %vm706, %v1516, 0.0
        %1518 = vadd.xlane.f32.xlu0 %v1517
        %v1519 = vpop.xlane.xlu0 %1518
        %v1520 = vrcp.pop %v1519
        %v1521 = vmul.f32 %v1516, %v1520
        %1522 = vrot.lane.b32.xlu0 %v1422, 64
        %v1523 = vpop.permute.xlu0 %1522
        %v1526 = vsel %vm706, %v1521, 0
        %1528 = vmatprep.subr.mxu0 0.0
        %1529 = vmatpush1.msra.mxu0 %v1523
        %1530 = vmatprep.subr.mxu0 0.0
        %1531 = vmatpush1.msra.mxu0 0.0
        %1532 = vmatprep.subr.mxu0 0.0
        %1533 = vmatpush1.msra.mxu0 0.0
        %1534 = vmatprep.subr.mxu0 0.0
        %1535 = vmatpush1.msra.mxu0 0.0
        %1536 = vmatprep.subr.mxu0 0.0
        %1537 = vmatpush1.msra.mxu0 0.0
        %1538 = vmatprep.subr.mxu0 0.0
        %1539 = vmatpush1.msra.mxu0 0.0
        %1540 = vmatprep.subr.mxu0 0.0
        %1541 = vmatpush1.msra.mxu0 0.0
        %1542 = vmatprep.subr.mxu0 0.0
        %1543 = vmatpush1.msra.mxu0 0.0
        %1544 = vmatprep.subr.mxu0 0.0
        %1545 = vmatpush1.msra.mxu0 0.0
        %1546 = vmatprep.subr.mxu0 0.0
        %1547 = vmatpush1.msra.mxu0 0.0
        %1548 = vmatprep.subr.mxu0 0.0
        %1549 = vmatpush1.msra.mxu0 0.0
        %1550 = vmatprep.subr.mxu0 0.0
        %1551 = vmatpush1.msra.mxu0 0.0
        %1552 = vmatprep.subr.mxu0 0.0
        %1553 = vmatpush1.msra.mxu0 0.0
        %1554 = vmatprep.subr.mxu0 0.0
        %1555 = vmatpush1.msra.mxu0 0.0
        %1556 = vmatprep.subr.mxu0 0.0
        %1557 = vmatpush1.msra.mxu0 0.0
        %1558 = vmatprep.subr.mxu0 0.0
        %1559 = vmatpush1.msra.mxu0 0.0
        %1560 = vmatprep.subr.mxu0 0.0
        %1561 = vmatpush1.msra.mxu0 0.0
        %1562 = vmatprep.subr.mxu0 0.0
        %1563 = vmatpush1.msra.mxu0 0.0
        %1564 = vmatprep.subr.mxu0 0.0
        %1565 = vmatpush1.msra.mxu0 0.0
        %1566 = vmatprep.subr.mxu0 0.0
        %1567 = vmatpush1.msra.mxu0 0.0
        %1568 = vmatprep.subr.mxu0 0.0
        %1569 = vmatpush1.msra.mxu0 0.0
        %1570 = vmatprep.subr.mxu0 0.0
        %1571 = vmatpush1.msra.mxu0 0.0
        %1572 = vmatprep.subr.mxu0 0.0
        %1573 = vmatpush1.msra.mxu0 0.0
        %1574 = vmatprep.subr.mxu0 0.0
        %1575 = vmatpush1.msra.mxu0 0.0
        %1576 = vmatprep.subr.mxu0 0.0
        %1577 = vmatpush1.msra.mxu0 0.0
        %1578 = vmatprep.subr.mxu0 0.0
        %1579 = vmatpush1.msra.mxu0 0.0
        %1580 = vmatprep.subr.mxu0 0.0
        %1581 = vmatpush1.msra.mxu0 0.0
        %1582 = vmatprep.subr.mxu0 0.0
        %1583 = vmatpush1.msra.mxu0 0.0
        %1584 = vmatprep.subr.mxu0 0.0
        %1585 = vmatpush1.msra.mxu0 0.0
        %1586 = vmatprep.subr.mxu0 0.0
        %1587 = vmatpush1.msra.mxu0 0.0
        %1588 = vmatprep.subr.mxu0 0.0
        %1589 = vmatpush1.msra.mxu0 0.0
        %1590 = vmatprep.subr.mxu0 0.0
        %1591 = vmatpush1.msra.mxu0 0.0
        %1592 = vmatprep.mubr.f32.mxu0 0.0
        %1593 = vmatmul.mubr.f32.gmra.mrb[0].mxu0 %v1526
        %v1594 = vpop.f32.mrb[0].mxu0
        %v1595 = vadd.f32 0.0, %v1594
        %v1596 = vpop.f32.mrb[0].mxu0
        %1597 = vdwg.mxu0
        %1598 = vrot.lane.b32.xlu0 %v1422, 112
        %v1599 = vpop.permute.xlu0 %1598
        %1600 = vrot.lane.b32.xlu0 %v1422, 80
        %v1601 = vpop.permute.xlu0 %1600
        %v1602 = vsel %vm623, %v1599, 0
        %v1604 = vsel %vm623, %v1601, 0
        %1606 = vmatprep.subr.mxu0 0.0
        %1607 = vmatpush1.xpose.msra.mxu0 %v1604
        %1608 = vmatprep.subr.mxu0 0.0
        %1609 = vmatpush1.xpose.msra.mxu0 0.0
        %1610 = vmatprep.subr.mxu0 0.0
        %1611 = vmatpush1.xpose.msra.mxu0 0.0
        %1612 = vmatprep.subr.mxu0 0.0
        %1613 = vmatpush1.xpose.msra.mxu0 0.0
        %1614 = vmatprep.subr.mxu0 0.0
        %1615 = vmatpush1.xpose.msra.mxu0 0.0
        %1616 = vmatprep.subr.mxu0 0.0
        %1617 = vmatpush1.xpose.msra.mxu0 0.0
        %1618 = vmatprep.subr.mxu0 0.0
        %1619 = vmatpush1.xpose.msra.mxu0 0.0
        %1620 = vmatprep.subr.mxu0 0.0
        %1621 = vmatpush1.xpose.msra.mxu0 0.0
        %1622 = vmatprep.subr.mxu0 0.0
        %1623 = vmatpush1.xpose.msra.mxu0 0.0
        %1624 = vmatprep.subr.mxu0 0.0
        %1625 = vmatpush1.xpose.msra.mxu0 0.0
        %1626 = vmatprep.subr.mxu0 0.0
        %1627 = vmatpush1.xpose.msra.mxu0 0.0
        %1628 = vmatprep.subr.mxu0 0.0
        %1629 = vmatpush1.xpose.msra.mxu0 0.0
        %1630 = vmatprep.subr.mxu0 0.0
        %1631 = vmatpush1.xpose.msra.mxu0 0.0
        %1632 = vmatprep.subr.mxu0 0.0
        %1633 = vmatpush1.xpose.msra.mxu0 0.0
        %1634 = vmatprep.subr.mxu0 0.0
        %1635 = vmatpush1.xpose.msra.mxu0 0.0
        %1636 = vmatprep.subr.mxu0 0.0
        %1637 = vmatpush1.xpose.msra.mxu0 0.0
        %1638 = vmatprep.subr.mxu0 0.0
        %1639 = vmatpush1.xpose.msra.mxu0 0.0
        %1640 = vmatprep.subr.mxu0 0.0
        %1641 = vmatpush1.xpose.msra.mxu0 0.0
        %1642 = vmatprep.subr.mxu0 0.0
        %1643 = vmatpush1.xpose.msra.mxu0 0.0
        %1644 = vmatprep.subr.mxu0 0.0
        %1645 = vmatpush1.xpose.msra.mxu0 0.0
        %1646 = vmatprep.subr.mxu0 0.0
        %1647 = vmatpush1.xpose.msra.mxu0 0.0
        %1648 = vmatprep.subr.mxu0 0.0
        %1649 = vmatpush1.xpose.msra.mxu0 0.0
        %1650 = vmatprep.subr.mxu0 0.0
        %1651 = vmatpush1.xpose.msra.mxu0 0.0
        %1652 = vmatprep.subr.mxu0 0.0
        %1653 = vmatpush1.xpose.msra.mxu0 0.0
        %1654 = vmatprep.subr.mxu0 0.0
        %1655 = vmatpush1.xpose.msra.mxu0 0.0
        %1656 = vmatprep.subr.mxu0 0.0
        %1657 = vmatpush1.xpose.msra.mxu0 0.0
        %1658 = vmatprep.subr.mxu0 0.0
        %1659 = vmatpush1.xpose.msra.mxu0 0.0
        %1660 = vmatprep.subr.mxu0 0.0
        %1661 = vmatpush1.xpose.msra.mxu0 0.0
        %1662 = vmatprep.subr.mxu0 0.0
        %1663 = vmatpush1.xpose.msra.mxu0 0.0
        %1664 = vmatprep.subr.mxu0 0.0
        %1665 = vmatpush1.xpose.msra.mxu0 0.0
        %1666 = vmatprep.subr.mxu0 0.0
        %1667 = vmatpush1.xpose.msra.mxu0 0.0
        %1668 = vmatprep.subr.mxu0 0.0
        %1669 = vmatpush1.xpose.msra.mxu0 0.0
        %1670 = vmatprep.mubr.f32.mxu0 0.0
        %1671 = vmatmul.mubr.f32.gmra.mrb[0].mxu0 %v1602
        %v1672 = vpop.f32.mrb[0].mxu0
        %v1673 = vadd.f32 0.0, %v1672
        %v1674 = vpop.f32.mrb[0].mxu0
        %1675 = vdwg.mxu0
        %v1676 = vmul.f32 %v1673, 0.25
        %v1677 = vadd.f32 %v1676, %v703
        %v1678 = vsel %vm706, %v1677, -inf
        %1679 = vmax.xlane.f32.xlu0 %v1678
        %v1680 = vpop.xlane.xlu0 %1679
        %v1681 = vsub.f32 %v1677, %v1680
        %v1682 = vmul.f32 %v1681, 1.442695
        %v1683 = vpow.pop %v1682
        %v1684 = vsel %vm706, %v1683, 0.0
        %1685 = vadd.xlane.f32.xlu0 %v1684
        %v1686 = vpop.xlane.xlu0 %1685
        %v1687 = vrcp.pop %v1686
        %v1688 = vmul.f32 %v1683, %v1687
        %1689 = vrot.lane.b32.xlu0 %v1422, 48
        %v1690 = vpop.permute.xlu0 %1689
        %v1693 = vsel %vm706, %v1688, 0
        %1695 = vmatprep.subr.mxu0 0.0
        %1696 = vmatpush1.msra.mxu0 %v1690
        %1697 = vmatprep.subr.mxu0 0.0
        %1698 = vmatpush1.msra.mxu0 0.0
        %1699 = vmatprep.subr.mxu0 0.0
        %1700 = vmatpush1.msra.mxu0 0.0
        %1701 = vmatprep.subr.mxu0 0.0
        %1702 = vmatpush1.msra.mxu0 0.0
        %1703 = vmatprep.subr.mxu0 0.0
        %1704 = vmatpush1.msra.mxu0 0.0
        %1705 = vmatprep.subr.mxu0 0.0
        %1706 = vmatpush1.msra.mxu0 0.0
        %1707 = vmatprep.subr.mxu0 0.0
        %1708 = vmatpush1.msra.mxu0 0.0
        %1709 = vmatprep.subr.mxu0 0.0
        %1710 = vmatpush1.msra.mxu0 0.0
        %1711 = vmatprep.subr.mxu0 0.0
        %1712 = vmatpush1.msra.mxu0 0.0
        %1713 = vmatprep.subr.mxu0 0.0
        %1714 = vmatpush1.msra.mxu0 0.0
        %1715 = vmatprep.subr.mxu0 0.0
        %1716 = vmatpush1.msra.mxu0 0.0
        %1717 = vmatprep.subr.mxu0 0.0
        %1718 = vmatpush1.msra.mxu0 0.0
        %1719 = vmatprep.subr.mxu0 0.0
        %1720 = vmatpush1.msra.mxu0 0.0
        %1721 = vmatprep.subr.mxu0 0.0
        %1722 = vmatpush1.msra.mxu0 0.0
        %1723 = vmatprep.subr.mxu0 0.0
        %1724 = vmatpush1.msra.mxu0 0.0
        %1725 = vmatprep.subr.mxu0 0.0
        %1726 = vmatpush1.msra.mxu0 0.0
        %1727 = vmatprep.subr.mxu0 0.0
        %1728 = vmatpush1.msra.mxu0 0.0
        %1729 = vmatprep.subr.mxu0 0.0
        %1730 = vmatpush1.msra.mxu0 0.0
        %1731 = vmatprep.subr.mxu0 0.0
        %1732 = vmatpush1.msra.mxu0 0.0
        %1733 = vmatprep.subr.mxu0 0.0
        %1734 = vmatpush1.msra.mxu0 0.0
        %1735 = vmatprep.subr.mxu0 0.0
        %1736 = vmatpush1.msra.mxu0 0.0
        %1737 = vmatprep.subr.mxu0 0.0
        %1738 = vmatpush1.msra.mxu0 0.0
        %1739 = vmatprep.subr.mxu0 0.0
        %1740 = vmatpush1.msra.mxu0 0.0
        %1741 = vmatprep.subr.mxu0 0.0
        %1742 = vmatpush1.msra.mxu0 0.0
        %1743 = vmatprep.subr.mxu0 0.0
        %1744 = vmatpush1.msra.mxu0 0.0
        %1745 = vmatprep.subr.mxu0 0.0
        %1746 = vmatpush1.msra.mxu0 0.0
        %1747 = vmatprep.subr.mxu0 0.0
        %1748 = vmatpush1.msra.mxu0 0.0
        %1749 = vmatprep.subr.mxu0 0.0
        %1750 = vmatpush1.msra.mxu0 0.0
        %1751 = vmatprep.subr.mxu0 0.0
        %1752 = vmatpush1.msra.mxu0 0.0
        %1753 = vmatprep.subr.mxu0 0.0
        %1754 = vmatpush1.msra.mxu0 0.0
        %1755 = vmatprep.subr.mxu0 0.0
        %1756 = vmatpush1.msra.mxu0 0.0
        %1757 = vmatprep.subr.mxu0 0.0
        %1758 = vmatpush1.msra.mxu0 0.0
        %1759 = vmatprep.mubr.f32.mxu0 0.0
        %1760 = vmatmul.mubr.f32.gmra.mrb[0].mxu0 %v1693
        %v1761 = vpop.f32.mrb[0].mxu0
        %v1762 = vadd.f32 0.0, %v1761
        %v1763 = vpop.f32.mrb[0].mxu0
        %1764 = vdwg.mxu0
        %v1766 = vsel %vm623, %v1762, 0
        %1768 = vmatprep.subr.mxu0 0.0
        %1769 = vmatpush1.msra.mxu0 %v1428
        %1770 = vmatprep.subr.mxu0 0.0
        %1771 = vmatpush1.msra.mxu0 %v1429
        %1772 = vmatprep.subr.mxu0 0.0
        %1773 = vmatpush1.msra.mxu0 0.0
        %1774 = vmatprep.subr.mxu0 0.0
        %1775 = vmatpush1.msra.mxu0 0.0
        %1776 = vmatprep.subr.mxu0 0.0
        %1777 = vmatpush1.msra.mxu0 0.0
        %1778 = vmatprep.subr.mxu0 0.0
        %1779 = vmatpush1.msra.mxu0 0.0
        %1780 = vmatprep.subr.mxu0 0.0
        %1781 = vmatpush1.msra.mxu0 0.0
        %1782 = vmatprep.subr.mxu0 0.0
        %1783 = vmatpush1.msra.mxu0 0.0
        %1784 = vmatprep.subr.mxu0 0.0
        %1785 = vmatpush1.msra.mxu0 0.0
        %1786 = vmatprep.subr.mxu0 0.0
        %1787 = vmatpush1.msra.mxu0 0.0
        %1788 = vmatprep.subr.mxu0 0.0
        %1789 = vmatpush1.msra.mxu0 0.0
        %1790 = vmatprep.subr.mxu0 0.0
        %1791 = vmatpush1.msra.mxu0 0.0
        %1792 = vmatprep.subr.mxu0 0.0
        %1793 = vmatpush1.msra.mxu0 0.0
        %1794 = vmatprep.subr.mxu0 0.0
        %1795 = vmatpush1.msra.mxu0 0.0
        %1796 = vmatprep.subr.mxu0 0.0
        %1797 = vmatpush1.msra.mxu0 0.0
        %1798 = vmatprep.subr.mxu0 0.0
        %1799 = vmatpush1.msra.mxu0 0.0
        %1800 = vmatprep.subr.mxu0 0.0
        %1801 = vmatpush1.msra.mxu0 0.0
        %1802 = vmatprep.subr.mxu0 0.0
        %1803 = vmatpush1.msra.mxu0 0.0
        %1804 = vmatprep.subr.mxu0 0.0
        %1805 = vmatpush1.msra.mxu0 0.0
        %1806 = vmatprep.subr.mxu0 0.0
        %1807 = vmatpush1.msra.mxu0 0.0
        %1808 = vmatprep.subr.mxu0 0.0
        %1809 = vmatpush1.msra.mxu0 0.0
        %1810 = vmatprep.subr.mxu0 0.0
        %1811 = vmatpush1.msra.mxu0 0.0
        %1812 = vmatprep.subr.mxu0 0.0
        %1813 = vmatpush1.msra.mxu0 0.0
        %1814 = vmatprep.subr.mxu0 0.0
        %1815 = vmatpush1.msra.mxu0 0.0
        %1816 = vmatprep.subr.mxu0 0.0
        %1817 = vmatpush1.msra.mxu0 0.0
        %1818 = vmatprep.subr.mxu0 0.0
        %1819 = vmatpush1.msra.mxu0 0.0
        %1820 = vmatprep.subr.mxu0 0.0
        %1821 = vmatpush1.msra.mxu0 0.0
        %1822 = vmatprep.subr.mxu0 0.0
        %1823 = vmatpush1.msra.mxu0 0.0
        %1824 = vmatprep.subr.mxu0 0.0
        %1825 = vmatpush1.msra.mxu0 0.0
        %1826 = vmatprep.subr.mxu0 0.0
        %1827 = vmatpush1.msra.mxu0 0.0
        %1828 = vmatprep.subr.mxu0 0.0
        %1829 = vmatpush1.msra.mxu0 0.0
        %1830 = vmatprep.subr.mxu0 0.0
        %1831 = vmatpush1.msra.mxu0 0.0
        %1832 = vmatprep.mubr.f32.mxu0 0.0
        %1833 = vmatmul.mubr.f32.gmra.mrb[0].mxu0 %v1766
        %v1834 = vpop.f32.mrb[0].mxu0
        %v1835 = vadd.f32 0.0, %v1834
        %v1836 = vpop.f32.mrb[0].mxu0
        %1837 = vdwg.mxu0
        %v1839 = vsel %vm623, %v1595, 0
        %1841 = vmatprep.subr.mxu0 0.0
        %1842 = vmatpush1.msra.mxu0 %v1426
        %1843 = vmatprep.subr.mxu0 0.0
        %1844 = vmatpush1.msra.mxu0 %v1427
        %1845 = vmatprep.subr.mxu0 0.0
        %1846 = vmatpush1.msra.mxu0 0.0
        %1847 = vmatprep.subr.mxu0 0.0
        %1848 = vmatpush1.msra.mxu0 0.0
        %1849 = vmatprep.subr.mxu0 0.0
        %1850 = vmatpush1.msra.mxu0 0.0
        %1851 = vmatprep.subr.mxu0 0.0
        %1852 = vmatpush1.msra.mxu0 0.0
        %1853 = vmatprep.subr.mxu0 0.0
        %1854 = vmatpush1.msra.mxu0 0.0
        %1855 = vmatprep.subr.mxu0 0.0
        %1856 = vmatpush1.msra.mxu0 0.0
        %1857 = vmatprep.subr.mxu0 0.0
        %1858 = vmatpush1.msra.mxu0 0.0
        %1859 = vmatprep.subr.mxu0 0.0
        %1860 = vmatpush1.msra.mxu0 0.0
        %1861 = vmatprep.subr.mxu0 0.0
        %1862 = vmatpush1.msra.mxu0 0.0
        %1863 = vmatprep.subr.mxu0 0.0
        %1864 = vmatpush1.msra.mxu0 0.0
        %1865 = vmatprep.subr.mxu0 0.0
        %1866 = vmatpush1.msra.mxu0 0.0
        %1867 = vmatprep.subr.mxu0 0.0
        %1868 = vmatpush1.msra.mxu0 0.0
        %1869 = vmatprep.subr.mxu0 0.0
        %1870 = vmatpush1.msra.mxu0 0.0
        %1871 = vmatprep.subr.mxu0 0.0
        %1872 = vmatpush1.msra.mxu0 0.0
        %1873 = vmatprep.subr.mxu0 0.0
        %1874 = vmatpush1.msra.mxu0 0.0
        %1875 = vmatprep.subr.mxu0 0.0
        %1876 = vmatpush1.msra.mxu0 0.0
        %1877 = vmatprep.subr.mxu0 0.0
        %1878 = vmatpush1.msra.mxu0 0.0
        %1879 = vmatprep.subr.mxu0 0.0
        %1880 = vmatpush1.msra.mxu0 0.0
        %1881 = vmatprep.subr.mxu0 0.0
        %1882 = vmatpush1.msra.mxu0 0.0
        %1883 = vmatprep.subr.mxu0 0.0
        %1884 = vmatpush1.msra.mxu0 0.0
        %1885 = vmatprep.subr.mxu0 0.0
        %1886 = vmatpush1.msra.mxu0 0.0
        %1887 = vmatprep.subr.mxu0 0.0
        %1888 = vmatpush1.msra.mxu0 0.0
        %1889 = vmatprep.subr.mxu0 0.0
        %1890 = vmatpush1.msra.mxu0 0.0
        %1891 = vmatprep.subr.mxu0 0.0
        %1892 = vmatpush1.msra.mxu0 0.0
        %1893 = vmatprep.subr.mxu0 0.0
        %1894 = vmatpush1.msra.mxu0 0.0
        %1895 = vmatprep.subr.mxu0 0.0
        %1896 = vmatpush1.msra.mxu0 0.0
        %1897 = vmatprep.subr.mxu0 0.0
        %1898 = vmatpush1.msra.mxu0 0.0
        %1899 = vmatprep.subr.mxu0 0.0
        %1900 = vmatpush1.msra.mxu0 0.0
        %1901 = vmatprep.subr.mxu0 0.0
        %1902 = vmatpush1.msra.mxu0 0.0
        %1903 = vmatprep.subr.mxu0 0.0
        %1904 = vmatpush1.msra.mxu0 0.0
        %1905 = vmatprep.mubr.f32.mxu0 0.0
        %1906 = vmatmul.mubr.f32.gmra.mrb[0].mxu0 %v1839
        %v1907 = vpop.f32.mrb[0].mxu0
        %v1908 = vadd.f32 %v1835, %v1907
        %v1909 = vpop.f32.mrb[0].mxu0
        %1910 = vdwg.mxu0
        %v1911 = vadd.f32 %v1338, %v1908
        %v1912 = vlaneseq
        %v1913 = vshrl.u32 %v1912, 7
        %v1914 = vsub.s32 0, %v1913
        %v1915 = vrot.slane %v1431, %v1914
        %v1916 = vadd.f32 %v1911, %v1915
        %v1917 = vsel %vm506, %v1916, 0.0
        %1918 = vadd.xlane.f32.xlu0 %v1917
        %v1919 = vpop.xlane.xlu0 %1918
        %v1920 = vmul.f32 %v1919, %v510
        %v1921 = vsub.f32 %v1916, %v1920
        %v1922 = vmul.f32 %v1921, %v1921
        %v1923 = vsel %vm506, %v1922, 0.0
        %1924 = vadd.xlane.f32.xlu0 %v1923
        %v1925 = vpop.xlane.xlu0 %1924
        %v1926 = vmul.f32 %v1925, %v510
        %v1927 = vadd.f32 %v1926, 1e-12
        %v1928 = vrsqrt.pop %v1927
        %v1929 = vmul.f32 %v1921, %v1928
        %v1930 = vlaneseq
        %v1931 = vshrl.u32 %v1930, 7
        %v1932 = vsub.s32 1, %v1931
        %v1933 = vrot.slane %v1431, %v1932
        %v1934 = vmul.f32 %v1929, %v1933
        %v1935 = vlaneseq
        %v1936 = vshrl.u32 %v1935, 7
        %v1937 = vsub.s32 2, %v1936
        %v1938 = vrot.slane %v1431, %v1937
        %v1939 = vadd.f32 %v1934, %v1938
        %s1940 = scalar_lea.vmem %s6, 32
        %v1941 = vld [vmem:[%s1940] sm:$0xff]
        %v1942 = vld [vmem:[%s1940 + $0x8] sm:$0xff]
        %v1943 = vld [vmem:[%s1940 + $0x10] sm:$0xff]
        %v1944 = vld [vmem:[%s1940 + $0x18] sm:$0xff]
        %s1945 = scalar_lea.vmem [#allocation8], 1
        %v1946 = vld [vmem:[%s1945] sm:$0x1]
        %v1948 = vlaneseq
        %v1949 = vshrl.u32 %v1948, 7
        %v1950 = vsub.s32 0, %v1949
        %v1951 = vrot.slane %v1946, %v1950
        %v1954 = vsel %vm506, %v1939, 0
        %1956 = vmatprep.subr.mxu0 0.0
        %1957 = vmatpush1.msra.mxu0 %v1941
        %1958 = vmatprep.subr.mxu0 0.0
        %1959 = vmatpush1.msra.mxu0 %v1942
        %1960 = vmatprep.subr.mxu0 0.0
        %1961 = vmatpush1.msra.mxu0 %v1943
        %1962 = vmatprep.subr.mxu0 0.0
        %1963 = vmatpush1.msra.mxu0 %v1944
        %1964 = vmatprep.subr.mxu0 0.0
        %1965 = vmatpush1.msra.mxu0 0.0
        %1966 = vmatprep.subr.mxu0 0.0
        %1967 = vmatpush1.msra.mxu0 0.0
        %1968 = vmatprep.subr.mxu0 0.0
        %1969 = vmatpush1.msra.mxu0 0.0
        %1970 = vmatprep.subr.mxu0 0.0
        %1971 = vmatpush1.msra.mxu0 0.0
        %1972 = vmatprep.subr.mxu0 0.0
        %1973 = vmatpush1.msra.mxu0 0.0
        %1974 = vmatprep.subr.mxu0 0.0
        %1975 = vmatpush1.msra.mxu0 0.0
        %1976 = vmatprep.subr.mxu0 0.0
        %1977 = vmatpush1.msra.mxu0 0.0
        %1978 = vmatprep.subr.mxu0 0.0
        %1979 = vmatpush1.msra.mxu0 0.0
        %1980 = vmatprep.subr.mxu0 0.0
        %1981 = vmatpush1.msra.mxu0 0.0
        %1982 = vmatprep.subr.mxu0 0.0
        %1983 = vmatpush1.msra.mxu0 0.0
        %1984 = vmatprep.subr.mxu0 0.0
        %1985 = vmatpush1.msra.mxu0 0.0
        %1986 = vmatprep.subr.mxu0 0.0
        %1987 = vmatpush1.msra.mxu0 0.0
        %1988 = vmatprep.subr.mxu0 0.0
        %1989 = vmatpush1.msra.mxu0 0.0
        %1990 = vmatprep.subr.mxu0 0.0
        %1991 = vmatpush1.msra.mxu0 0.0
        %1992 = vmatprep.subr.mxu0 0.0
        %1993 = vmatpush1.msra.mxu0 0.0
        %1994 = vmatprep.subr.mxu0 0.0
        %1995 = vmatpush1.msra.mxu0 0.0
        %1996 = vmatprep.subr.mxu0 0.0
        %1997 = vmatpush1.msra.mxu0 0.0
        %1998 = vmatprep.subr.mxu0 0.0
        %1999 = vmatpush1.msra.mxu0 0.0
        %2000 = vmatprep.subr.mxu0 0.0
        %2001 = vmatpush1.msra.mxu0 0.0
        %2002 = vmatprep.subr.mxu0 0.0
        %2003 = vmatpush1.msra.mxu0 0.0
        %2004 = vmatprep.subr.mxu0 0.0
        %2005 = vmatpush1.msra.mxu0 0.0
        %2006 = vmatprep.subr.mxu0 0.0
        %2007 = vmatpush1.msra.mxu0 0.0
        %2008 = vmatprep.subr.mxu0 0.0
        %2009 = vmatpush1.msra.mxu0 0.0
        %2010 = vmatprep.subr.mxu0 0.0
        %2011 = vmatpush1.msra.mxu0 0.0
        %2012 = vmatprep.subr.mxu0 0.0
        %2013 = vmatpush1.msra.mxu0 0.0
        %2014 = vmatprep.subr.mxu0 0.0
        %2015 = vmatpush1.msra.mxu0 0.0
        %2016 = vmatprep.subr.mxu0 0.0
        %2017 = vmatpush1.msra.mxu0 0.0
        %2018 = vmatprep.subr.mxu0 0.0
        %2019 = vmatpush1.msra.mxu0 0.0
        %2020 = vmatprep.mubr.f32.mxu0 0.0
        %2021 = vmatmul.mubr.f32.gmra.mrb[0].mxu0 %v1954
        %v2022 = vpop.f32.mrb[0].mxu0
        %v2023 = vadd.f32 %v1951, %v2022
        %v2024 = vpop.f32.mrb[0].mxu0
        %2025 = vdwg.mxu0
        %v2026 = vmul.f32 %v2023, %v2023
        %v2027 = vmul.f32 %v2023, %v2026
        %v2028 = vmul.f32 %v2027, 0.044715
        %v2029 = vadd.f32 %v2023, %v2028
        %v2030 = vmul.f32 %v2029, 0.7978846
        %v2031 = vtanh.pop %v2030
        %v2032 = vadd.f32 %v2031, 1.0
        %v2033 = vmul.f32 %v2032, 0.5
        %v2034 = vmul.f32 %v2023, %v2033
        %s2035 = scalar_lea.vmem %s8, 64
        %v2036 = vld [vmem:[%s2035] sm:$0xff]
        %v2037 = vld [vmem:[%s2035 + $0x8] sm:$0xff]
        %v2038 = vld [vmem:[%s2035 + $0x10] sm:$0xff]
        %v2039 = vld [vmem:[%s2035 + $0x18] sm:$0xff]
        %v2040 = vld [vmem:[%s2035 + $0x20] sm:$0xff]
        %v2041 = vld [vmem:[%s2035 + $0x28] sm:$0xff]
        %v2042 = vld [vmem:[%s2035 + $0x30] sm:$0xff]
        %v2043 = vld [vmem:[%s2035 + $0x38] sm:$0xff]
        %v2044 = vlaneseq
        %v2045 = vshrl.u32 %v2044, 7
        %v2046 = vsub.s32 3, %v2045
        %v2047 = vrot.slane %v1431, %v2046
        %v2049 = vsel %vm1241, %v2034, 0
        %2051 = vmatprep.subr.mxu0 0.0
        %2052 = vmatpush1.msra.mxu0 %v2036
        %2053 = vmatprep.subr.mxu0 0.0
        %2054 = vmatpush1.msra.mxu0 %v2037
        %2055 = vmatprep.subr.mxu0 0.0
        %2056 = vmatpush1.msra.mxu0 %v2038
        %2057 = vmatprep.subr.mxu0 0.0
        %2058 = vmatpush1.msra.mxu0 %v2039
        %2059 = vmatprep.subr.mxu0 0.0
        %2060 = vmatpush1.msra.mxu0 %v2040
        %2061 = vmatprep.subr.mxu0 0.0
        %2062 = vmatpush1.msra.mxu0 %v2041
        %2063 = vmatprep.subr.mxu0 0.0
        %2064 = vmatpush1.msra.mxu0 %v2042
        %2065 = vmatprep.subr.mxu0 0.0
        %2066 = vmatpush1.msra.mxu0 %v2043
        %2067 = vmatprep.subr.mxu0 0.0
        %2068 = vmatpush1.msra.mxu0 0.0
        %2069 = vmatprep.subr.mxu0 0.0
        %2070 = vmatpush1.msra.mxu0 0.0
        %2071 = vmatprep.subr.mxu0 0.0
        %2072 = vmatpush1.msra.mxu0 0.0
        %2073 = vmatprep.subr.mxu0 0.0
        %2074 = vmatpush1.msra.mxu0 0.0
        %2075 = vmatprep.subr.mxu0 0.0
        %2076 = vmatpush1.msra.mxu0 0.0
        %2077 = vmatprep.subr.mxu0 0.0
        %2078 = vmatpush1.msra.mxu0 0.0
        %2079 = vmatprep.subr.mxu0 0.0
        %2080 = vmatpush1.msra.mxu0 0.0
        %2081 = vmatprep.subr.mxu0 0.0
        %2082 = vmatpush1.msra.mxu0 0.0
        %2083 = vmatprep.subr.mxu0 0.0
        %2084 = vmatpush1.msra.mxu0 0.0
        %2085 = vmatprep.subr.mxu0 0.0
        %2086 = vmatpush1.msra.mxu0 0.0
        %2087 = vmatprep.subr.mxu0 0.0
        %2088 = vmatpush1.msra.mxu0 0.0
        %2089 = vmatprep.subr.mxu0 0.0
        %2090 = vmatpush1.msra.mxu0 0.0
        %2091 = vmatprep.subr.mxu0 0.0
        %2092 = vmatpush1.msra.mxu0 0.0
        %2093 = vmatprep.subr.mxu0 0.0
        %2094 = vmatpush1.msra.mxu0 0.0
        %2095 = vmatprep.subr.mxu0 0.0
        %2096 = vmatpush1.msra.mxu0 0.0
        %2097 = vmatprep.subr.mxu0 0.0
        %2098 = vmatpush1.msra.mxu0 0.0
        %2099 = vmatprep.subr.mxu0 0.0
        %2100 = vmatpush1.msra.mxu0 0.0
        %2101 = vmatprep.subr.mxu0 0.0
        %2102 = vmatpush1.msra.mxu0 0.0
        %2103 = vmatprep.subr.mxu0 0.0
        %2104 = vmatpush1.msra.mxu0 0.0
        %2105 = vmatprep.subr.mxu0 0.0
        %2106 = vmatpush1.msra.mxu0 0.0
        %2107 = vmatprep.subr.mxu0 0.0
        %2108 = vmatpush1.msra.mxu0 0.0
        %2109 = vmatprep.subr.mxu0 0.0
        %2110 = vmatpush1.msra.mxu0 0.0
        %2111 = vmatprep.subr.mxu0 0.0
        %2112 = vmatpush1.msra.mxu0 0.0
        %2113 = vmatprep.subr.mxu0 0.0
        %2114 = vmatpush1.msra.mxu0 0.0
        %2115 = vmatprep.mubr.f32.mxu0 0.0
        %2116 = vmatmul.mubr.f32.gmra.mrb[0].mxu0 %v2049
        %v2117 = vpop.f32.mrb[0].mxu0
        %v2118 = vadd.f32 %v2047, %v2117
        %v2119 = vpop.f32.mrb[0].mxu0
        %2120 = vdwg.mxu0
        %v2121 = vadd.f32 %v1939, %v2118
        %v2122 = vsel %vm506, %v2121, 0.0
        %2123 = vadd.xlane.f32.xlu0 %v2122
        %v2124 = vpop.xlane.xlu0 %2123
        %v2125 = vmul.f32 %v2124, %v510
        %v2126 = vsub.f32 %v2121, %v2125
        %v2127 = vmul.f32 %v2126, %v2126
        %v2128 = vsel %vm506, %v2127, 0.0
        %2129 = vadd.xlane.f32.xlu0 %v2128
        %v2130 = vpop.xlane.xlu0 %2129
        %v2131 = vmul.f32 %v2130, %v510
        %v2132 = vadd.f32 %v2131, 1e-12
        %v2133 = vrsqrt.pop %v2132
        %v2134 = vmul.f32 %v2126, %v2133
        %v2135 = vlaneseq
        %v2136 = vshrl.u32 %v2135, 7
        %v2137 = vsub.s32 4, %v2136
        %v2138 = vrot.slane %v1431, %v2137
        %v2139 = vmul.f32 %v2134, %v2138
        %v2140 = vlaneseq
        %v2141 = vshrl.u32 %v2140, 7
        %v2142 = vsub.s32 5, %v2141
        %v2143 = vrot.slane %v1431, %v2142
        %v2144 = vadd.f32 %v2139, %v2143
        %v2145 = vld [vmem:[%s10] sm:$0xff]
        %v2146 = vld [vmem:[%s10 + $0x8] sm:$0xff]
        %v2147 = vld [vmem:[%s10 + $0x10] sm:$0xff]
        %v2148 = vld [vmem:[%s10 + $0x18] sm:$0xff]
        %v2150 = vrot.slane %v504, 2
        %v2153 = vsel %vm506, %v2144, 0
        %2155 = vmatprep.subr.mxu0 0.0
        %2156 = vmatpush1.msra.mxu0 %v2145
        %2157 = vmatprep.subr.mxu0 0.0
        %2158 = vmatpush1.msra.mxu0 %v2146
        %2159 = vmatprep.subr.mxu0 0.0
        %2160 = vmatpush1.msra.mxu0 %v2147
        %2161 = vmatprep.subr.mxu0 0.0
        %2162 = vmatpush1.msra.mxu0 %v2148
        %2163 = vmatprep.subr.mxu0 0.0
        %2164 = vmatpush1.msra.mxu0 0.0
        %2165 = vmatprep.subr.mxu0 0.0
        %2166 = vmatpush1.msra.mxu0 0.0
        %2167 = vmatprep.subr.mxu0 0.0
        %2168 = vmatpush1.msra.mxu0 0.0
        %2169 = vmatprep.subr.mxu0 0.0
        %2170 = vmatpush1.msra.mxu0 0.0
        %2171 = vmatprep.subr.mxu0 0.0
        %2172 = vmatpush1.msra.mxu0 0.0
        %2173 = vmatprep.subr.mxu0 0.0
        %2174 = vmatpush1.msra.mxu0 0.0
        %2175 = vmatprep.subr.mxu0 0.0
        %2176 = vmatpush1.msra.mxu0 0.0
        %2177 = vmatprep.subr.mxu0 0.0
        %2178 = vmatpush1.msra.mxu0 0.0
        %2179 = vmatprep.subr.mxu0 0.0
        %2180 = vmatpush1.msra.mxu0 0.0
        %2181 = vmatprep.subr.mxu0 0.0
        %2182 = vmatpush1.msra.mxu0 0.0
        %2183 = vmatprep.subr.mxu0 0.0
        %2184 = vmatpush1.msra.mxu0 0.0
        %2185 = vmatprep.subr.mxu0 0.0
        %2186 = vmatpush1.msra.mxu0 0.0
        %2187 = vmatprep.subr.mxu0 0.0
        %2188 = vmatpush1.msra.mxu0 0.0
        %2189 = vmatprep.subr.mxu0 0.0
        %2190 = vmatpush1.msra.mxu0 0.0
        %2191 = vmatprep.subr.mxu0 0.0
        %2192 = vmatpush1.msra.mxu0 0.0
        %2193 = vmatprep.subr.mxu0 0.0
        %2194 = vmatpush1.msra.mxu0 0.0
        %2195 = vmatprep.subr.mxu0 0.0
        %2196 = vmatpush1.msra.mxu0 0.0
        %2197 = vmatprep.subr.mxu0 0.0
        %2198 = vmatpush1.msra.mxu0 0.0
        %2199 = vmatprep.subr.mxu0 0.0
        %2200 = vmatpush1.msra.mxu0 0.0
        %2201 = vmatprep.subr.mxu0 0.0
        %2202 = vmatpush1.msra.mxu0 0.0
        %2203 = vmatprep.subr.mxu0 0.0
        %2204 = vmatpush1.msra.mxu0 0.0
        %2205 = vmatprep.subr.mxu0 0.0
        %2206 = vmatpush1.msra.mxu0 0.0
        %2207 = vmatprep.subr.mxu0 0.0
        %2208 = vmatpush1.msra.mxu0 0.0
        %2209 = vmatprep.subr.mxu0 0.0
        %2210 = vmatpush1.msra.mxu0 0.0
        %2211 = vmatprep.subr.mxu0 0.0
        %2212 = vmatpush1.msra.mxu0 0.0
        %2213 = vmatprep.subr.mxu0 0.0
        %2214 = vmatpush1.msra.mxu0 0.0
        %2215 = vmatprep.subr.mxu0 0.0
        %2216 = vmatpush1.msra.mxu0 0.0
        %2217 = vmatprep.subr.mxu0 0.0
        %2218 = vmatpush1.msra.mxu0 0.0
        %2219 = vmatprep.mubr.f32.mxu0 0.0
        %2220 = vmatmul.mubr.f32.gmra.mrb[0].mxu0 %v2153
        %v2221 = vpop.f32.mrb[0].mxu0
        %v2222 = vadd.f32 %v2150, %v2221
        %v2223 = vpop.f32.mrb[0].mxu0
        %2224 = vdwg.mxu0
        %v2225 = vtanh.pop %v2222
        %v2226 = vld [vmem:[%s11] sm:$0xff]
        %v2227 = vld [vmem:[%s11 + $0x8] sm:$0xff]
        %v2228 = vld [vmem:[%s11 + $0x10] sm:$0xff]
        %v2229 = vld [vmem:[%s11 + $0x18] sm:$0xff]
        %v2230 = vrot.slane %v504, 3
        %v2233 = vsel %vm506, %v2225, 0
        %2235 = vmatprep.subr.mxu0 0.0
        %2236 = vmatpush1.msra.mxu0 %v2226
        %2237 = vmatprep.subr.mxu0 0.0
        %2238 = vmatpush1.msra.mxu0 %v2227
        %2239 = vmatprep.subr.mxu0 0.0
        %2240 = vmatpush1.msra.mxu0 %v2228
        %2241 = vmatprep.subr.mxu0 0.0
        %2242 = vmatpush1.msra.mxu0 %v2229
        %2243 = vmatprep.subr.mxu0 0.0
        %2244 = vmatpush1.msra.mxu0 0.0
        %2245 = vmatprep.subr.mxu0 0.0
        %2246 = vmatpush1.msra.mxu0 0.0
        %2247 = vmatprep.subr.mxu0 0.0
        %2248 = vmatpush1.msra.mxu0 0.0
        %2249 = vmatprep.subr.mxu0 0.0
        %2250 = vmatpush1.msra.mxu0 0.0
        %2251 = vmatprep.subr.mxu0 0.0
        %2252 = vmatpush1.msra.mxu0 0.0
        %2253 = vmatprep.subr.mxu0 0.0
        %2254 = vmatpush1.msra.mxu0 0.0
        %2255 = vmatprep.subr.mxu0 0.0
        %2256 = vmatpush1.msra.mxu0 0.0
        %2257 = vmatprep.subr.mxu0 0.0
        %2258 = vmatpush1.msra.mxu0 0.0
        %2259 = vmatprep.subr.mxu0 0.0
        %2260 = vmatpush1.msra.mxu0 0.0
        %2261 = vmatprep.subr.mxu0 0.0
        %2262 = vmatpush1.msra.mxu0 0.0
        %2263 = vmatprep.subr.mxu0 0.0
        %2264 = vmatpush1.msra.mxu0 0.0
        %2265 = vmatprep.subr.mxu0 0.0
        %2266 = vmatpush1.msra.mxu0 0.0
        %2267 = vmatprep.subr.mxu0 0.0
        %2268 = vmatpush1.msra.mxu0 0.0
        %2269 = vmatprep.subr.mxu0 0.0
        %2270 = vmatpush1.msra.mxu0 0.0
        %2271 = vmatprep.subr.mxu0 0.0
        %2272 = vmatpush1.msra.mxu0 0.0
        %2273 = vmatprep.subr.mxu0 0.0
        %2274 = vmatpush1.msra.mxu0 0.0
        %2275 = vmatprep.subr.mxu0 0.0
        %2276 = vmatpush1.msra.mxu0 0.0
        %2277 = vmatprep.subr.mxu0 0.0
        %2278 = vmatpush1.msra.mxu0 0.0
        %2279 = vmatprep.subr.mxu0 0.0
        %2280 = vmatpush1.msra.mxu0 0.0
        %2281 = vmatprep.subr.mxu0 0.0
        %2282 = vmatpush1.msra.mxu0 0.0
        %2283 = vmatprep.subr.mxu0 0.0
        %2284 = vmatpush1.msra.mxu0 0.0
        %2285 = vmatprep.subr.mxu0 0.0
        %2286 = vmatpush1.msra.mxu0 0.0
        %2287 = vmatprep.subr.mxu0 0.0
        %2288 = vmatpush1.msra.mxu0 0.0
        %2289 = vmatprep.subr.mxu0 0.0
        %2290 = vmatpush1.msra.mxu0 0.0
        %2291 = vmatprep.subr.mxu0 0.0
        %2292 = vmatpush1.msra.mxu0 0.0
        %2293 = vmatprep.subr.mxu0 0.0
        %2294 = vmatpush1.msra.mxu0 0.0
        %2295 = vmatprep.subr.mxu0 0.0
        %2296 = vmatpush1.msra.mxu0 0.0
        %2297 = vmatprep.subr.mxu0 0.0
        %2298 = vmatpush1.msra.mxu0 0.0
        %2299 = vmatprep.mubr.f32.mxu0 0.0
        %2300 = vmatmul.mubr.f32.gmra.mrb[0].mxu0 %v2233
        %v2301 = vpop.f32.mrb[0].mxu0
        %v2302 = vadd.f32 %v2230, %v2301
        %v2303 = vpop.f32.mrb[0].mxu0
        %2304 = vdwg.mxu0
        %vm2305 = vcmask 16384
        %v2306 = vsel %vm2305, %v2302, -inf
        %2307 = vmax.xlane.f32.xlu0 %v2306
        %v2308 = vpop.xlane.xlu0 %2307
        %v2309 = vsub.f32 %v2302, %v2308
        %v2310 = vmul.f32 %v2309, 1.442695
        %v2311 = vpow.pop %v2310
        %v2312 = vsel %vm2305, %v2311, 0.0
        %2313 = vadd.xlane.f32.xlu0 %v2312
        %v2314 = vpop.xlane.xlu0 %2313
        %v2315 = vrcp.pop %v2314
        %v2316 = vmul.f32 %v2311, %v2315
        %2317 = vst.msk [vmem:[%s502] sm:$0x1] %vm2305, %v2316
        %s2318 = sand.u32 %s303, 1
        %s2319 = scalar_lea.sflag [#allocation4], %s2318
        %s2320 = sand.u32 %s303, 1
        %s2321 = scalar_lea.vmem [#allocation11], %s2320
        // Predicated region
        $region89: #{tpu_custom_call.1} parent=67 // pred_check
          %p2322 = pneg %p313
        $region90: #{tpu_custom_call.1} parent=67 // pred_check_branch
          %2324 = sbr.rel (%p2322) target = $region92
        $region91: #{tpu_custom_call.1} parent=67 // pred_region
          %s2326 = ssub.s32 16, 16
          %2327 = vsyncadd %s2319, %s2326
          %s2328 = smul.addr %s33, 16
          %s2329 = scalar_lea.hbm %s12, %s2328
          %s2331 = sshll.u32 %s2321, 4
          %s2332 = int_to_ptr.vmem [resolvable:$true] %s2331
          %2334 = dma.vmem_to_hbm [thread:$0]  %s2332, 16, %s2329, %s2319
        $region92: #{tpu_custom_call.1} parent=67 // pred_fallthru
          _
      $region68: #{tpu_custom_call.1} parent=5 // pred_fallthru
        _
      %p2335 = scmp.le.s32.totalorder 2, %s28
      // Predicated region
      $region93: #{tpu_custom_call.1} parent=5 // pred_check
        %p2336 = pneg %p2335
      $region94: #{tpu_custom_call.1} parent=5 // pred_check_branch
        %2338 = sbr.rel (%p2336) target = $region96
      $region95: #{tpu_custom_call.1} parent=5 // pred_region
        %s2339 = ssub.s32 %s28, 2
        // Predicated region
        $region97: #{tpu_custom_call.1} parent=95 // pred_check
          %p2340 = pneg %p319
        $region98: #{tpu_custom_call.1} parent=95 // pred_check_branch
          %2342 = sbr.rel (%p2340) target = $region100
        $region99: #{tpu_custom_call.1} parent=95 // pred_region
          %s2343 = sand.u32 %s304, 1
          %s2344 = scalar_lea.sflag [#allocation4], %s2343
          %s2345 = sand.u32 %s304, 1
          %s2346 = scalar_lea.vmem [#allocation11], %s2345
          %2347 = dma.done %s2344, 16
        $region100: #{tpu_custom_call.1} parent=95 // pred_fallthru
          _
      $region96: #{tpu_custom_call.1} parent=5 // pred_fallthru
        _
    $region6: #{tpu_custom_call.1} parent=1 // loop_footer
      %s32 = sadd.s32 1, %s28
    $region7: #{tpu_custom_call.1} parent=1 // loop_footer_branch
      %27 = sbr.rel target = $region3
    $region8: #{tpu_custom_call.1} parent=1 // loop_exit
      _
    %2348 = vsyncpa [#allocation3], 1
    %s2349 = scalar_lea.sflag [#allocation3], 1
    %2350 = vsyncpa %s2349, 1
    %2351 = vsyncpa [#allocation6], 1
    %s2352 = scalar_lea.sflag [#allocation6], 1
    %2353 = vsyncpa %s2352, 1
    %2354 = vsyncpa [#allocation9], 1
    %2355 = vsyncpa [#allocation4], 1
    %s2356 = scalar_lea.sflag [#allocation4], 1
    %2357 = vsyncpa %s2356, 1

</llo_original>
